<compile_context>
chip_gen: v6e
topology: v6e:2x2x1
jax: 0.10.0
libtpu: 0.0.40
codegen_flags: <defaults>
</compile_context>

<pallas_src>
import jax
import jax.numpy as jnp
from jax.experimental import pallas as pl
from jax.experimental.pallas import tpu as pltpu

# ----------------------------- small synthetic config -----------------------------
D = 32                 # hidden size
PATCH = 4              # patch size
P_SIDE = 4             # patches per side
C = 3                  # image channels
H_IMG = W_IMG = PATCH * P_SIDE          # 16
NUM_PATCH = P_SIDE * P_SIDE             # 16
T = NUM_PATCH + 1                       # tokens incl. CLS
L = 2                  # transformer layers
NH = 2                 # attention heads
DH = D // NH
MLP = 4 * D
F = C * PATCH * PATCH  # im2col feature dim = 48
EPS = 1e-12            # HF ViT layernorm eps
NEG_INF = -1e9         # additive cross-image attention mask


def _layernorm(x, w, b, eps=EPS):
    mu = jnp.mean(x, axis=-1, keepdims=True)
    var = jnp.mean((x - mu) ** 2, axis=-1, keepdims=True)
    return (x - mu) * jax.lax.rsqrt(var + eps) * w + b


# ----------------------------- fused kernel -----------------------------
def fused_dino_kernel(intr_ref, view_ref, w1_ref, b1_ref, w2_ref, b2_ref,
                      wmod_ref, bmod_ref, emap_ref,
                      xcol_ref, wpatch_ref, bpatch_ref,
                      pospatch_ref, clsrow_ref, mask_ref,
                      ln1w_ref, ln1b_ref, wqkv_ref, bqkv_ref, wo_ref, bo_ref,
                      ln2w_ref, ln2b_ref, wi_ref, bi_ref, wout_ref, bout_ref,
                      lnfw_ref, lnfb_ref, out_ref):
    n_patch_rows = xcol_ref.shape[0]                  # B * NUM_PATCH

    # ---- camera (intrinsics) embedding + reference/source view embedding ----
    h = jnp.dot(intr_ref[...], w1_ref[...], preferred_element_type=jnp.float32) + b1_ref[0]
    h = h * jax.nn.sigmoid(h)                         # SiLU
    cond = (jnp.dot(h, w2_ref[...], preferred_element_type=jnp.float32)
            + b2_ref[0] + view_ref[...])              # (B, D) adaln_input
    c_act = cond * jax.nn.sigmoid(cond)               # SiLU (adaLN modulation head input)

    # all layers' shift/scale in ONE matmul, then per-image -> per-token via one-hot matmul
    mod_img = jnp.dot(c_act, wmod_ref[...],
                      preferred_element_type=jnp.float32) + bmod_ref[0]     # (B, L*4D)
    mod_tok = jnp.dot(emap_ref[...], mod_img,
                      preferred_element_type=jnp.float32)                   # (TT, L*4D)

    # ---- patch embedding (ImageNet normalization pre-folded into wpatch/bpatch) ----
    patches = jnp.dot(xcol_ref[...], wpatch_ref[...],
                      preferred_element_type=jnp.float32) + bpatch_ref[0]   # (B*NP, D)
    # token slab: [all patch tokens (image-major) | B CLS tokens]  -> (TT, D)
    x = jnp.concatenate([patches + pospatch_ref[...], clsrow_ref[...]], axis=0)

    mask = mask_ref[...]                              # (TT, TT) additive block-diagonal mask

    for l in range(L):
        base = 4 * D * l
        shift_msa = mod_tok[:, base + 0 * D: base + 1 * D]
        scale_msa = mod_tok[:, base + 1 * D: base + 2 * D]
        shift_mlp = mod_tok[:, base + 2 * D: base + 3 * D]
        scale_mlp = mod_tok[:, base + 3 * D: base + 4 * D]

        # ---- self-attention branch (all images at once, block-diag masked) ----
        y = _layernorm(x, ln1w_ref[l], ln1b_ref[l])
        y = y * (1.0 + scale_msa) + shift_msa
        qkv = jnp.dot(y, wqkv_ref[l], preferred_element_type=jnp.float32) + bqkv_ref[l]
        heads = []
        for hh in range(NH):
            q = qkv[:, hh * DH:(hh + 1) * DH]         # 1/sqrt(DH) already folded into Wq/bq
            k = qkv[:, D + hh * DH:D + (hh + 1) * DH]
            v = qkv[:, 2 * D + hh * DH:2 * D + (hh + 1) * DH]
            s = jax.lax.dot_general(q, k, (((1,), (1,)), ((), ())),
                                    preferred_element_type=jnp.float32) + mask
            s = s - jnp.max(s, axis=-1, keepdims=True)
            p = jnp.exp(s)
            p = p * pl.reciprocal(jnp.sum(p, axis=-1, keepdims=True), approx=True)
            heads.append(jnp.dot(p, v, preferred_element_type=jnp.float32))
        attn = jnp.concatenate(heads, axis=-1)        # (TT, D)
        x = x + jnp.dot(attn, wo_ref[l], preferred_element_type=jnp.float32) + bo_ref[l]

        # ---- MLP branch ----
        y = _layernorm(x, ln2w_ref[l], ln2b_ref[l])
        y = y * (1.0 + scale_mlp) + shift_mlp
        hdd = jnp.dot(y, wi_ref[l], preferred_element_type=jnp.float32) + bi_ref[l]
        # TODO(synk): HF ViT uses exact erf-GELU; tanh-approximate GELU used here.
        hdd = jax.nn.gelu(hdd, approximate=True)
        x = x + jnp.dot(hdd, wout_ref[l], preferred_element_type=jnp.float32) + bout_ref[l]

    # final ViT LayerNorm; CLS rows sit at the tail so dropping them is an aligned slice
    out_ref[...] = _layernorm(x[:n_patch_rows, :], lnfw_ref[0], lnfb_ref[0])


# ----------------------------- wrapper (glue + single pallas_call) -----------------------------
def dino_wrapper_forward(params, image, intrinsics):
    if image.ndim == 5:                               # 'b n c h w -> (b n) c h w'
        b, n = image.shape[:2]
        image = image.reshape(b * n, *image.shape[2:])
    B = image.shape[0]
    bs, N = intrinsics.shape[:2]
    assert bs * N == B, "image batch must equal bs*N (camera conditioning is per view)"

    # reference / source view embeddings: view 0 -> reference, views 1..N-1 -> source
    view_emb = jnp.concatenate(
        [params['ref_emb'], jnp.tile(params['src_emb'], (N - 1, 1))], axis=0)   # (N, D)
    view_emb = jnp.tile(view_emb, (bs, 1))                                      # (B, D)
    intr_flat = intrinsics.reshape(B, 4)

    # im2col for the stride==kernel Conv2d patch embedding (channel-major feature order)
    xcol = image.reshape(B, C, P_SIDE, PATCH, P_SIDE, PATCH)
    xcol = xcol.transpose(0, 2, 4, 1, 3, 5).reshape(B * NUM_PATCH, F)

    # fold ImageNet normalization (x - mean)/std into the patch projection
    inv_std = 1.0 / params['img_std'][0]
    w_patch = params['patch_w'] * inv_std[:, None]
    b_patch = (params['patch_b'][0]
               - (params['img_mean'][0] * inv_std) @ params['patch_w'])[None, :]

    # fold attention 1/sqrt(DH) into the Q projection
    qscale = 1.0 / (DH ** 0.5)
    w_qkv = params['w_qkv'].at[:, :, :D].multiply(qscale)
    b_qkv = params['b_qkv'].at[:, :D].multiply(qscale)

    # concatenate the adaLN modulation heads over layers -> one (D, L*4D) matmul in-kernel
    w_mod_cat = params['w_mod'].transpose(1, 0, 2).reshape(D, L * 4 * D)
    b_mod_cat = params['b_mod'].reshape(1, L * 4 * D)

    # token order: [all patch tokens (image-major), then the B CLS tokens]
    img_id = jnp.concatenate([jnp.repeat(jnp.arange(B), NUM_PATCH), jnp.arange(B)])
    emap = (img_id[:, None] == jnp.arange(B)[None, :]).astype(jnp.float32)      # (TT, B)
    mask = jnp.where(img_id[:, None] == img_id[None, :], 0.0, NEG_INF).astype(jnp.float32)

    # positional embedding (interpolate_pos_encoding is the identity at this resolution)
    pos_patch = jnp.tile(params['pos_embed'][0, 1:], (B, 1))                    # (B*NP, D)
    cls_row = jnp.broadcast_to(params['cls_token'][0, 0] + params['pos_embed'][0, 0], (B, D))

    args = (intr_flat, view_emb,
            params['intr_w1'], params['intr_b1'], params['intr_w2'], params['intr_b2'],
            w_mod_cat, b_mod_cat, emap,
            xcol, w_patch, b_patch, pos_patch, cls_row, mask,
            params['ln1_w'], params['ln1_b'], w_qkv, b_qkv, params['w_o'], params['b_o'],
            params['ln2_w'], params['ln2_b'], params['w_i'], params['b_i'],
            params['w_out'], params['b_out'], params['lnf_w'], params['lnf_b'])

    # everything fits in VMEM at this size -> single grid step, whole-array blocks
    # TODO(synk): at real DINO sizes (D=768, L=12) weights exceed VMEM; stream per-layer
    #             weight slabs with an 'arbitrary' L grid axis / pltpu.emit_pipeline and
    #             feed bf16 operands to the MXU.
    vmem = pl.BlockSpec(memory_space=pltpu.MemorySpace.VMEM)
    hidden = pl.pallas_call(
        fused_dino_kernel,
        in_specs=[vmem] * len(args),
        out_specs=vmem,
        out_shape=jax.ShapeDtypeStruct((B * NUM_PATCH, D), jnp.float32),
    )(*args)

    # rows are already (image-major, patch-major) with CLS dropped -> just reshape
    return hidden.reshape(B, NUM_PATCH, D)


# ----------------------------- deterministic synthetic params -----------------------------
def init_params(key):
    ks = jax.random.split(key, 16)

    def nrm(k, shape, scale):
        return jax.random.normal(k, shape, jnp.float32) * scale

    # TODO(synk): pretrained HF ViT weights are not loadable here; synthesized deterministically.
    return dict(
        intr_w1=nrm(ks[0], (4, D), 0.2), intr_b1=nrm(ks[1], (1, D), 0.02),
        intr_w2=nrm(ks[2], (D, D), 0.1), intr_b2=nrm(ks[3], (1, D), 0.02),
        ref_emb=nrm(ks[4], (1, D), 1.0), src_emb=nrm(ks[5], (1, D), 1.0),
        patch_w=nrm(ks[6], (F, D), 0.05), patch_b=nrm(ks[7], (1, D), 0.02),
        img_mean=jnp.repeat(jnp.array([0.485, 0.456, 0.406], jnp.float32),
                            PATCH * PATCH).reshape(1, F),
        img_std=jnp.repeat(jnp.array([0.229, 0.224, 0.225], jnp.float32),
                           PATCH * PATCH).reshape(1, F),
        cls_token=nrm(ks[8], (1, 1, D), 0.02),
        pos_embed=nrm(ks[9], (1, T, D), 0.02),
        ln1_w=jnp.ones((L, D), jnp.float32), ln1_b=jnp.zeros((L, D), jnp.float32),
        ln2_w=jnp.ones((L, D), jnp.float32), ln2_b=jnp.zeros((L, D), jnp.float32),
        w_qkv=nrm(ks[10], (L, D, 3 * D), 0.05), b_qkv=jnp.zeros((L, 3 * D), jnp.float32),
        w_o=nrm(ks[11], (L, D, D), 0.05), b_o=jnp.zeros((L, D), jnp.float32),
        w_i=nrm(ks[12], (L, D, MLP), 0.05), b_i=jnp.zeros((L, MLP), jnp.float32),
        w_out=nrm(ks[13], (L, MLP, D), 0.05), b_out=jnp.zeros((L, D), jnp.float32),
        w_mod=nrm(ks[14], (L, D, 4 * D), 0.05), b_mod=jnp.zeros((L, 4 * D), jnp.float32),
        lnf_w=jnp.ones((1, D), jnp.float32), lnf_b=jnp.zeros((1, D), jnp.float32),
    )


# ----------------------------- plain-JAX reference (for the check) -----------------------------
def reference_forward(params, image, intrinsics):
    if image.ndim == 5:
        b, n = image.shape[:2]
        image = image.reshape(b * n, *image.shape[2:])
    B = image.shape[0]
    bs, N = intrinsics.shape[:2]
    view_emb = jnp.concatenate(
        [params['ref_emb'], jnp.tile(params['src_emb'], (N - 1, 1))], axis=0)
    view_emb = jnp.tile(view_emb, (bs, 1))
    xin = intrinsics.reshape(bs * N, 4)
    h = xin @ params['intr_w1'] + params['intr_b1']
    h = h * jax.nn.sigmoid(h)
    cond = h @ params['intr_w2'] + params['intr_b2'] + view_emb

    xi = image.reshape(B, C, P_SIDE, PATCH, P_SIDE, PATCH)
    xi = xi.transpose(0, 2, 4, 1, 3, 5).reshape(B, NUM_PATCH, F)
    xn = (xi - params['img_mean'][0]) / params['img_std'][0]
    patch_tokens = jnp.einsum('bpf,fd->bpd', xn, params['patch_w']) + params['patch_b'][0]
    cls = jnp.broadcast_to(params['cls_token'], (B, 1, D))
    x = jnp.concatenate([cls, patch_tokens], axis=1) + params['pos_embed']

    c_act = cond * jax.nn.sigmoid(cond)
    for l in range(L):
        mod = c_act @ params['w_mod'][l] + params['b_mod'][l]
        shift_msa, scale_msa, shift_mlp, scale_mlp = jnp.split(mod, 4, axis=-1)
        y = _layernorm(x, params['ln1_w'][l], params['ln1_b'][l])
        y = y * (1.0 + scale_msa[:, None, :]) + shift_msa[:, None, :]
        qkv = jnp.einsum('btd,de->bte', y, params['w_qkv'][l]) + params['b_qkv'][l]
        q, k, v = jnp.split(qkv, 3, axis=-1)
        q = q.reshape(B, T, NH, DH).transpose(0, 2, 1, 3)
        k = k.reshape(B, T, NH, DH).transpose(0, 2, 1, 3)
        v = v.reshape(B, T, NH, DH).transpose(0, 2, 1, 3)
        s = jnp.einsum('bhqd,bhkd->bhqk', q, k) / (DH ** 0.5)
        p = jax.nn.softmax(s, axis=-1)
        a = jnp.einsum('bhqk,bhkd->bhqd', p, v).transpose(0, 2, 1, 3).reshape(B, T, D)
        a = jnp.einsum('btd,de->bte', a, params['w_o'][l]) + params['b_o'][l]
        x = x + a
        y = _layernorm(x, params['ln2_w'][l], params['ln2_b'][l])
        y = y * (1.0 + scale_mlp[:, None, :]) + shift_mlp[:, None, :]
        hdd = jax.nn.gelu(jnp.einsum('btd,de->bte', y, params['w_i'][l]) + params['b_i'][l],
                          approximate=True)
        x = x + jnp.einsum('bte,ed->btd', hdd, params['w_out'][l]) + params['b_out'][l]
    x = _layernorm(x, params['lnf_w'][0], params['lnf_b'][0])
    return x[:, 1:]


if __name__ == "__main__":
    key = jax.random.PRNGKey(0)
    kp, ki, kx = jax.random.split(key, 3)
    params = init_params(kp)

    bs, N = 2, 2
    # layout: NCHW per view, like the PyTorch module
    image = jax.random.uniform(kx, (bs, N, C, H_IMG, W_IMG), jnp.float32)
    intrinsics = jax.random.normal(ki, (bs, N, 4), jnp.float32)

    out = dino_wrapper_forward(params, image, intrinsics)
    out = jax.block_until_ready(out)

    assert out.shape == (bs * N, NUM_PATCH, D), out.shape
    assert bool(jnp.all(jnp.isfinite(out)))
    ref = reference_forward(params, image, intrinsics)
    err = float(jnp.max(jnp.abs(out - ref)))
    assert err < 5e-2, err

    print("KERNEL_OK")
</pallas_src>

<mosaic_0001>
module attributes {stable_mosaic.version = 11 : i64} {
  func.func @fused_dino_kernel(%arg0: memref<4x4xf32, #tpu.memory_space<vmem>>, %arg1: memref<4x32xf32, #tpu.memory_space<vmem>>, %arg2: memref<4x32xf32, #tpu.memory_space<vmem>>, %arg3: memref<1x32xf32, #tpu.memory_space<vmem>>, %arg4: memref<32x32xf32, #tpu.memory_space<vmem>>, %arg5: memref<1x32xf32, #tpu.memory_space<vmem>>, %arg6: memref<32x256xf32, #tpu.memory_space<vmem>>, %arg7: memref<1x256xf32, #tpu.memory_space<vmem>>, %arg8: memref<68x4xf32, #tpu.memory_space<vmem>>, %arg9: memref<64x48xf32, #tpu.memory_space<vmem>>, %arg10: memref<48x32xf32, #tpu.memory_space<vmem>>, %arg11: memref<1x32xf32, #tpu.memory_space<vmem>>, %arg12: memref<64x32xf32, #tpu.memory_space<vmem>>, %arg13: memref<4x32xf32, #tpu.memory_space<vmem>>, %arg14: memref<68x68xf32, #tpu.memory_space<vmem>>, %arg15: memref<2x32xf32, #tpu.memory_space<vmem>>, %arg16: memref<2x32xf32, #tpu.memory_space<vmem>>, %arg17: memref<2x32x96xf32, #tpu.memory_space<vmem>>, %arg18: memref<2x96xf32, #tpu.memory_space<vmem>>, %arg19: memref<2x32x32xf32, #tpu.memory_space<vmem>>, %arg20: memref<2x32xf32, #tpu.memory_space<vmem>>, %arg21: memref<2x32xf32, #tpu.memory_space<vmem>>, %arg22: memref<2x32xf32, #tpu.memory_space<vmem>>, %arg23: memref<2x32x128xf32, #tpu.memory_space<vmem>>, %arg24: memref<2x128xf32, #tpu.memory_space<vmem>>, %arg25: memref<2x128x32xf32, #tpu.memory_space<vmem>>, %arg26: memref<2x32xf32, #tpu.memory_space<vmem>>, %arg27: memref<1x32xf32, #tpu.memory_space<vmem>>, %arg28: memref<1x32xf32, #tpu.memory_space<vmem>>, %arg29: memref<64x32xf32, #tpu.memory_space<vmem>>) attributes {dimension_semantics = [], scalar_prefetch = 0 : i64, scratch_operands = 0 : i64, tpu.core_type = #tpu.core_type<tc>} {
    %c0 = arith.constant 0 : index
    %c0_0 = arith.constant 0 : index
    %0 = vector.load %arg0[%c0, %c0_0] : memref<4x4xf32, #tpu.memory_space<vmem>>, vector<4x4xf32>
    %c0_1 = arith.constant 0 : index
    %c0_2 = arith.constant 0 : index
    %1 = vector.load %arg2[%c0_1, %c0_2] : memref<4x32xf32, #tpu.memory_space<vmem>>, vector<4x32xf32>
    %cst = arith.constant dense<0.000000e+00> : vector<4x32xf32>
    %2 = tpu.matmul %0, %1, %cst {dimension_numbers = #tpu.dot_dimension_numbers<[1], [0], [0], [1], [0, 0, 1, 1], [], []>} : vector<4x4xf32>, vector<4x32xf32>, vector<4x32xf32> -> vector<4x32xf32>
    %c0_3 = arith.constant 0 : index
    %c0_4 = arith.constant 0 : index
    %3 = vector.load %arg3[%c0_3, %c0_4] : memref<1x32xf32, #tpu.memory_space<vmem>>, vector<1x32xf32>
    %4 = vector.shape_cast %3 : vector<1x32xf32> to vector<32xf32>
    %5 = vector.shape_cast %4 : vector<32xf32> to vector<1x32xf32>
    %6 = vector.broadcast %5 : vector<1x32xf32> to vector<4x32xf32>
    %7 = arith.addf %2, %6 : vector<4x32xf32>
    %8 = arith.negf %7 : vector<4x32xf32>
    %9 = math.exp %8 : vector<4x32xf32>
    %cst_5 = arith.constant 1.000000e+00 : f32
    %10 = vector.broadcast %cst_5 : f32 to vector<4x32xf32>
    %11 = arith.addf %10, %9 : vector<4x32xf32>
    %12 = arith.divf %10, %11 : vector<4x32xf32>
    %13 = arith.mulf %7, %12 : vector<4x32xf32>
    %c0_6 = arith.constant 0 : index
    %c0_7 = arith.constant 0 : index
    %14 = vector.load %arg4[%c0_6, %c0_7] : memref<32x32xf32, #tpu.memory_space<vmem>>, vector<32x32xf32>
    %cst_8 = arith.constant dense<0.000000e+00> : vector<4x32xf32>
    %15 = tpu.matmul %13, %14, %cst_8 {dimension_numbers = #tpu.dot_dimension_numbers<[1], [0], [0], [1], [0, 0, 1, 1], [], []>} : vector<4x32xf32>, vector<32x32xf32>, vector<4x32xf32> -> vector<4x32xf32>
    %c0_9 = arith.constant 0 : index
    %c0_10 = arith.constant 0 : index
    %16 = vector.load %arg5[%c0_9, %c0_10] : memref<1x32xf32, #tpu.memory_space<vmem>>, vector<1x32xf32>
    %17 = vector.shape_cast %16 : vector<1x32xf32> to vector<32xf32>
    %18 = vector.shape_cast %17 : vector<32xf32> to vector<1x32xf32>
    %19 = vector.broadcast %18 : vector<1x32xf32> to vector<4x32xf32>
    %20 = arith.addf %15, %19 : vector<4x32xf32>
    %c0_11 = arith.constant 0 : index
    %c0_12 = arith.constant 0 : index
    %21 = vector.load %arg1[%c0_11, %c0_12] : memref<4x32xf32, #tpu.memory_space<vmem>>, vector<4x32xf32>
    %22 = arith.addf %20, %21 : vector<4x32xf32>
    %23 = arith.negf %22 : vector<4x32xf32>
    %24 = math.exp %23 : vector<4x32xf32>
    %cst_13 = arith.constant 1.000000e+00 : f32
    %25 = vector.broadcast %cst_13 : f32 to vector<4x32xf32>
    %26 = arith.addf %25, %24 : vector<4x32xf32>
    %27 = arith.divf %25, %26 : vector<4x32xf32>
    %28 = arith.mulf %22, %27 : vector<4x32xf32>
    %c0_14 = arith.constant 0 : index
    %c0_15 = arith.constant 0 : index
    %29 = vector.load %arg6[%c0_14, %c0_15] : memref<32x256xf32, #tpu.memory_space<vmem>>, vector<32x256xf32>
    %cst_16 = arith.constant dense<0.000000e+00> : vector<4x256xf32>
    %30 = tpu.matmul %28, %29, %cst_16 {dimension_numbers = #tpu.dot_dimension_numbers<[1], [0], [0], [1], [0, 0, 1, 1], [], []>} : vector<4x32xf32>, vector<32x256xf32>, vector<4x256xf32> -> vector<4x256xf32>
    %c0_17 = arith.constant 0 : index
    %c0_18 = arith.constant 0 : index
    %31 = vector.load %arg7[%c0_17, %c0_18] : memref<1x256xf32, #tpu.memory_space<vmem>>, vector<1x256xf32>
    %32 = vector.shape_cast %31 : vector<1x256xf32> to vector<256xf32>
    %33 = vector.shape_cast %32 : vector<256xf32> to vector<1x256xf32>
    %34 = vector.broadcast %33 : vector<1x256xf32> to vector<4x256xf32>
    %35 = arith.addf %30, %34 : vector<4x256xf32>
    %c0_19 = arith.constant 0 : index
    %c0_20 = arith.constant 0 : index
    %36 = vector.load %arg8[%c0_19, %c0_20] : memref<68x4xf32, #tpu.memory_space<vmem>>, vector<68x4xf32>
    %cst_21 = arith.constant dense<0.000000e+00> : vector<68x256xf32>
    %37 = tpu.matmul %36, %35, %cst_21 {dimension_numbers = #tpu.dot_dimension_numbers<[1], [0], [0], [1], [0, 0, 1, 1], [], []>} : vector<68x4xf32>, vector<4x256xf32>, vector<68x256xf32> -> vector<68x256xf32>
    %c0_22 = arith.constant 0 : index
    %c0_23 = arith.constant 0 : index
    %38 = vector.load %arg9[%c0_22, %c0_23] : memref<64x48xf32, #tpu.memory_space<vmem>>, vector<64x48xf32>
    %c0_24 = arith.constant 0 : index
    %c0_25 = arith.constant 0 : index
    %39 = vector.load %arg10[%c0_24, %c0_25] : memref<48x32xf32, #tpu.memory_space<vmem>>, vector<48x32xf32>
    %cst_26 = arith.constant dense<0.000000e+00> : vector<64x32xf32>
    %40 = tpu.matmul %38, %39, %cst_26 {dimension_numbers = #tpu.dot_dimension_numbers<[1], [0], [0], [1], [0, 0, 1, 1], [], []>} : vector<64x48xf32>, vector<48x32xf32>, vector<64x32xf32> -> vector<64x32xf32>
    %c0_27 = arith.constant 0 : index
    %c0_28 = arith.constant 0 : index
    %41 = vector.load %arg11[%c0_27, %c0_28] : memref<1x32xf32, #tpu.memory_space<vmem>>, vector<1x32xf32>
    %42 = vector.shape_cast %41 : vector<1x32xf32> to vector<32xf32>
    %43 = vector.shape_cast %42 : vector<32xf32> to vector<1x32xf32>
    %44 = vector.broadcast %43 : vector<1x32xf32> to vector<64x32xf32>
    %45 = arith.addf %40, %44 : vector<64x32xf32>
    %c0_29 = arith.constant 0 : index
    %c0_30 = arith.constant 0 : index
    %46 = vector.load %arg12[%c0_29, %c0_30] : memref<64x32xf32, #tpu.memory_space<vmem>>, vector<64x32xf32>
    %47 = arith.addf %45, %46 : vector<64x32xf32>
    %c0_31 = arith.constant 0 : index
    %c0_32 = arith.constant 0 : index
    %48 = vector.load %arg13[%c0_31, %c0_32] : memref<4x32xf32, #tpu.memory_space<vmem>>, vector<4x32xf32>
    %49 = tpu.concatenate %47, %48 in 0 : vector<64x32xf32>, vector<4x32xf32> -> vector<68x32xf32>
    %c0_33 = arith.constant 0 : index
    %c0_34 = arith.constant 0 : index
    %50 = vector.load %arg14[%c0_33, %c0_34] : memref<68x68xf32, #tpu.memory_space<vmem>>, vector<68x68xf32>
    %51 = vector.extract_strided_slice %37 {offsets = [0, 0], sizes = [68, 32], strides = [1, 1]} : vector<68x256xf32> to vector<68x32xf32>
    %52 = vector.extract_strided_slice %37 {offsets = [0, 32], sizes = [68, 32], strides = [1, 1]} : vector<68x256xf32> to vector<68x32xf32>
    %53 = vector.extract_strided_slice %37 {offsets = [0, 64], sizes = [68, 32], strides = [1, 1]} : vector<68x256xf32> to vector<68x32xf32>
    %54 = vector.extract_strided_slice %37 {offsets = [0, 96], sizes = [68, 32], strides = [1, 1]} : vector<68x256xf32> to vector<68x32xf32>
    %c0_35 = arith.constant 0 : index
    %c0_36 = arith.constant 0 : index
    %55 = vector.load %arg15[%c0_35, %c0_36] : memref<2x32xf32, #tpu.memory_space<vmem>>, vector<1x32xf32>
    %56 = vector.shape_cast %55 : vector<1x32xf32> to vector<32xf32>
    %c0_37 = arith.constant 0 : index
    %c0_38 = arith.constant 0 : index
    %57 = vector.load %arg16[%c0_37, %c0_38] : memref<2x32xf32, #tpu.memory_space<vmem>>, vector<1x32xf32>
    %58 = vector.shape_cast %57 : vector<1x32xf32> to vector<32xf32>
    %cst_39 = arith.constant dense<0.000000e+00> : vector<68xf32>
    %59 = vector.multi_reduction <add>, %49, %cst_39 [1] : vector<68x32xf32> to vector<68xf32>
    %60 = vector.shape_cast %59 : vector<68xf32> to vector<68x1xf32>
    %cst_40 = arith.constant 3.200000e+01 : f32
    %61 = vector.broadcast %cst_40 : f32 to vector<68x1xf32>
    %62 = arith.divf %60, %61 : vector<68x1xf32>
    %63 = vector.broadcast %62 : vector<68x1xf32> to vector<68x32xf32>
    %64 = arith.subf %49, %63 : vector<68x32xf32>
    %65 = arith.mulf %64, %64 : vector<68x32xf32>
    %cst_41 = arith.constant dense<0.000000e+00> : vector<68xf32>
    %66 = vector.multi_reduction <add>, %65, %cst_41 [1] : vector<68x32xf32> to vector<68xf32>
    %67 = vector.shape_cast %66 : vector<68xf32> to vector<68x1xf32>
    %cst_42 = arith.constant 3.200000e+01 : f32
    %68 = vector.broadcast %cst_42 : f32 to vector<68x1xf32>
    %69 = arith.divf %67, %68 : vector<68x1xf32>
    %70 = vector.broadcast %62 : vector<68x1xf32> to vector<68x32xf32>
    %71 = arith.subf %49, %70 : vector<68x32xf32>
    %cst_43 = arith.constant 9.99999996E-13 : f32
    %72 = vector.broadcast %cst_43 : f32 to vector<68x1xf32>
    %73 = arith.addf %69, %72 : vector<68x1xf32>
    %74 = math.rsqrt %73 : vector<68x1xf32>
    %75 = vector.broadcast %74 : vector<68x1xf32> to vector<68x32xf32>
    %76 = arith.mulf %71, %75 : vector<68x32xf32>
    %77 = vector.shape_cast %56 : vector<32xf32> to vector<1x32xf32>
    %78 = vector.broadcast %77 : vector<1x32xf32> to vector<68x32xf32>
    %79 = arith.mulf %76, %78 : vector<68x32xf32>
    %80 = vector.shape_cast %58 : vector<32xf32> to vector<1x32xf32>
    %81 = vector.broadcast %80 : vector<1x32xf32> to vector<68x32xf32>
    %82 = arith.addf %79, %81 : vector<68x32xf32>
    %cst_44 = arith.constant 1.000000e+00 : f32
    %83 = vector.broadcast %cst_44 : f32 to vector<68x32xf32>
    %84 = arith.addf %83, %52 : vector<68x32xf32>
    %85 = arith.mulf %82, %84 : vector<68x32xf32>
    %86 = arith.addf %85, %51 : vector<68x32xf32>
    %c0_45 = arith.constant 0 : index
    %c0_46 = arith.constant 0 : index
    %c0_47 = arith.constant 0 : index
    %87 = vector.load %arg17[%c0_45, %c0_46, %c0_47] : memref<2x32x96xf32, #tpu.memory_space<vmem>>, vector<1x32x96xf32>
    %88 = vector.shape_cast %87 : vector<1x32x96xf32> to vector<32x96xf32>
    %cst_48 = arith.constant dense<0.000000e+00> : vector<68x96xf32>
    %89 = tpu.matmul %86, %88, %cst_48 {dimension_numbers = #tpu.dot_dimension_numbers<[1], [0], [0], [1], [0, 0, 1, 1], [], []>} : vector<68x32xf32>, vector<32x96xf32>, vector<68x96xf32> -> vector<68x96xf32>
    %c0_49 = arith.constant 0 : index
    %c0_50 = arith.constant 0 : index
    %90 = vector.load %arg18[%c0_49, %c0_50] : memref<2x96xf32, #tpu.memory_space<vmem>>, vector<1x96xf32>
    %91 = vector.shape_cast %90 : vector<1x96xf32> to vector<96xf32>
    %92 = vector.shape_cast %91 : vector<96xf32> to vector<1x96xf32>
    %93 = vector.broadcast %92 : vector<1x96xf32> to vector<68x96xf32>
    %94 = arith.addf %89, %93 : vector<68x96xf32>
    %95 = vector.extract_strided_slice %94 {offsets = [0, 0], sizes = [68, 16], strides = [1, 1]} : vector<68x96xf32> to vector<68x16xf32>
    %96 = vector.extract_strided_slice %94 {offsets = [0, 32], sizes = [68, 16], strides = [1, 1]} : vector<68x96xf32> to vector<68x16xf32>
    %97 = vector.extract_strided_slice %94 {offsets = [0, 64], sizes = [68, 16], strides = [1, 1]} : vector<68x96xf32> to vector<68x16xf32>
    %cst_51 = arith.constant dense<0.000000e+00> : vector<68x68xf32>
    %98 = tpu.matmul %95, %96, %cst_51 {dimension_numbers = #tpu.dot_dimension_numbers<[1], [1], [0], [0], [0, 0, 1, 0], [], []>} : vector<68x16xf32>, vector<68x16xf32>, vector<68x68xf32> -> vector<68x68xf32>
    %99 = arith.addf %98, %50 : vector<68x68xf32>
    %cst_52 = arith.constant dense<0xFF800000> : vector<68xf32>
    %100 = vector.multi_reduction <maximumf>, %99, %cst_52 [1] : vector<68x68xf32> to vector<68xf32>
    %101 = vector.shape_cast %100 : vector<68xf32> to vector<68x1xf32>
    %102 = vector.broadcast %101 : vector<68x1xf32> to vector<68x68xf32>
    %103 = arith.subf %99, %102 : vector<68x68xf32>
    %104 = math.exp %103 : vector<68x68xf32>
    %cst_53 = arith.constant dense<0.000000e+00> : vector<68xf32>
    %105 = vector.multi_reduction <add>, %104, %cst_53 [1] : vector<68x68xf32> to vector<68xf32>
    %106 = vector.shape_cast %105 : vector<68xf32> to vector<68x1xf32>
    %107 = tpu.reciprocal %106 {approx = true} : vector<68x1xf32> -> vector<68x1xf32>
    %108 = vector.broadcast %107 : vector<68x1xf32> to vector<68x68xf32>
    %109 = arith.mulf %104, %108 : vector<68x68xf32>
    %cst_54 = arith.constant dense<0.000000e+00> : vector<68x16xf32>
    %110 = tpu.matmul %109, %97, %cst_54 {dimension_numbers = #tpu.dot_dimension_numbers<[1], [0], [0], [1], [0, 0, 1, 1], [], []>} : vector<68x68xf32>, vector<68x16xf32>, vector<68x16xf32> -> vector<68x16xf32>
    %111 = vector.extract_strided_slice %94 {offsets = [0, 16], sizes = [68, 16], strides = [1, 1]} : vector<68x96xf32> to vector<68x16xf32>
    %112 = vector.extract_strided_slice %94 {offsets = [0, 48], sizes = [68, 16], strides = [1, 1]} : vector<68x96xf32> to vector<68x16xf32>
    %113 = vector.extract_strided_slice %94 {offsets = [0, 80], sizes = [68, 16], strides = [1, 1]} : vector<68x96xf32> to vector<68x16xf32>
    %cst_55 = arith.constant dense<0.000000e+00> : vector<68x68xf32>
    %114 = tpu.matmul %111, %112, %cst_55 {dimension_numbers = #tpu.dot_dimension_numbers<[1], [1], [0], [0], [0, 0, 1, 0], [], []>} : vector<68x16xf32>, vector<68x16xf32>, vector<68x68xf32> -> vector<68x68xf32>
    %115 = arith.addf %114, %50 : vector<68x68xf32>
    %cst_56 = arith.constant dense<0xFF800000> : vector<68xf32>
    %116 = vector.multi_reduction <maximumf>, %115, %cst_56 [1] : vector<68x68xf32> to vector<68xf32>
    %117 = vector.shape_cast %116 : vector<68xf32> to vector<68x1xf32>
    %118 = vector.broadcast %117 : vector<68x1xf32> to vector<68x68xf32>
    %119 = arith.subf %115, %118 : vector<68x68xf32>
    %120 = math.exp %119 : vector<68x68xf32>
    %cst_57 = arith.constant dense<0.000000e+00> : vector<68xf32>
    %121 = vector.multi_reduction <add>, %120, %cst_57 [1] : vector<68x68xf32> to vector<68xf32>
    %122 = vector.shape_cast %121 : vector<68xf32> to vector<68x1xf32>
    %123 = tpu.reciprocal %122 {approx = true} : vector<68x1xf32> -> vector<68x1xf32>
    %124 = vector.broadcast %123 : vector<68x1xf32> to vector<68x68xf32>
    %125 = arith.mulf %120, %124 : vector<68x68xf32>
    %cst_58 = arith.constant dense<0.000000e+00> : vector<68x16xf32>
    %126 = tpu.matmul %125, %113, %cst_58 {dimension_numbers = #tpu.dot_dimension_numbers<[1], [0], [0], [1], [0, 0, 1, 1], [], []>} : vector<68x68xf32>, vector<68x16xf32>, vector<68x16xf32> -> vector<68x16xf32>
    %127 = tpu.concatenate %110, %126 in 1 : vector<68x16xf32>, vector<68x16xf32> -> vector<68x32xf32>
    %c0_59 = arith.constant 0 : index
    %c0_60 = arith.constant 0 : index
    %c0_61 = arith.constant 0 : index
    %128 = vector.load %arg19[%c0_59, %c0_60, %c0_61] : memref<2x32x32xf32, #tpu.memory_space<vmem>>, vector<1x32x32xf32>
    %129 = vector.shape_cast %128 : vector<1x32x32xf32> to vector<32x32xf32>
    %cst_62 = arith.constant dense<0.000000e+00> : vector<68x32xf32>
    %130 = tpu.matmul %127, %129, %cst_62 {dimension_numbers = #tpu.dot_dimension_numbers<[1], [0], [0], [1], [0, 0, 1, 1], [], []>} : vector<68x32xf32>, vector<32x32xf32>, vector<68x32xf32> -> vector<68x32xf32>
    %131 = arith.addf %49, %130 : vector<68x32xf32>
    %c0_63 = arith.constant 0 : index
    %c0_64 = arith.constant 0 : index
    %132 = vector.load %arg20[%c0_63, %c0_64] : memref<2x32xf32, #tpu.memory_space<vmem>>, vector<1x32xf32>
    %133 = vector.shape_cast %132 : vector<1x32xf32> to vector<32xf32>
    %134 = vector.shape_cast %133 : vector<32xf32> to vector<1x32xf32>
    %135 = vector.broadcast %134 : vector<1x32xf32> to vector<68x32xf32>
    %136 = arith.addf %131, %135 : vector<68x32xf32>
    %c0_65 = arith.constant 0 : index
    %c0_66 = arith.constant 0 : index
    %137 = vector.load %arg21[%c0_65, %c0_66] : memref<2x32xf32, #tpu.memory_space<vmem>>, vector<1x32xf32>
    %138 = vector.shape_cast %137 : vector<1x32xf32> to vector<32xf32>
    %c0_67 = arith.constant 0 : index
    %c0_68 = arith.constant 0 : index
    %139 = vector.load %arg22[%c0_67, %c0_68] : memref<2x32xf32, #tpu.memory_space<vmem>>, vector<1x32xf32>
    %140 = vector.shape_cast %139 : vector<1x32xf32> to vector<32xf32>
    %cst_69 = arith.constant dense<0.000000e+00> : vector<68xf32>
    %141 = vector.multi_reduction <add>, %136, %cst_69 [1] : vector<68x32xf32> to vector<68xf32>
    %142 = vector.shape_cast %141 : vector<68xf32> to vector<68x1xf32>
    %cst_70 = arith.constant 3.200000e+01 : f32
    %143 = vector.broadcast %cst_70 : f32 to vector<68x1xf32>
    %144 = arith.divf %142, %143 : vector<68x1xf32>
    %145 = vector.broadcast %144 : vector<68x1xf32> to vector<68x32xf32>
    %146 = arith.subf %136, %145 : vector<68x32xf32>
    %147 = arith.mulf %146, %146 : vector<68x32xf32>
    %cst_71 = arith.constant dense<0.000000e+00> : vector<68xf32>
    %148 = vector.multi_reduction <add>, %147, %cst_71 [1] : vector<68x32xf32> to vector<68xf32>
    %149 = vector.shape_cast %148 : vector<68xf32> to vector<68x1xf32>
    %cst_72 = arith.constant 3.200000e+01 : f32
    %150 = vector.broadcast %cst_72 : f32 to vector<68x1xf32>
    %151 = arith.divf %149, %150 : vector<68x1xf32>
    %152 = vector.broadcast %144 : vector<68x1xf32> to vector<68x32xf32>
    %153 = arith.subf %136, %152 : vector<68x32xf32>
    %cst_73 = arith.constant 9.99999996E-13 : f32
    %154 = vector.broadcast %cst_73 : f32 to vector<68x1xf32>
    %155 = arith.addf %151, %154 : vector<68x1xf32>
    %156 = math.rsqrt %155 : vector<68x1xf32>
    %157 = vector.broadcast %156 : vector<68x1xf32> to vector<68x32xf32>
    %158 = arith.mulf %153, %157 : vector<68x32xf32>
    %159 = vector.shape_cast %138 : vector<32xf32> to vector<1x32xf32>
    %160 = vector.broadcast %159 : vector<1x32xf32> to vector<68x32xf32>
    %161 = arith.mulf %158, %160 : vector<68x32xf32>
    %162 = vector.shape_cast %140 : vector<32xf32> to vector<1x32xf32>
    %163 = vector.broadcast %162 : vector<1x32xf32> to vector<68x32xf32>
    %164 = arith.addf %161, %163 : vector<68x32xf32>
    %cst_74 = arith.constant 1.000000e+00 : f32
    %165 = vector.broadcast %cst_74 : f32 to vector<68x32xf32>
    %166 = arith.addf %165, %54 : vector<68x32xf32>
    %167 = arith.mulf %164, %166 : vector<68x32xf32>
    %168 = arith.addf %167, %53 : vector<68x32xf32>
    %c0_75 = arith.constant 0 : index
    %c0_76 = arith.constant 0 : index
    %c0_77 = arith.constant 0 : index
    %169 = vector.load %arg23[%c0_75, %c0_76, %c0_77] : memref<2x32x128xf32, #tpu.memory_space<vmem>>, vector<1x32x128xf32>
    %170 = vector.shape_cast %169 : vector<1x32x128xf32> to vector<32x128xf32>
    %cst_78 = arith.constant dense<0.000000e+00> : vector<68x128xf32>
    %171 = tpu.matmul %168, %170, %cst_78 {dimension_numbers = #tpu.dot_dimension_numbers<[1], [0], [0], [1], [0, 0, 1, 1], [], []>} : vector<68x32xf32>, vector<32x128xf32>, vector<68x128xf32> -> vector<68x128xf32>
    %c0_79 = arith.constant 0 : index
    %c0_80 = arith.constant 0 : index
    %172 = vector.load %arg24[%c0_79, %c0_80] : memref<2x128xf32, #tpu.memory_space<vmem>>, vector<1x128xf32>
    %173 = vector.shape_cast %172 : vector<1x128xf32> to vector<128xf32>
    %174 = vector.shape_cast %173 : vector<128xf32> to vector<1x128xf32>
    %175 = vector.broadcast %174 : vector<1x128xf32> to vector<68x128xf32>
    %176 = arith.addf %171, %175 : vector<68x128xf32>
    %177 = arith.mulf %176, %176 : vector<68x128xf32>
    %178 = arith.mulf %176, %177 : vector<68x128xf32>
    %cst_81 = arith.constant 4.471500e-02 : f32
    %179 = vector.broadcast %cst_81 : f32 to vector<68x128xf32>
    %180 = arith.mulf %179, %178 : vector<68x128xf32>
    %181 = arith.addf %176, %180 : vector<68x128xf32>
    %cst_82 = arith.constant 0.797884583 : f32
    %182 = vector.broadcast %cst_82 : f32 to vector<68x128xf32>
    %183 = arith.mulf %182, %181 : vector<68x128xf32>
    %184 = math.tanh %183 : vector<68x128xf32>
    %cst_83 = arith.constant 1.000000e+00 : f32
    %185 = vector.broadcast %cst_83 : f32 to vector<68x128xf32>
    %186 = arith.addf %185, %184 : vector<68x128xf32>
    %cst_84 = arith.constant 5.000000e-01 : f32
    %187 = vector.broadcast %cst_84 : f32 to vector<68x128xf32>
    %188 = arith.mulf %187, %186 : vector<68x128xf32>
    %189 = arith.mulf %176, %188 : vector<68x128xf32>
    %c0_85 = arith.constant 0 : index
    %c0_86 = arith.constant 0 : index
    %c0_87 = arith.constant 0 : index
    %190 = vector.load %arg25[%c0_85, %c0_86, %c0_87] : memref<2x128x32xf32, #tpu.memory_space<vmem>>, vector<1x128x32xf32>
    %191 = vector.shape_cast %190 : vector<1x128x32xf32> to vector<128x32xf32>
    %cst_88 = arith.constant dense<0.000000e+00> : vector<68x32xf32>
    %192 = tpu.matmul %189, %191, %cst_88 {dimension_numbers = #tpu.dot_dimension_numbers<[1], [0], [0], [1], [0, 0, 1, 1], [], []>} : vector<68x128xf32>, vector<128x32xf32>, vector<68x32xf32> -> vector<68x32xf32>
    %193 = arith.addf %136, %192 : vector<68x32xf32>
    %c0_89 = arith.constant 0 : index
    %c0_90 = arith.constant 0 : index
    %194 = vector.load %arg26[%c0_89, %c0_90] : memref<2x32xf32, #tpu.memory_space<vmem>>, vector<1x32xf32>
    %195 = vector.shape_cast %194 : vector<1x32xf32> to vector<32xf32>
    %196 = vector.shape_cast %195 : vector<32xf32> to vector<1x32xf32>
    %197 = vector.broadcast %196 : vector<1x32xf32> to vector<68x32xf32>
    %198 = arith.addf %193, %197 : vector<68x32xf32>
    %199 = vector.extract_strided_slice %37 {offsets = [0, 128], sizes = [68, 32], strides = [1, 1]} : vector<68x256xf32> to vector<68x32xf32>
    %200 = vector.extract_strided_slice %37 {offsets = [0, 160], sizes = [68, 32], strides = [1, 1]} : vector<68x256xf32> to vector<68x32xf32>
    %201 = vector.extract_strided_slice %37 {offsets = [0, 192], sizes = [68, 32], strides = [1, 1]} : vector<68x256xf32> to vector<68x32xf32>
    %202 = vector.extract_strided_slice %37 {offsets = [0, 224], sizes = [68, 32], strides = [1, 1]} : vector<68x256xf32> to vector<68x32xf32>
    %c1 = arith.constant 1 : index
    %c0_91 = arith.constant 0 : index
    %203 = vector.load %arg15[%c1, %c0_91] : memref<2x32xf32, #tpu.memory_space<vmem>>, vector<1x32xf32>
    %204 = vector.shape_cast %203 : vector<1x32xf32> to vector<32xf32>
    %c1_92 = arith.constant 1 : index
    %c0_93 = arith.constant 0 : index
    %205 = vector.load %arg16[%c1_92, %c0_93] : memref<2x32xf32, #tpu.memory_space<vmem>>, vector<1x32xf32>
    %206 = vector.shape_cast %205 : vector<1x32xf32> to vector<32xf32>
    %cst_94 = arith.constant dense<0.000000e+00> : vector<68xf32>
    %207 = vector.multi_reduction <add>, %198, %cst_94 [1] : vector<68x32xf32> to vector<68xf32>
    %208 = vector.shape_cast %207 : vector<68xf32> to vector<68x1xf32>
    %cst_95 = arith.constant 3.200000e+01 : f32
    %209 = vector.broadcast %cst_95 : f32 to vector<68x1xf32>
    %210 = arith.divf %208, %209 : vector<68x1xf32>
    %211 = vector.broadcast %210 : vector<68x1xf32> to vector<68x32xf32>
    %212 = arith.subf %198, %211 : vector<68x32xf32>
    %213 = arith.mulf %212, %212 : vector<68x32xf32>
    %cst_96 = arith.constant dense<0.000000e+00> : vector<68xf32>
    %214 = vector.multi_reduction <add>, %213, %cst_96 [1] : vector<68x32xf32> to vector<68xf32>
    %215 = vector.shape_cast %214 : vector<68xf32> to vector<68x1xf32>
    %cst_97 = arith.constant 3.200000e+01 : f32
    %216 = vector.broadcast %cst_97 : f32 to vector<68x1xf32>
    %217 = arith.divf %215, %216 : vector<68x1xf32>
    %218 = vector.broadcast %210 : vector<68x1xf32> to vector<68x32xf32>
    %219 = arith.subf %198, %218 : vector<68x32xf32>
    %cst_98 = arith.constant 9.99999996E-13 : f32
    %220 = vector.broadcast %cst_98 : f32 to vector<68x1xf32>
    %221 = arith.addf %217, %220 : vector<68x1xf32>
    %222 = math.rsqrt %221 : vector<68x1xf32>
    %223 = vector.broadcast %222 : vector<68x1xf32> to vector<68x32xf32>
    %224 = arith.mulf %219, %223 : vector<68x32xf32>
    %225 = vector.shape_cast %204 : vector<32xf32> to vector<1x32xf32>
    %226 = vector.broadcast %225 : vector<1x32xf32> to vector<68x32xf32>
    %227 = arith.mulf %224, %226 : vector<68x32xf32>
    %228 = vector.shape_cast %206 : vector<32xf32> to vector<1x32xf32>
    %229 = vector.broadcast %228 : vector<1x32xf32> to vector<68x32xf32>
    %230 = arith.addf %227, %229 : vector<68x32xf32>
    %cst_99 = arith.constant 1.000000e+00 : f32
    %231 = vector.broadcast %cst_99 : f32 to vector<68x32xf32>
    %232 = arith.addf %231, %200 : vector<68x32xf32>
    %233 = arith.mulf %230, %232 : vector<68x32xf32>
    %234 = arith.addf %233, %199 : vector<68x32xf32>
    %c1_100 = arith.constant 1 : index
    %c0_101 = arith.constant 0 : index
    %c0_102 = arith.constant 0 : index
    %235 = vector.load %arg17[%c1_100, %c0_101, %c0_102] : memref<2x32x96xf32, #tpu.memory_space<vmem>>, vector<1x32x96xf32>
    %236 = vector.shape_cast %235 : vector<1x32x96xf32> to vector<32x96xf32>
    %cst_103 = arith.constant dense<0.000000e+00> : vector<68x96xf32>
    %237 = tpu.matmul %234, %236, %cst_103 {dimension_numbers = #tpu.dot_dimension_numbers<[1], [0], [0], [1], [0, 0, 1, 1], [], []>} : vector<68x32xf32>, vector<32x96xf32>, vector<68x96xf32> -> vector<68x96xf32>
    %c1_104 = arith.constant 1 : index
    %c0_105 = arith.constant 0 : index
    %238 = vector.load %arg18[%c1_104, %c0_105] : memref<2x96xf32, #tpu.memory_space<vmem>>, vector<1x96xf32>
    %239 = vector.shape_cast %238 : vector<1x96xf32> to vector<96xf32>
    %240 = vector.shape_cast %239 : vector<96xf32> to vector<1x96xf32>
    %241 = vector.broadcast %240 : vector<1x96xf32> to vector<68x96xf32>
    %242 = arith.addf %237, %241 : vector<68x96xf32>
    %243 = vector.extract_strided_slice %242 {offsets = [0, 0], sizes = [68, 16], strides = [1, 1]} : vector<68x96xf32> to vector<68x16xf32>
    %244 = vector.extract_strided_slice %242 {offsets = [0, 32], sizes = [68, 16], strides = [1, 1]} : vector<68x96xf32> to vector<68x16xf32>
    %245 = vector.extract_strided_slice %242 {offsets = [0, 64], sizes = [68, 16], strides = [1, 1]} : vector<68x96xf32> to vector<68x16xf32>
    %cst_106 = arith.constant dense<0.000000e+00> : vector<68x68xf32>
    %246 = tpu.matmul %243, %244, %cst_106 {dimension_numbers = #tpu.dot_dimension_numbers<[1], [1], [0], [0], [0, 0, 1, 0], [], []>} : vector<68x16xf32>, vector<68x16xf32>, vector<68x68xf32> -> vector<68x68xf32>
    %247 = arith.addf %246, %50 : vector<68x68xf32>
    %cst_107 = arith.constant dense<0xFF800000> : vector<68xf32>
    %248 = vector.multi_reduction <maximumf>, %247, %cst_107 [1] : vector<68x68xf32> to vector<68xf32>
    %249 = vector.shape_cast %248 : vector<68xf32> to vector<68x1xf32>
    %250 = vector.broadcast %249 : vector<68x1xf32> to vector<68x68xf32>
    %251 = arith.subf %247, %250 : vector<68x68xf32>
    %252 = math.exp %251 : vector<68x68xf32>
    %cst_108 = arith.constant dense<0.000000e+00> : vector<68xf32>
    %253 = vector.multi_reduction <add>, %252, %cst_108 [1] : vector<68x68xf32> to vector<68xf32>
    %254 = vector.shape_cast %253 : vector<68xf32> to vector<68x1xf32>
    %255 = tpu.reciprocal %254 {approx = true} : vector<68x1xf32> -> vector<68x1xf32>
    %256 = vector.broadcast %255 : vector<68x1xf32> to vector<68x68xf32>
    %257 = arith.mulf %252, %256 : vector<68x68xf32>
    %cst_109 = arith.constant dense<0.000000e+00> : vector<68x16xf32>
    %258 = tpu.matmul %257, %245, %cst_109 {dimension_numbers = #tpu.dot_dimension_numbers<[1], [0], [0], [1], [0, 0, 1, 1], [], []>} : vector<68x68xf32>, vector<68x16xf32>, vector<68x16xf32> -> vector<68x16xf32>
    %259 = vector.extract_strided_slice %242 {offsets = [0, 16], sizes = [68, 16], strides = [1, 1]} : vector<68x96xf32> to vector<68x16xf32>
    %260 = vector.extract_strided_slice %242 {offsets = [0, 48], sizes = [68, 16], strides = [1, 1]} : vector<68x96xf32> to vector<68x16xf32>
    %261 = vector.extract_strided_slice %242 {offsets = [0, 80], sizes = [68, 16], strides = [1, 1]} : vector<68x96xf32> to vector<68x16xf32>
    %cst_110 = arith.constant dense<0.000000e+00> : vector<68x68xf32>
    %262 = tpu.matmul %259, %260, %cst_110 {dimension_numbers = #tpu.dot_dimension_numbers<[1], [1], [0], [0], [0, 0, 1, 0], [], []>} : vector<68x16xf32>, vector<68x16xf32>, vector<68x68xf32> -> vector<68x68xf32>
    %263 = arith.addf %262, %50 : vector<68x68xf32>
    %cst_111 = arith.constant dense<0xFF800000> : vector<68xf32>
    %264 = vector.multi_reduction <maximumf>, %263, %cst_111 [1] : vector<68x68xf32> to vector<68xf32>
    %265 = vector.shape_cast %264 : vector<68xf32> to vector<68x1xf32>
    %266 = vector.broadcast %265 : vector<68x1xf32> to vector<68x68xf32>
    %267 = arith.subf %263, %266 : vector<68x68xf32>
    %268 = math.exp %267 : vector<68x68xf32>
    %cst_112 = arith.constant dense<0.000000e+00> : vector<68xf32>
    %269 = vector.multi_reduction <add>, %268, %cst_112 [1] : vector<68x68xf32> to vector<68xf32>
    %270 = vector.shape_cast %269 : vector<68xf32> to vector<68x1xf32>
    %271 = tpu.reciprocal %270 {approx = true} : vector<68x1xf32> -> vector<68x1xf32>
    %272 = vector.broadcast %271 : vector<68x1xf32> to vector<68x68xf32>
    %273 = arith.mulf %268, %272 : vector<68x68xf32>
    %cst_113 = arith.constant dense<0.000000e+00> : vector<68x16xf32>
    %274 = tpu.matmul %273, %261, %cst_113 {dimension_numbers = #tpu.dot_dimension_numbers<[1], [0], [0], [1], [0, 0, 1, 1], [], []>} : vector<68x68xf32>, vector<68x16xf32>, vector<68x16xf32> -> vector<68x16xf32>
    %275 = tpu.concatenate %258, %274 in 1 : vector<68x16xf32>, vector<68x16xf32> -> vector<68x32xf32>
    %c1_114 = arith.constant 1 : index
    %c0_115 = arith.constant 0 : index
    %c0_116 = arith.constant 0 : index
    %276 = vector.load %arg19[%c1_114, %c0_115, %c0_116] : memref<2x32x32xf32, #tpu.memory_space<vmem>>, vector<1x32x32xf32>
    %277 = vector.shape_cast %276 : vector<1x32x32xf32> to vector<32x32xf32>
    %cst_117 = arith.constant dense<0.000000e+00> : vector<68x32xf32>
    %278 = tpu.matmul %275, %277, %cst_117 {dimension_numbers = #tpu.dot_dimension_numbers<[1], [0], [0], [1], [0, 0, 1, 1], [], []>} : vector<68x32xf32>, vector<32x32xf32>, vector<68x32xf32> -> vector<68x32xf32>
    %279 = arith.addf %198, %278 : vector<68x32xf32>
    %c1_118 = arith.constant 1 : index
    %c0_119 = arith.constant 0 : index
    %280 = vector.load %arg20[%c1_118, %c0_119] : memref<2x32xf32, #tpu.memory_space<vmem>>, vector<1x32xf32>
    %281 = vector.shape_cast %280 : vector<1x32xf32> to vector<32xf32>
    %282 = vector.shape_cast %281 : vector<32xf32> to vector<1x32xf32>
    %283 = vector.broadcast %282 : vector<1x32xf32> to vector<68x32xf32>
    %284 = arith.addf %279, %283 : vector<68x32xf32>
    %c1_120 = arith.constant 1 : index
    %c0_121 = arith.constant 0 : index
    %285 = vector.load %arg21[%c1_120, %c0_121] : memref<2x32xf32, #tpu.memory_space<vmem>>, vector<1x32xf32>
    %286 = vector.shape_cast %285 : vector<1x32xf32> to vector<32xf32>
    %c1_122 = arith.constant 1 : index
    %c0_123 = arith.constant 0 : index
    %287 = vector.load %arg22[%c1_122, %c0_123] : memref<2x32xf32, #tpu.memory_space<vmem>>, vector<1x32xf32>
    %288 = vector.shape_cast %287 : vector<1x32xf32> to vector<32xf32>
    %cst_124 = arith.constant dense<0.000000e+00> : vector<68xf32>
    %289 = vector.multi_reduction <add>, %284, %cst_124 [1] : vector<68x32xf32> to vector<68xf32>
    %290 = vector.shape_cast %289 : vector<68xf32> to vector<68x1xf32>
    %cst_125 = arith.constant 3.200000e+01 : f32
    %291 = vector.broadcast %cst_125 : f32 to vector<68x1xf32>
    %292 = arith.divf %290, %291 : vector<68x1xf32>
    %293 = vector.broadcast %292 : vector<68x1xf32> to vector<68x32xf32>
    %294 = arith.subf %284, %293 : vector<68x32xf32>
    %295 = arith.mulf %294, %294 : vector<68x32xf32>
    %cst_126 = arith.constant dense<0.000000e+00> : vector<68xf32>
    %296 = vector.multi_reduction <add>, %295, %cst_126 [1] : vector<68x32xf32> to vector<68xf32>
    %297 = vector.shape_cast %296 : vector<68xf32> to vector<68x1xf32>
    %cst_127 = arith.constant 3.200000e+01 : f32
    %298 = vector.broadcast %cst_127 : f32 to vector<68x1xf32>
    %299 = arith.divf %297, %298 : vector<68x1xf32>
    %300 = vector.broadcast %292 : vector<68x1xf32> to vector<68x32xf32>
    %301 = arith.subf %284, %300 : vector<68x32xf32>
    %cst_128 = arith.constant 9.99999996E-13 : f32
    %302 = vector.broadcast %cst_128 : f32 to vector<68x1xf32>
    %303 = arith.addf %299, %302 : vector<68x1xf32>
    %304 = math.rsqrt %303 : vector<68x1xf32>
    %305 = vector.broadcast %304 : vector<68x1xf32> to vector<68x32xf32>
    %306 = arith.mulf %301, %305 : vector<68x32xf32>
    %307 = vector.shape_cast %286 : vector<32xf32> to vector<1x32xf32>
    %308 = vector.broadcast %307 : vector<1x32xf32> to vector<68x32xf32>
    %309 = arith.mulf %306, %308 : vector<68x32xf32>
    %310 = vector.shape_cast %288 : vector<32xf32> to vector<1x32xf32>
    %311 = vector.broadcast %310 : vector<1x32xf32> to vector<68x32xf32>
    %312 = arith.addf %309, %311 : vector<68x32xf32>
    %cst_129 = arith.constant 1.000000e+00 : f32
    %313 = vector.broadcast %cst_129 : f32 to vector<68x32xf32>
    %314 = arith.addf %313, %202 : vector<68x32xf32>
    %315 = arith.mulf %312, %314 : vector<68x32xf32>
    %316 = arith.addf %315, %201 : vector<68x32xf32>
    %c1_130 = arith.constant 1 : index
    %c0_131 = arith.constant 0 : index
    %c0_132 = arith.constant 0 : index
    %317 = vector.load %arg23[%c1_130, %c0_131, %c0_132] : memref<2x32x128xf32, #tpu.memory_space<vmem>>, vector<1x32x128xf32>
    %318 = vector.shape_cast %317 : vector<1x32x128xf32> to vector<32x128xf32>
    %cst_133 = arith.constant dense<0.000000e+00> : vector<68x128xf32>
    %319 = tpu.matmul %316, %318, %cst_133 {dimension_numbers = #tpu.dot_dimension_numbers<[1], [0], [0], [1], [0, 0, 1, 1], [], []>} : vector<68x32xf32>, vector<32x128xf32>, vector<68x128xf32> -> vector<68x128xf32>
    %c1_134 = arith.constant 1 : index
    %c0_135 = arith.constant 0 : index
    %320 = vector.load %arg24[%c1_134, %c0_135] : memref<2x128xf32, #tpu.memory_space<vmem>>, vector<1x128xf32>
    %321 = vector.shape_cast %320 : vector<1x128xf32> to vector<128xf32>
    %322 = vector.shape_cast %321 : vector<128xf32> to vector<1x128xf32>
    %323 = vector.broadcast %322 : vector<1x128xf32> to vector<68x128xf32>
    %324 = arith.addf %319, %323 : vector<68x128xf32>
    %325 = arith.mulf %324, %324 : vector<68x128xf32>
    %326 = arith.mulf %324, %325 : vector<68x128xf32>
    %cst_136 = arith.constant 4.471500e-02 : f32
    %327 = vector.broadcast %cst_136 : f32 to vector<68x128xf32>
    %328 = arith.mulf %327, %326 : vector<68x128xf32>
    %329 = arith.addf %324, %328 : vector<68x128xf32>
    %cst_137 = arith.constant 0.797884583 : f32
    %330 = vector.broadcast %cst_137 : f32 to vector<68x128xf32>
    %331 = arith.mulf %330, %329 : vector<68x128xf32>
    %332 = math.tanh %331 : vector<68x128xf32>
    %cst_138 = arith.constant 1.000000e+00 : f32
    %333 = vector.broadcast %cst_138 : f32 to vector<68x128xf32>
    %334 = arith.addf %333, %332 : vector<68x128xf32>
    %cst_139 = arith.constant 5.000000e-01 : f32
    %335 = vector.broadcast %cst_139 : f32 to vector<68x128xf32>
    %336 = arith.mulf %335, %334 : vector<68x128xf32>
    %337 = arith.mulf %324, %336 : vector<68x128xf32>
    %c1_140 = arith.constant 1 : index
    %c0_141 = arith.constant 0 : index
    %c0_142 = arith.constant 0 : index
    %338 = vector.load %arg25[%c1_140, %c0_141, %c0_142] : memref<2x128x32xf32, #tpu.memory_space<vmem>>, vector<1x128x32xf32>
    %339 = vector.shape_cast %338 : vector<1x128x32xf32> to vector<128x32xf32>
    %cst_143 = arith.constant dense<0.000000e+00> : vector<68x32xf32>
    %340 = tpu.matmul %337, %339, %cst_143 {dimension_numbers = #tpu.dot_dimension_numbers<[1], [0], [0], [1], [0, 0, 1, 1], [], []>} : vector<68x128xf32>, vector<128x32xf32>, vector<68x32xf32> -> vector<68x32xf32>
    %341 = arith.addf %284, %340 : vector<68x32xf32>
    %c1_144 = arith.constant 1 : index
    %c0_145 = arith.constant 0 : index
    %342 = vector.load %arg26[%c1_144, %c0_145] : memref<2x32xf32, #tpu.memory_space<vmem>>, vector<1x32xf32>
    %343 = vector.shape_cast %342 : vector<1x32xf32> to vector<32xf32>
    %344 = vector.shape_cast %343 : vector<32xf32> to vector<1x32xf32>
    %345 = vector.broadcast %344 : vector<1x32xf32> to vector<68x32xf32>
    %346 = arith.addf %341, %345 : vector<68x32xf32>
    %347 = vector.extract_strided_slice %346 {offsets = [0, 0], sizes = [64, 32], strides = [1, 1]} : vector<68x32xf32> to vector<64x32xf32>
    %c0_146 = arith.constant 0 : index
    %c0_147 = arith.constant 0 : index
    %348 = vector.load %arg27[%c0_146, %c0_147] : memref<1x32xf32, #tpu.memory_space<vmem>>, vector<1x32xf32>
    %349 = vector.shape_cast %348 : vector<1x32xf32> to vector<32xf32>
    %c0_148 = arith.constant 0 : index
    %c0_149 = arith.constant 0 : index
    %350 = vector.load %arg28[%c0_148, %c0_149] : memref<1x32xf32, #tpu.memory_space<vmem>>, vector<1x32xf32>
    %351 = vector.shape_cast %350 : vector<1x32xf32> to vector<32xf32>
    %cst_150 = arith.constant dense<0.000000e+00> : vector<64xf32>
    %352 = vector.multi_reduction <add>, %347, %cst_150 [1] : vector<64x32xf32> to vector<64xf32>
    %353 = vector.shape_cast %352 : vector<64xf32> to vector<64x1xf32>
    %cst_151 = arith.constant 3.200000e+01 : f32
    %354 = vector.broadcast %cst_151 : f32 to vector<64x1xf32>
    %355 = arith.divf %353, %354 : vector<64x1xf32>
    %356 = vector.broadcast %355 : vector<64x1xf32> to vector<64x32xf32>
    %357 = arith.subf %347, %356 : vector<64x32xf32>
    %358 = arith.mulf %357, %357 : vector<64x32xf32>
    %cst_152 = arith.constant dense<0.000000e+00> : vector<64xf32>
    %359 = vector.multi_reduction <add>, %358, %cst_152 [1] : vector<64x32xf32> to vector<64xf32>
    %360 = vector.shape_cast %359 : vector<64xf32> to vector<64x1xf32>
    %cst_153 = arith.constant 3.200000e+01 : f32
    %361 = vector.broadcast %cst_153 : f32 to vector<64x1xf32>
    %362 = arith.divf %360, %361 : vector<64x1xf32>
    %363 = vector.broadcast %355 : vector<64x1xf32> to vector<64x32xf32>
    %364 = arith.subf %347, %363 : vector<64x32xf32>
    %cst_154 = arith.constant 9.99999996E-13 : f32
    %365 = vector.broadcast %cst_154 : f32 to vector<64x1xf32>
    %366 = arith.addf %362, %365 : vector<64x1xf32>
    %367 = math.rsqrt %366 : vector<64x1xf32>
    %368 = vector.broadcast %367 : vector<64x1xf32> to vector<64x32xf32>
    %369 = arith.mulf %364, %368 : vector<64x32xf32>
    %370 = vector.shape_cast %349 : vector<32xf32> to vector<1x32xf32>
    %371 = vector.broadcast %370 : vector<1x32xf32> to vector<64x32xf32>
    %372 = arith.mulf %369, %371 : vector<64x32xf32>
    %373 = vector.shape_cast %351 : vector<32xf32> to vector<1x32xf32>
    %374 = vector.broadcast %373 : vector<1x32xf32> to vector<64x32xf32>
    %375 = arith.addf %372, %374 : vector<64x32xf32>
    %c0_155 = arith.constant 0 : index
    %c0_156 = arith.constant 0 : index
    %376 = vector.load %arg29[%c0_155, %c0_156] : memref<64x32xf32, #tpu.memory_space<vmem>>, vector<64x32xf32>
    tpu.vector_store %arg29[%c0_155, %c0_156], %375 {strides = array<i32>} : memref<64x32xf32, #tpu.memory_space<vmem>>, vector<64x32xf32>,
    return
  }
}

</mosaic_0001>

<llo_original>
// kernel: tpu_custom_call.1
$region0: #{tpu_custom_call.1}
  #allocation0 [shape = 'u32[]', space=smem, size = 0x4, offset = 0x4, fixed_abs, tag = 'smem constant byte address 0x4 - core index']
  #allocation1 [shape = 'u32[144,128]{1,0:T(1,128)}', space=vmem, size = 0x12000, scoped, tag = 'internal scratch']
  %s0 = inlined_call_operand.smem [shape: u32[30], index: -1, kind: input, shape index: {}]
  %s1 = sld [smem:[%s0]]
  %s2 = scalar_lea.smem %s0, 1
  %s3 = sld [smem:[%s2]]
  %s4 = scalar_lea.smem %s0, 2
  %s5 = sld [smem:[%s4]]
  %s6 = scalar_lea.smem %s0, 3
  %s7 = sld [smem:[%s6]]
  %s8 = scalar_lea.smem %s0, 4
  %s9 = sld [smem:[%s8]]
  %s10 = scalar_lea.smem %s0, 5
  %s11 = sld [smem:[%s10]]
  %s12 = scalar_lea.smem %s0, 6
  %s13 = sld [smem:[%s12]]
  %s14 = scalar_lea.smem %s0, 7
  %s15 = sld [smem:[%s14]]
  %s16 = scalar_lea.smem %s0, 8
  %s17 = sld [smem:[%s16]]
  %s18 = scalar_lea.smem %s0, 9
  %s19 = sld [smem:[%s18]]
  %s20 = scalar_lea.smem %s0, 10
  %s21 = sld [smem:[%s20]]
  %s22 = scalar_lea.smem %s0, 11
  %s23 = sld [smem:[%s22]]
  %s24 = scalar_lea.smem %s0, 12
  %s25 = sld [smem:[%s24]]
  %s26 = scalar_lea.smem %s0, 13
  %s27 = sld [smem:[%s26]]
  %s28 = scalar_lea.smem %s0, 14
  %s29 = sld [smem:[%s28]]
  %s30 = scalar_lea.smem %s0, 15
  %s31 = sld [smem:[%s30]]
  %s32 = scalar_lea.smem %s0, 16
  %s33 = sld [smem:[%s32]]
  %s34 = scalar_lea.smem %s0, 17
  %s35 = sld [smem:[%s34]]
  %s36 = scalar_lea.smem %s0, 18
  %s37 = sld [smem:[%s36]]
  %s38 = scalar_lea.smem %s0, 19
  %s39 = sld [smem:[%s38]]
  %s40 = scalar_lea.smem %s0, 20
  %s41 = sld [smem:[%s40]]
  %s42 = scalar_lea.smem %s0, 21
  %s43 = sld [smem:[%s42]]
  %s44 = scalar_lea.smem %s0, 22
  %s45 = sld [smem:[%s44]]
  %s46 = scalar_lea.smem %s0, 23
  %s47 = sld [smem:[%s46]]
  %s48 = scalar_lea.smem %s0, 24
  %s49 = sld [smem:[%s48]]
  %s50 = scalar_lea.smem %s0, 25
  %s51 = sld [smem:[%s50]]
  %s52 = scalar_lea.smem %s0, 26
  %s53 = sld [smem:[%s52]]
  %s54 = scalar_lea.smem %s0, 27
  %s55 = sld [smem:[%s54]]
  %s56 = scalar_lea.smem %s0, 28
  %s57 = sld [smem:[%s56]]
  %s58 = scalar_lea.smem %s0, 29
  %s59 = sld [smem:[%s58]]
  %s60 = sld [smem:[#allocation0]]
  $region126: #{tpu_custom_call.1} parent=0
    _
  %s62 = ssub.s32 1, %s60
  %s63 = scalar_select 0, %s62, %s60
  // Predicated region
  $region2: #{tpu_custom_call.1} parent=0 // pred_check
    _
  $region3: #{tpu_custom_call.1} parent=0 // pred_check_branch
    %65 = sbr.rel (0) target = $region5
  $region4: #{tpu_custom_call.1} parent=0 // pred_region
    _
  $region5: #{tpu_custom_call.1} parent=0 // pred_fallthru
    _
  // Predicated region
  $region6: #{tpu_custom_call.1} parent=0 // pred_check
    _
  $region7: #{tpu_custom_call.1} parent=0 // pred_check_branch
    %67 = sbr.rel (0) target = $region9
  $region8: #{tpu_custom_call.1} parent=0 // pred_region
    _
  $region9: #{tpu_custom_call.1} parent=0 // pred_fallthru
    _
  // Predicated region
  $region10: #{tpu_custom_call.1} parent=0 // pred_check
    _
  $region11: #{tpu_custom_call.1} parent=0 // pred_check_branch
    %69 = sbr.rel (0) target = $region13
  $region12: #{tpu_custom_call.1} parent=0 // pred_region
    _
  $region13: #{tpu_custom_call.1} parent=0 // pred_fallthru
    _
  // Predicated region
  $region14: #{tpu_custom_call.1} parent=0 // pred_check
    _
  $region15: #{tpu_custom_call.1} parent=0 // pred_check_branch
    %71 = sbr.rel (0) target = $region17
  $region16: #{tpu_custom_call.1} parent=0 // pred_region
    _
  $region17: #{tpu_custom_call.1} parent=0 // pred_fallthru
    _
  // Predicated region
  $region18: #{tpu_custom_call.1} parent=0 // pred_check
    _
  $region19: #{tpu_custom_call.1} parent=0 // pred_check_branch
    %73 = sbr.rel (0) target = $region21
  $region20: #{tpu_custom_call.1} parent=0 // pred_region
    _
  $region21: #{tpu_custom_call.1} parent=0 // pred_fallthru
    _
  // Predicated region
  $region22: #{tpu_custom_call.1} parent=0 // pred_check
    _
  $region23: #{tpu_custom_call.1} parent=0 // pred_check_branch
    %75 = sbr.rel (0) target = $region25
  $region24: #{tpu_custom_call.1} parent=0 // pred_region
    _
  $region25: #{tpu_custom_call.1} parent=0 // pred_fallthru
    _
  // Predicated region
  $region26: #{tpu_custom_call.1} parent=0 // pred_check
    _
  $region27: #{tpu_custom_call.1} parent=0 // pred_check_branch
    %77 = sbr.rel (0) target = $region29
  $region28: #{tpu_custom_call.1} parent=0 // pred_region
    _
  $region29: #{tpu_custom_call.1} parent=0 // pred_fallthru
    _
  // Predicated region
  $region30: #{tpu_custom_call.1} parent=0 // pred_check
    _
  $region31: #{tpu_custom_call.1} parent=0 // pred_check_branch
    %79 = sbr.rel (0) target = $region33
  $region32: #{tpu_custom_call.1} parent=0 // pred_region
    _
  $region33: #{tpu_custom_call.1} parent=0 // pred_fallthru
    _
  // Predicated region
  $region34: #{tpu_custom_call.1} parent=0 // pred_check
    _
  $region35: #{tpu_custom_call.1} parent=0 // pred_check_branch
    %81 = sbr.rel (0) target = $region37
  $region36: #{tpu_custom_call.1} parent=0 // pred_region
    _
  $region37: #{tpu_custom_call.1} parent=0 // pred_fallthru
    _
  // Predicated region
  $region38: #{tpu_custom_call.1} parent=0 // pred_check
    _
  $region39: #{tpu_custom_call.1} parent=0 // pred_check_branch
    %83 = sbr.rel (0) target = $region41
  $region40: #{tpu_custom_call.1} parent=0 // pred_region
    _
  $region41: #{tpu_custom_call.1} parent=0 // pred_fallthru
    _
  // Predicated region
  $region42: #{tpu_custom_call.1} parent=0 // pred_check
    _
  $region43: #{tpu_custom_call.1} parent=0 // pred_check_branch
    %85 = sbr.rel (0) target = $region45
  $region44: #{tpu_custom_call.1} parent=0 // pred_region
    _
  $region45: #{tpu_custom_call.1} parent=0 // pred_fallthru
    _
  // Predicated region
  $region46: #{tpu_custom_call.1} parent=0 // pred_check
    _
  $region47: #{tpu_custom_call.1} parent=0 // pred_check_branch
    %87 = sbr.rel (0) target = $region49
  $region48: #{tpu_custom_call.1} parent=0 // pred_region
    _
  $region49: #{tpu_custom_call.1} parent=0 // pred_fallthru
    _
  // Predicated region
  $region50: #{tpu_custom_call.1} parent=0 // pred_check
    _
  $region51: #{tpu_custom_call.1} parent=0 // pred_check_branch
    %89 = sbr.rel (0) target = $region53
  $region52: #{tpu_custom_call.1} parent=0 // pred_region
    _
  $region53: #{tpu_custom_call.1} parent=0 // pred_fallthru
    _
  // Predicated region
  $region54: #{tpu_custom_call.1} parent=0 // pred_check
    _
  $region55: #{tpu_custom_call.1} parent=0 // pred_check_branch
    %91 = sbr.rel (0) target = $region57
  $region56: #{tpu_custom_call.1} parent=0 // pred_region
    _
  $region57: #{tpu_custom_call.1} parent=0 // pred_fallthru
    _
  // Predicated region
  $region58: #{tpu_custom_call.1} parent=0 // pred_check
    _
  $region59: #{tpu_custom_call.1} parent=0 // pred_check_branch
    %93 = sbr.rel (0) target = $region61
  $region60: #{tpu_custom_call.1} parent=0 // pred_region
    _
  $region61: #{tpu_custom_call.1} parent=0 // pred_fallthru
    _
  // Predicated region
  $region62: #{tpu_custom_call.1} parent=0 // pred_check
    _
  $region63: #{tpu_custom_call.1} parent=0 // pred_check_branch
    %95 = sbr.rel (0) target = $region65
  $region64: #{tpu_custom_call.1} parent=0 // pred_region
    _
  $region65: #{tpu_custom_call.1} parent=0 // pred_fallthru
    _
  // Predicated region
  $region66: #{tpu_custom_call.1} parent=0 // pred_check
    _
  $region67: #{tpu_custom_call.1} parent=0 // pred_check_branch
    %97 = sbr.rel (0) target = $region69
  $region68: #{tpu_custom_call.1} parent=0 // pred_region
    _
  $region69: #{tpu_custom_call.1} parent=0 // pred_fallthru
    _
  // Predicated region
  $region70: #{tpu_custom_call.1} parent=0 // pred_check
    _
  $region71: #{tpu_custom_call.1} parent=0 // pred_check_branch
    %99 = sbr.rel (0) target = $region73
  $region72: #{tpu_custom_call.1} parent=0 // pred_region
    _
  $region73: #{tpu_custom_call.1} parent=0 // pred_fallthru
    _
  // Predicated region
  $region74: #{tpu_custom_call.1} parent=0 // pred_check
    _
  $region75: #{tpu_custom_call.1} parent=0 // pred_check_branch
    %101 = sbr.rel (0) target = $region77
  $region76: #{tpu_custom_call.1} parent=0 // pred_region
    _
  $region77: #{tpu_custom_call.1} parent=0 // pred_fallthru
    _
  // Predicated region
  $region78: #{tpu_custom_call.1} parent=0 // pred_check
    _
  $region79: #{tpu_custom_call.1} parent=0 // pred_check_branch
    %103 = sbr.rel (0) target = $region81
  $region80: #{tpu_custom_call.1} parent=0 // pred_region
    _
  $region81: #{tpu_custom_call.1} parent=0 // pred_fallthru
    _
  // Predicated region
  $region82: #{tpu_custom_call.1} parent=0 // pred_check
    _
  $region83: #{tpu_custom_call.1} parent=0 // pred_check_branch
    %105 = sbr.rel (0) target = $region85
  $region84: #{tpu_custom_call.1} parent=0 // pred_region
    _
  $region85: #{tpu_custom_call.1} parent=0 // pred_fallthru
    _
  // Predicated region
  $region86: #{tpu_custom_call.1} parent=0 // pred_check
    _
  $region87: #{tpu_custom_call.1} parent=0 // pred_check_branch
    %107 = sbr.rel (0) target = $region89
  $region88: #{tpu_custom_call.1} parent=0 // pred_region
    _
  $region89: #{tpu_custom_call.1} parent=0 // pred_fallthru
    _
  // Predicated region
  $region90: #{tpu_custom_call.1} parent=0 // pred_check
    _
  $region91: #{tpu_custom_call.1} parent=0 // pred_check_branch
    %109 = sbr.rel (0) target = $region93
  $region92: #{tpu_custom_call.1} parent=0 // pred_region
    _
  $region93: #{tpu_custom_call.1} parent=0 // pred_fallthru
    _
  // Predicated region
  $region94: #{tpu_custom_call.1} parent=0 // pred_check
    _
  $region95: #{tpu_custom_call.1} parent=0 // pred_check_branch
    %111 = sbr.rel (0) target = $region97
  $region96: #{tpu_custom_call.1} parent=0 // pred_region
    _
  $region97: #{tpu_custom_call.1} parent=0 // pred_fallthru
    _
  // Predicated region
  $region98: #{tpu_custom_call.1} parent=0 // pred_check
    _
  $region99: #{tpu_custom_call.1} parent=0 // pred_check_branch
    %113 = sbr.rel (0) target = $region101
  $region100: #{tpu_custom_call.1} parent=0 // pred_region
    _
  $region101: #{tpu_custom_call.1} parent=0 // pred_fallthru
    _
  // Predicated region
  $region102: #{tpu_custom_call.1} parent=0 // pred_check
    _
  $region103: #{tpu_custom_call.1} parent=0 // pred_check_branch
    %115 = sbr.rel (0) target = $region105
  $region104: #{tpu_custom_call.1} parent=0 // pred_region
    _
  $region105: #{tpu_custom_call.1} parent=0 // pred_fallthru
    _
  // Predicated region
  $region106: #{tpu_custom_call.1} parent=0 // pred_check
    _
  $region107: #{tpu_custom_call.1} parent=0 // pred_check_branch
    %117 = sbr.rel (0) target = $region109
  $region108: #{tpu_custom_call.1} parent=0 // pred_region
    _
  $region109: #{tpu_custom_call.1} parent=0 // pred_fallthru
    _
  // Predicated region
  $region110: #{tpu_custom_call.1} parent=0 // pred_check
    _
  $region111: #{tpu_custom_call.1} parent=0 // pred_check_branch
    %119 = sbr.rel (0) target = $region113
  $region112: #{tpu_custom_call.1} parent=0 // pred_region
    _
  $region113: #{tpu_custom_call.1} parent=0 // pred_fallthru
    _
  // Predicated region
  $region114: #{tpu_custom_call.1} parent=0 // pred_check
    _
  $region115: #{tpu_custom_call.1} parent=0 // pred_check_branch
    %121 = sbr.rel (0) target = $region117
  $region116: #{tpu_custom_call.1} parent=0 // pred_region
    _
  $region117: #{tpu_custom_call.1} parent=0 // pred_fallthru
    _
  %v122 = vld [vmem:[%s1] sm:$0xf]
  %v123 = vld [vmem:[%s5] sm:$0xf]
  %v124 = vld [vmem:[%s7] sm:$0x1]
  %v126 = vlaneseq
  %v127 = vshrl.u32 %v126, 7
  %v128 = vsub.s32 0, %v127
  %v129 = vrot.slane %v124, %v128
  %vm131 = vcmask 31744
  %v133 = vsel %vm131, %v122, 0
  %vm135 = vcmask 1043456
  %v137 = vsel %vm135, %v123, 0
  %139 = vmatprep.subr.mxu0 0.0
  %140 = vmatpush1.msra.mxu0 0.0
  %141 = vmatprep.subr.mxu0 0.0
  %142 = vmatpush1.msra.mxu0 0.0
  %143 = vmatprep.subr.mxu0 0.0
  %144 = vmatpush1.msra.mxu0 0.0
  %145 = vmatprep.subr.mxu0 0.0
  %146 = vmatpush1.msra.mxu0 0.0
  %147 = vmatprep.subr.mxu0 0.0
  %148 = vmatpush1.msra.mxu0 0.0
  %149 = vmatprep.subr.mxu0 0.0
  %150 = vmatpush1.msra.mxu0 0.0
  %151 = vmatprep.subr.mxu0 0.0
  %152 = vmatpush1.msra.mxu0 0.0
  %153 = vmatprep.subr.mxu0 0.0
  %154 = vmatpush1.msra.mxu0 0.0
  %155 = vmatprep.subr.mxu0 0.0
  %156 = vmatpush1.msra.mxu0 0.0
  %157 = vmatprep.subr.mxu0 0.0
  %158 = vmatpush1.msra.mxu0 0.0
  %159 = vmatprep.subr.mxu0 0.0
  %160 = vmatpush1.msra.mxu0 0.0
  %161 = vmatprep.subr.mxu0 0.0
  %162 = vmatpush1.msra.mxu0 0.0
  %163 = vmatprep.subr.mxu0 0.0
  %164 = vmatpush1.msra.mxu0 0.0
  %165 = vmatprep.subr.mxu0 0.0
  %166 = vmatpush1.msra.mxu0 0.0
  %167 = vmatprep.subr.mxu0 0.0
  %168 = vmatpush1.msra.mxu0 0.0
  %169 = vmatprep.subr.mxu0 0.0
  %170 = vmatpush1.msra.mxu0 %v137
  %171 = vmatprep.subr.mxu0 0.0
  %172 = vmatpush2.msra.mxu0 0.0
  %173 = vmatprep.subr.mxu0 0.0
  %174 = vmatpush2.msra.mxu0 0.0
  %175 = vmatprep.subr.mxu0 0.0
  %176 = vmatpush2.msra.mxu0 0.0
  %177 = vmatprep.subr.mxu0 0.0
  %178 = vmatpush2.msra.mxu0 0.0
  %179 = vmatprep.subr.mxu0 0.0
  %180 = vmatpush2.msra.mxu0 0.0
  %181 = vmatprep.subr.mxu0 0.0
  %182 = vmatpush2.msra.mxu0 0.0
  %183 = vmatprep.subr.mxu0 0.0
  %184 = vmatpush2.msra.mxu0 0.0
  %185 = vmatprep.subr.mxu0 0.0
  %186 = vmatpush2.msra.mxu0 0.0
  %187 = vmatprep.subr.mxu0 0.0
  %188 = vmatpush2.msra.mxu0 0.0
  %189 = vmatprep.subr.mxu0 0.0
  %190 = vmatpush2.msra.mxu0 0.0
  %191 = vmatprep.subr.mxu0 0.0
  %192 = vmatpush2.msra.mxu0 0.0
  %193 = vmatprep.subr.mxu0 0.0
  %194 = vmatpush2.msra.mxu0 0.0
  %195 = vmatprep.subr.mxu0 0.0
  %196 = vmatpush2.msra.mxu0 0.0
  %197 = vmatprep.subr.mxu0 0.0
  %198 = vmatpush2.msra.mxu0 0.0
  %199 = vmatprep.subr.mxu0 0.0
  %200 = vmatpush2.msra.mxu0 0.0
  %201 = vmatprep.subr.mxu0 0.0
  %202 = vmatpush2.msra.mxu0 0.0
  %203 = vmatprep.mubr.f32.mxu0 0.0
  %204 = vmatmul.mubr.f32.gmra.mxu0 %v133
  %v205 = vpop.f32.mrf.mxu0
  %v206 = vadd.f32 %v129, %v205
  %v207 = vpop.f32.mrf.mxu0
  %208 = vdwg.mxu0
  %v209 = vxor.u32 %v206, 2147483648
  %v210 = vmul.f32 %v209, 1.442695
  %v211 = vpow.pop %v210
  %v212 = vadd.f32 %v211, 1.0
  %v213 = vrcp.pop %v212
  %v214 = vmul.f32 1.0, %v213
  %v215 = vmul.f32 %v206, %v214
  %v216 = vld [vmem:[%s9] sm:$0xff]
  %v217 = vld [vmem:[%s9 + $0x8] sm:$0xff]
  %v218 = vld [vmem:[%s9 + $0x10] sm:$0xff]
  %v219 = vld [vmem:[%s9 + $0x18] sm:$0xff]
  %v220 = vld [vmem:[%s11] sm:$0x1]
  %v222 = vlaneseq
  %v223 = vshrl.u32 %v222, 7
  %v224 = vsub.s32 0, %v223
  %v225 = vrot.slane %v220, %v224
  %vm227 = vcmask 261120
  %v229 = vsel %vm227, %v215, 0
  %231 = vmatprep.subr.mxu0 0.0
  %232 = vmatpush1.msra.mxu0 0.0
  %233 = vmatprep.subr.mxu0 0.0
  %234 = vmatpush1.msra.mxu0 0.0
  %235 = vmatprep.subr.mxu0 0.0
  %236 = vmatpush1.msra.mxu0 0.0
  %237 = vmatprep.subr.mxu0 0.0
  %238 = vmatpush1.msra.mxu0 0.0
  %239 = vmatprep.subr.mxu0 0.0
  %240 = vmatpush1.msra.mxu0 0.0
  %241 = vmatprep.subr.mxu0 0.0
  %242 = vmatpush1.msra.mxu0 0.0
  %243 = vmatprep.subr.mxu0 0.0
  %244 = vmatpush1.msra.mxu0 0.0
  %245 = vmatprep.subr.mxu0 0.0
  %246 = vmatpush1.msra.mxu0 0.0
  %247 = vmatprep.subr.mxu0 0.0
  %248 = vmatpush1.msra.mxu0 0.0
  %249 = vmatprep.subr.mxu0 0.0
  %250 = vmatpush1.msra.mxu0 0.0
  %251 = vmatprep.subr.mxu0 0.0
  %252 = vmatpush1.msra.mxu0 0.0
  %253 = vmatprep.subr.mxu0 0.0
  %254 = vmatpush1.msra.mxu0 0.0
  %255 = vmatprep.subr.mxu0 0.0
  %256 = vmatpush1.msra.mxu0 %v219
  %257 = vmatprep.subr.mxu0 0.0
  %258 = vmatpush1.msra.mxu0 %v218
  %259 = vmatprep.subr.mxu0 0.0
  %260 = vmatpush1.msra.mxu0 %v217
  %261 = vmatprep.subr.mxu0 0.0
  %262 = vmatpush1.msra.mxu0 %v216
  %263 = vmatprep.subr.mxu0 0.0
  %264 = vmatpush2.msra.mxu0 0.0
  %265 = vmatprep.subr.mxu0 0.0
  %266 = vmatpush2.msra.mxu0 0.0
  %267 = vmatprep.subr.mxu0 0.0
  %268 = vmatpush2.msra.mxu0 0.0
  %269 = vmatprep.subr.mxu0 0.0
  %270 = vmatpush2.msra.mxu0 0.0
  %271 = vmatprep.subr.mxu0 0.0
  %272 = vmatpush2.msra.mxu0 0.0
  %273 = vmatprep.subr.mxu0 0.0
  %274 = vmatpush2.msra.mxu0 0.0
  %275 = vmatprep.subr.mxu0 0.0
  %276 = vmatpush2.msra.mxu0 0.0
  %277 = vmatprep.subr.mxu0 0.0
  %278 = vmatpush2.msra.mxu0 0.0
  %279 = vmatprep.subr.mxu0 0.0
  %280 = vmatpush2.msra.mxu0 0.0
  %281 = vmatprep.subr.mxu0 0.0
  %282 = vmatpush2.msra.mxu0 0.0
  %283 = vmatprep.subr.mxu0 0.0
  %284 = vmatpush2.msra.mxu0 0.0
  %285 = vmatprep.subr.mxu0 0.0
  %286 = vmatpush2.msra.mxu0 0.0
  %287 = vmatprep.subr.mxu0 0.0
  %288 = vmatpush2.msra.mxu0 0.0
  %289 = vmatprep.subr.mxu0 0.0
  %290 = vmatpush2.msra.mxu0 0.0
  %291 = vmatprep.subr.mxu0 0.0
  %292 = vmatpush2.msra.mxu0 0.0
  %293 = vmatprep.subr.mxu0 0.0
  %294 = vmatpush2.msra.mxu0 0.0
  %295 = vmatprep.mubr.f32.mxu0 0.0
  %296 = vmatmul.mubr.f32.gmra.mxu0 %v229
  %v297 = vpop.f32.mrf.mxu0
  %v298 = vadd.f32 %v225, %v297
  %v299 = vpop.f32.mrf.mxu0
  %300 = vdwg.mxu0
  %v301 = vld [vmem:[%s3] sm:$0xf]
  %v302 = vadd.f32 %v298, %v301
  %v303 = vxor.u32 %v302, 2147483648
  %v304 = vmul.f32 %v303, 1.442695
  %v305 = vpow.pop %v304
  %v306 = vadd.f32 %v305, 1.0
  %v307 = vrcp.pop %v306
  %v308 = vmul.f32 1.0, %v307
  %v309 = vmul.f32 %v302, %v308
  %v310 = vld [vmem:[%s13] sm:$0xff]
  %v311 = vld [vmem:[%s13 + $0x8] sm:$0xff]
  %v312 = vld [vmem:[%s13 + $0x10] sm:$0xff]
  %v313 = vld [vmem:[%s13 + $0x18] sm:$0xff]
  %v314 = vld [vmem:[%s13 + $0x20] sm:$0xff]
  %v315 = vld [vmem:[%s13 + $0x28] sm:$0xff]
  %v316 = vld [vmem:[%s13 + $0x30] sm:$0xff]
  %v317 = vld [vmem:[%s13 + $0x38] sm:$0xff]
  %v318 = vld [vmem:[%s15] sm:$0x3]
  %v320 = vlaneseq
  %v321 = vshrl.u32 %v320, 7
  %v322 = vsub.s32 0, %v321
  %v323 = vrot.slane %v318, %v322
  %v324 = vlaneseq
  %v325 = vshrl.u32 %v324, 7
  %v326 = vsub.s32 1, %v325
  %v327 = vrot.slane %v318, %v326
  %v331 = vsel %vm227, %v309, 0
  %333 = vmatprep.subr.mxu0 0.0
  %334 = vmatpush1.msra.mxu0 0.0
  %335 = vmatprep.subr.mxu0 0.0
  %336 = vmatpush1.msra.mxu0 0.0
  %337 = vmatprep.subr.mxu0 0.0
  %338 = vmatpush1.msra.mxu0 0.0
  %339 = vmatprep.subr.mxu0 0.0
  %340 = vmatpush1.msra.mxu0 0.0
  %341 = vmatprep.subr.mxu0 0.0
  %342 = vmatpush1.msra.mxu0 0.0
  %343 = vmatprep.subr.mxu0 0.0
  %344 = vmatpush1.msra.mxu0 0.0
  %345 = vmatprep.subr.mxu0 0.0
  %346 = vmatpush1.msra.mxu0 0.0
  %347 = vmatprep.subr.mxu0 0.0
  %348 = vmatpush1.msra.mxu0 0.0
  %349 = vmatprep.subr.mxu0 0.0
  %350 = vmatpush1.msra.mxu0 0.0
  %351 = vmatprep.subr.mxu0 0.0
  %352 = vmatpush1.msra.mxu0 0.0
  %353 = vmatprep.subr.mxu0 0.0
  %354 = vmatpush1.msra.mxu0 0.0
  %355 = vmatprep.subr.mxu0 0.0
  %356 = vmatpush1.msra.mxu0 0.0
  %357 = vmatprep.subr.mxu0 %v317
  %358 = vmatpush1.msra.mxu0 %v316
  %359 = vmatprep.subr.mxu0 %v315
  %360 = vmatpush1.msra.mxu0 %v314
  %361 = vmatprep.subr.mxu0 %v313
  %362 = vmatpush1.msra.mxu0 %v312
  %363 = vmatprep.subr.mxu0 %v311
  %364 = vmatpush1.msra.mxu0 %v310
  %365 = vmatprep.subr.mxu0 0.0
  %366 = vmatpush2.msra.mxu0 0.0
  %367 = vmatprep.subr.mxu0 0.0
  %368 = vmatpush2.msra.mxu0 0.0
  %369 = vmatprep.subr.mxu0 0.0
  %370 = vmatpush2.msra.mxu0 0.0
  %371 = vmatprep.subr.mxu0 0.0
  %372 = vmatpush2.msra.mxu0 0.0
  %373 = vmatprep.subr.mxu0 0.0
  %374 = vmatpush2.msra.mxu0 0.0
  %375 = vmatprep.subr.mxu0 0.0
  %376 = vmatpush2.msra.mxu0 0.0
  %377 = vmatprep.subr.mxu0 0.0
  %378 = vmatpush2.msra.mxu0 0.0
  %379 = vmatprep.subr.mxu0 0.0
  %380 = vmatpush2.msra.mxu0 0.0
  %381 = vmatprep.subr.mxu0 0.0
  %382 = vmatpush2.msra.mxu0 0.0
  %383 = vmatprep.subr.mxu0 0.0
  %384 = vmatpush2.msra.mxu0 0.0
  %385 = vmatprep.subr.mxu0 0.0
  %386 = vmatpush2.msra.mxu0 0.0
  %387 = vmatprep.subr.mxu0 0.0
  %388 = vmatpush2.msra.mxu0 0.0
  %389 = vmatprep.subr.mxu0 0.0
  %390 = vmatpush2.msra.mxu0 0.0
  %391 = vmatprep.subr.mxu0 0.0
  %392 = vmatpush2.msra.mxu0 0.0
  %393 = vmatprep.subr.mxu0 0.0
  %394 = vmatpush2.msra.mxu0 0.0
  %395 = vmatprep.subr.mxu0 0.0
  %396 = vmatpush2.msra.mxu0 0.0
  %397 = vmatprep.mubr.f32.mxu0 0.0
  %398 = vmatmul.mubr.f32.gmra.mxu0 %v331
  %v399 = vpop.f32.mrf.mxu0
  %v400 = vadd.f32 %v323, %v399
  %v401 = vpop.f32.mrf.mxu0
  %v402 = vadd.f32 %v327, %v401
  %403 = vdwg.mxu0
  %v404 = vld [vmem:[%s17] sm:$0xff]
  %v405 = vld [vmem:[%s17 + $0x8] sm:$0xff]
  %v406 = vld [vmem:[%s17 + $0x10] sm:$0xff]
  %v407 = vld [vmem:[%s17 + $0x18] sm:$0xff]
  %v408 = vld [vmem:[%s17 + $0x20] sm:$0xff]
  %v409 = vld [vmem:[%s17 + $0x28] sm:$0xff]
  %v410 = vld [vmem:[%s17 + $0x30] sm:$0xff]
  %v411 = vld [vmem:[%s17 + $0x38] sm:$0xff]
  %v412 = vld [vmem:[%s17 + $0x40] sm:$0xf]
  %v414 = vsel %vm131, %v404, 0
  %v417 = vsel %vm131, %v405, 0
  %v420 = vsel %vm131, %v406, 0
  %v423 = vsel %vm131, %v407, 0
  %v426 = vsel %vm131, %v408, 0
  %v429 = vsel %vm131, %v409, 0
  %v432 = vsel %vm131, %v410, 0
  %v435 = vsel %vm131, %v411, 0
  %v438 = vsel %vm131, %v412, 0
  %v441 = vsel %vm135, %v400, 0
  %v444 = vsel %vm135, %v402, 0
  %446 = vmatprep.subr.mxu0 0.0
  %447 = vmatpush1.msra.mxu0 0.0
  %448 = vmatprep.subr.mxu0 0.0
  %449 = vmatpush1.msra.mxu0 0.0
  %450 = vmatprep.subr.mxu0 0.0
  %451 = vmatpush1.msra.mxu0 0.0
  %452 = vmatprep.subr.mxu0 0.0
  %453 = vmatpush1.msra.mxu0 0.0
  %454 = vmatprep.subr.mxu0 0.0
  %455 = vmatpush1.msra.mxu0 0.0
  %456 = vmatprep.subr.mxu0 0.0
  %457 = vmatpush1.msra.mxu0 0.0
  %458 = vmatprep.subr.mxu0 0.0
  %459 = vmatpush1.msra.mxu0 0.0
  %460 = vmatprep.subr.mxu0 0.0
  %461 = vmatpush1.msra.mxu0 0.0
  %462 = vmatprep.subr.mxu0 0.0
  %463 = vmatpush1.msra.mxu0 0.0
  %464 = vmatprep.subr.mxu0 0.0
  %465 = vmatpush1.msra.mxu0 0.0
  %466 = vmatprep.subr.mxu0 0.0
  %467 = vmatpush1.msra.mxu0 0.0
  %468 = vmatprep.subr.mxu0 0.0
  %469 = vmatpush1.msra.mxu0 0.0
  %470 = vmatprep.subr.mxu0 0.0
  %471 = vmatpush1.msra.mxu0 0.0
  %472 = vmatprep.subr.mxu0 0.0
  %473 = vmatpush1.msra.mxu0 0.0
  %474 = vmatprep.subr.mxu0 0.0
  %475 = vmatpush1.msra.mxu0 0.0
  %476 = vmatprep.subr.mxu0 %v444
  %477 = vmatpush1.msra.mxu0 %v441
  %478 = vmatprep.subr.mxu0 0.0
  %479 = vmatpush2.msra.mxu0 0.0
  %480 = vmatprep.subr.mxu0 0.0
  %481 = vmatpush2.msra.mxu0 0.0
  %482 = vmatprep.subr.mxu0 0.0
  %483 = vmatpush2.msra.mxu0 0.0
  %484 = vmatprep.subr.mxu0 0.0
  %485 = vmatpush2.msra.mxu0 0.0
  %486 = vmatprep.subr.mxu0 0.0
  %487 = vmatpush2.msra.mxu0 0.0
  %488 = vmatprep.subr.mxu0 0.0
  %489 = vmatpush2.msra.mxu0 0.0
  %490 = vmatprep.subr.mxu0 0.0
  %491 = vmatpush2.msra.mxu0 0.0
  %492 = vmatprep.subr.mxu0 0.0
  %493 = vmatpush2.msra.mxu0 0.0
  %494 = vmatprep.subr.mxu0 0.0
  %495 = vmatpush2.msra.mxu0 0.0
  %496 = vmatprep.subr.mxu0 0.0
  %497 = vmatpush2.msra.mxu0 0.0
  %498 = vmatprep.subr.mxu0 0.0
  %499 = vmatpush2.msra.mxu0 0.0
  %500 = vmatprep.subr.mxu0 0.0
  %501 = vmatpush2.msra.mxu0 0.0
  %502 = vmatprep.subr.mxu0 0.0
  %503 = vmatpush2.msra.mxu0 0.0
  %504 = vmatprep.subr.mxu0 0.0
  %505 = vmatpush2.msra.mxu0 0.0
  %506 = vmatprep.subr.mxu0 0.0
  %507 = vmatpush2.msra.mxu0 0.0
  %508 = vmatprep.subr.mxu0 0.0
  %509 = vmatpush2.msra.mxu0 0.0
  %510 = vmatprep.mubr.f32.mxu0 0.0
  %511 = vmatmul.mubr.f32.gmra.mxu0 %v414
  %v512 = vpop.f32.mrf.mxu0
  %v513 = vadd.f32 0.0, %v512
  %v514 = vpop.f32.mrf.mxu0
  %v515 = vadd.f32 0.0, %v514
  %516 = vmatprep.mubr.f32.mxu0 0.0
  %517 = vmatmul.mubr.f32.gmra.mxu0 %v417
  %v518 = vpop.f32.mrf.mxu0
  %v519 = vadd.f32 0.0, %v518
  %v520 = vpop.f32.mrf.mxu0
  %v521 = vadd.f32 0.0, %v520
  %522 = vmatprep.mubr.f32.mxu0 0.0
  %523 = vmatmul.mubr.f32.gmra.mxu0 %v420
  %v524 = vpop.f32.mrf.mxu0
  %v525 = vadd.f32 0.0, %v524
  %v526 = vpop.f32.mrf.mxu0
  %v527 = vadd.f32 0.0, %v526
  %528 = vmatprep.mubr.f32.mxu0 0.0
  %529 = vmatmul.mubr.f32.gmra.mxu0 %v423
  %v530 = vpop.f32.mrf.mxu0
  %v531 = vadd.f32 0.0, %v530
  %v532 = vpop.f32.mrf.mxu0
  %v533 = vadd.f32 0.0, %v532
  %534 = vmatprep.mubr.f32.mxu0 0.0
  %535 = vmatmul.mubr.f32.gmra.mxu0 %v426
  %v536 = vpop.f32.mrf.mxu0
  %v537 = vadd.f32 0.0, %v536
  %v538 = vpop.f32.mrf.mxu0
  %v539 = vadd.f32 0.0, %v538
  %540 = vmatprep.mubr.f32.mxu0 0.0
  %541 = vmatmul.mubr.f32.gmra.mxu0 %v429
  %v542 = vpop.f32.mrf.mxu0
  %v543 = vadd.f32 0.0, %v542
  %v544 = vpop.f32.mrf.mxu0
  %v545 = vadd.f32 0.0, %v544
  %546 = vmatprep.mubr.f32.mxu0 0.0
  %547 = vmatmul.mubr.f32.gmra.mxu0 %v432
  %v548 = vpop.f32.mrf.mxu0
  %v549 = vadd.f32 0.0, %v548
  %v550 = vpop.f32.mrf.mxu0
  %v551 = vadd.f32 0.0, %v550
  %552 = vmatprep.mubr.f32.mxu0 0.0
  %553 = vmatmul.mubr.f32.gmra.mxu0 %v435
  %v554 = vpop.f32.mrf.mxu0
  %v555 = vadd.f32 0.0, %v554
  %v556 = vpop.f32.mrf.mxu0
  %v557 = vadd.f32 0.0, %v556
  %558 = vmatprep.mubr.f32.mxu0 0.0
  %559 = vmatmul.mubr.f32.gmra.mxu0 %v438
  %v560 = vpop.f32.mrf.mxu0
  %v561 = vadd.f32 0.0, %v560
  %v562 = vpop.f32.mrf.mxu0
  %v563 = vadd.f32 0.0, %v562
  %564 = vdwg.mxu0
  %v565 = vld [vmem:[%s19] sm:$0xff]
  %v566 = vld [vmem:[%s19 + $0x8] sm:$0xff]
  %v567 = vld [vmem:[%s19 + $0x10] sm:$0xff]
  %v568 = vld [vmem:[%s19 + $0x18] sm:$0xff]
  %v569 = vld [vmem:[%s19 + $0x20] sm:$0xff]
  %v570 = vld [vmem:[%s19 + $0x28] sm:$0xff]
  %v571 = vld [vmem:[%s19 + $0x30] sm:$0xff]
  %v572 = vld [vmem:[%s19 + $0x38] sm:$0xff]
  %v573 = vld [vmem:[%s21] sm:$0xff]
  %v574 = vld [vmem:[%s21 + $0x8] sm:$0xff]
  %v575 = vld [vmem:[%s21 + $0x10] sm:$0xff]
  %v576 = vld [vmem:[%s21 + $0x18] sm:$0xff]
  %v577 = vld [vmem:[%s21 + $0x20] sm:$0xff]
  %v578 = vld [vmem:[%s21 + $0x28] sm:$0xff]
  %v579 = vld [vmem:[%s23] sm:$0x1]
  %v581 = vlaneseq
  %v582 = vshrl.u32 %v581, 7
  %v583 = vsub.s32 0, %v582
  %v584 = vrot.slane %v579, %v583
  %vm586 = vcmask 392192
  %v588 = vsel %vm586, %v565, 0
  %v591 = vsel %vm586, %v566, 0
  %v594 = vsel %vm586, %v567, 0
  %v597 = vsel %vm586, %v568, 0
  %v600 = vsel %vm586, %v569, 0
  %v603 = vsel %vm586, %v570, 0
  %v606 = vsel %vm586, %v571, 0
  %v609 = vsel %vm586, %v572, 0
  %611 = vmatprep.subr.mxu0 0.0
  %612 = vmatpush1.msra.mxu0 0.0
  %613 = vmatprep.subr.mxu0 0.0
  %614 = vmatpush1.msra.mxu0 0.0
  %615 = vmatprep.subr.mxu0 0.0
  %616 = vmatpush1.msra.mxu0 0.0
  %617 = vmatprep.subr.mxu0 0.0
  %618 = vmatpush1.msra.mxu0 0.0
  %619 = vmatprep.subr.mxu0 0.0
  %620 = vmatpush1.msra.mxu0 0.0
  %621 = vmatprep.subr.mxu0 0.0
  %622 = vmatpush1.msra.mxu0 0.0
  %623 = vmatprep.subr.mxu0 0.0
  %624 = vmatpush1.msra.mxu0 0.0
  %625 = vmatprep.subr.mxu0 0.0
  %626 = vmatpush1.msra.mxu0 0.0
  %627 = vmatprep.subr.mxu0 0.0
  %628 = vmatpush1.msra.mxu0 0.0
  %629 = vmatprep.subr.mxu0 0.0
  %630 = vmatpush1.msra.mxu0 0.0
  %631 = vmatprep.subr.mxu0 0.0
  %632 = vmatpush1.msra.mxu0 %v578
  %633 = vmatprep.subr.mxu0 0.0
  %634 = vmatpush1.msra.mxu0 %v577
  %635 = vmatprep.subr.mxu0 0.0
  %636 = vmatpush1.msra.mxu0 %v576
  %637 = vmatprep.subr.mxu0 0.0
  %638 = vmatpush1.msra.mxu0 %v575
  %639 = vmatprep.subr.mxu0 0.0
  %640 = vmatpush1.msra.mxu0 %v574
  %641 = vmatprep.subr.mxu0 0.0
  %642 = vmatpush1.msra.mxu0 %v573
  %643 = vmatprep.subr.mxu0 0.0
  %644 = vmatpush2.msra.mxu0 0.0
  %645 = vmatprep.subr.mxu0 0.0
  %646 = vmatpush2.msra.mxu0 0.0
  %647 = vmatprep.subr.mxu0 0.0
  %648 = vmatpush2.msra.mxu0 0.0
  %649 = vmatprep.subr.mxu0 0.0
  %650 = vmatpush2.msra.mxu0 0.0
  %651 = vmatprep.subr.mxu0 0.0
  %652 = vmatpush2.msra.mxu0 0.0
  %653 = vmatprep.subr.mxu0 0.0
  %654 = vmatpush2.msra.mxu0 0.0
  %655 = vmatprep.subr.mxu0 0.0
  %656 = vmatpush2.msra.mxu0 0.0
  %657 = vmatprep.subr.mxu0 0.0
  %658 = vmatpush2.msra.mxu0 0.0
  %659 = vmatprep.subr.mxu0 0.0
  %660 = vmatpush2.msra.mxu0 0.0
  %661 = vmatprep.subr.mxu0 0.0
  %662 = vmatpush2.msra.mxu0 0.0
  %663 = vmatprep.subr.mxu0 0.0
  %664 = vmatpush2.msra.mxu0 0.0
  %665 = vmatprep.subr.mxu0 0.0
  %666 = vmatpush2.msra.mxu0 0.0
  %667 = vmatprep.subr.mxu0 0.0
  %668 = vmatpush2.msra.mxu0 0.0
  %669 = vmatprep.subr.mxu0 0.0
  %670 = vmatpush2.msra.mxu0 0.0
  %671 = vmatprep.subr.mxu0 0.0
  %672 = vmatpush2.msra.mxu0 0.0
  %673 = vmatprep.subr.mxu0 0.0
  %674 = vmatpush2.msra.mxu0 0.0
  %675 = vmatprep.mubr.f32.mxu0 0.0
  %676 = vmatmul.mubr.f32.gmra.mxu0 %v588
  %v677 = vpop.f32.mrf.mxu0
  %v678 = vadd.f32 %v584, %v677
  %v679 = vpop.f32.mrf.mxu0
  %680 = vmatprep.mubr.f32.mxu0 0.0
  %681 = vmatmul.mubr.f32.gmra.mxu0 %v591
  %v682 = vpop.f32.mrf.mxu0
  %v683 = vadd.f32 %v584, %v682
  %v684 = vpop.f32.mrf.mxu0
  %685 = vmatprep.mubr.f32.mxu0 0.0
  %686 = vmatmul.mubr.f32.gmra.mxu0 %v594
  %v687 = vpop.f32.mrf.mxu0
  %v688 = vadd.f32 %v584, %v687
  %v689 = vpop.f32.mrf.mxu0
  %690 = vmatprep.mubr.f32.mxu0 0.0
  %691 = vmatmul.mubr.f32.gmra.mxu0 %v597
  %v692 = vpop.f32.mrf.mxu0
  %v693 = vadd.f32 %v584, %v692
  %v694 = vpop.f32.mrf.mxu0
  %695 = vmatprep.mubr.f32.mxu0 0.0
  %696 = vmatmul.mubr.f32.gmra.mxu0 %v600
  %v697 = vpop.f32.mrf.mxu0
  %v698 = vadd.f32 %v584, %v697
  %v699 = vpop.f32.mrf.mxu0
  %700 = vmatprep.mubr.f32.mxu0 0.0
  %701 = vmatmul.mubr.f32.gmra.mxu0 %v603
  %v702 = vpop.f32.mrf.mxu0
  %v703 = vadd.f32 %v584, %v702
  %v704 = vpop.f32.mrf.mxu0
  %705 = vmatprep.mubr.f32.mxu0 0.0
  %706 = vmatmul.mubr.f32.gmra.mxu0 %v606
  %v707 = vpop.f32.mrf.mxu0
  %v708 = vadd.f32 %v584, %v707
  %v709 = vpop.f32.mrf.mxu0
  %710 = vmatprep.mubr.f32.mxu0 0.0
  %711 = vmatmul.mubr.f32.gmra.mxu0 %v609
  %v712 = vpop.f32.mrf.mxu0
  %v713 = vadd.f32 %v584, %v712
  %v714 = vpop.f32.mrf.mxu0
  %715 = vdwg.mxu0
  %v716 = vld [vmem:[%s25] sm:$0xff]
  %v717 = vld [vmem:[%s25 + $0x8] sm:$0xff]
  %v718 = vld [vmem:[%s25 + $0x10] sm:$0xff]
  %v719 = vld [vmem:[%s25 + $0x18] sm:$0xff]
  %v720 = vld [vmem:[%s25 + $0x20] sm:$0xff]
  %v721 = vld [vmem:[%s25 + $0x28] sm:$0xff]
  %v722 = vld [vmem:[%s25 + $0x30] sm:$0xff]
  %v723 = vld [vmem:[%s25 + $0x38] sm:$0xff]
  %v724 = vadd.f32 %v678, %v716
  %v725 = vadd.f32 %v683, %v717
  %v726 = vadd.f32 %v688, %v718
  %v727 = vadd.f32 %v693, %v719
  %v728 = vadd.f32 %v698, %v720
  %v729 = vadd.f32 %v703, %v721
  %v730 = vadd.f32 %v708, %v722
  %v731 = vadd.f32 %v713, %v723
  %v732 = vld [vmem:[%s27] sm:$0xf]
  %v733 = vld [vmem:[%s29] sm:$0xff]
  %v734 = vld [vmem:[%s29 + $0x8] sm:$0xff]
  %v735 = vld [vmem:[%s29 + $0x10] sm:$0xff]
  %v736 = vld [vmem:[%s29 + $0x18] sm:$0xff]
  %v737 = vld [vmem:[%s29 + $0x20] sm:$0xff]
  %v738 = vld [vmem:[%s29 + $0x28] sm:$0xff]
  %v739 = vld [vmem:[%s29 + $0x30] sm:$0xff]
  %v740 = vld [vmem:[%s29 + $0x38] sm:$0xff]
  %v741 = vld [vmem:[%s29 + $0x40] sm:$0xf]
  %v742 = vld [vmem:[%s31] sm:$0x1]
  %v743 = vld [vmem:[%s33] sm:$0x1]
  %v744 = vsel %vm227, %v724, 0.0
  %745 = vadd.xlane.f32.xlu0 %v744
  %v746 = vpop.xlane.xlu0 %745
  %v747 = vsel %vm227, %v725, 0.0
  %748 = vadd.xlane.f32.xlu0 %v747
  %v749 = vpop.xlane.xlu0 %748
  %v750 = vsel %vm227, %v726, 0.0
  %751 = vadd.xlane.f32.xlu0 %v750
  %v752 = vpop.xlane.xlu0 %751
  %v753 = vsel %vm227, %v727, 0.0
  %754 = vadd.xlane.f32.xlu0 %v753
  %v755 = vpop.xlane.xlu0 %754
  %v756 = vsel %vm227, %v728, 0.0
  %757 = vadd.xlane.f32.xlu0 %v756
  %v758 = vpop.xlane.xlu0 %757
  %v759 = vsel %vm227, %v729, 0.0
  %760 = vadd.xlane.f32.xlu0 %v759
  %v761 = vpop.xlane.xlu0 %760
  %v762 = vsel %vm227, %v730, 0.0
  %763 = vadd.xlane.f32.xlu0 %v762
  %v764 = vpop.xlane.xlu0 %763
  %v765 = vsel %vm227, %v731, 0.0
  %766 = vadd.xlane.f32.xlu0 %v765
  %v767 = vpop.xlane.xlu0 %766
  %vm768 = vcmask 257024
  %v769 = vsel %vm768, %v732, 0.0
  %770 = vadd.xlane.f32.xlu0 %v769
  %v771 = vpop.xlane.xlu0 %770
  %v772 = vrcp.pop 32.0
  %v773 = vmul.f32 %v746, %v772
  %v774 = vmul.f32 %v749, %v772
  %v775 = vmul.f32 %v752, %v772
  %v776 = vmul.f32 %v755, %v772
  %v777 = vmul.f32 %v758, %v772
  %v778 = vmul.f32 %v761, %v772
  %v779 = vmul.f32 %v764, %v772
  %v780 = vmul.f32 %v767, %v772
  %v781 = vmul.f32 %v771, %v772
  %v782 = vsub.f32 %v724, %v773
  %v783 = vsub.f32 %v725, %v774
  %v784 = vsub.f32 %v726, %v775
  %v785 = vsub.f32 %v727, %v776
  %v786 = vsub.f32 %v728, %v777
  %v787 = vsub.f32 %v729, %v778
  %v788 = vsub.f32 %v730, %v779
  %v789 = vsub.f32 %v731, %v780
  %v790 = vsub.f32 %v732, %v781
  %v791 = vmul.f32 %v782, %v782
  %v792 = vmul.f32 %v783, %v783
  %v793 = vmul.f32 %v784, %v784
  %v794 = vmul.f32 %v785, %v785
  %v795 = vmul.f32 %v786, %v786
  %v796 = vmul.f32 %v787, %v787
  %v797 = vmul.f32 %v788, %v788
  %v798 = vmul.f32 %v789, %v789
  %v799 = vmul.f32 %v790, %v790
  %v800 = vsel %vm227, %v791, 0.0
  %801 = vadd.xlane.f32.xlu0 %v800
  %v802 = vpop.xlane.xlu0 %801
  %v803 = vsel %vm227, %v792, 0.0
  %804 = vadd.xlane.f32.xlu0 %v803
  %v805 = vpop.xlane.xlu0 %804
  %v806 = vsel %vm227, %v793, 0.0
  %807 = vadd.xlane.f32.xlu0 %v806
  %v808 = vpop.xlane.xlu0 %807
  %v809 = vsel %vm227, %v794, 0.0
  %810 = vadd.xlane.f32.xlu0 %v809
  %v811 = vpop.xlane.xlu0 %810
  %v812 = vsel %vm227, %v795, 0.0
  %813 = vadd.xlane.f32.xlu0 %v812
  %v814 = vpop.xlane.xlu0 %813
  %v815 = vsel %vm227, %v796, 0.0
  %816 = vadd.xlane.f32.xlu0 %v815
  %v817 = vpop.xlane.xlu0 %816
  %v818 = vsel %vm227, %v797, 0.0
  %819 = vadd.xlane.f32.xlu0 %v818
  %v820 = vpop.xlane.xlu0 %819
  %v821 = vsel %vm227, %v798, 0.0
  %822 = vadd.xlane.f32.xlu0 %v821
  %v823 = vpop.xlane.xlu0 %822
  %v824 = vsel %vm768, %v799, 0.0
  %825 = vadd.xlane.f32.xlu0 %v824
  %v826 = vpop.xlane.xlu0 %825
  %v827 = vmul.f32 %v802, %v772
  %v828 = vmul.f32 %v805, %v772
  %v829 = vmul.f32 %v808, %v772
  %v830 = vmul.f32 %v811, %v772
  %v831 = vmul.f32 %v814, %v772
  %v832 = vmul.f32 %v817, %v772
  %v833 = vmul.f32 %v820, %v772
  %v834 = vmul.f32 %v823, %v772
  %v835 = vmul.f32 %v826, %v772
  %v836 = vadd.f32 %v827, 1e-12
  %v837 = vadd.f32 %v828, 1e-12
  %v838 = vadd.f32 %v829, 1e-12
  %v839 = vadd.f32 %v830, 1e-12
  %v840 = vadd.f32 %v831, 1e-12
  %v841 = vadd.f32 %v832, 1e-12
  %v842 = vadd.f32 %v833, 1e-12
  %v843 = vadd.f32 %v834, 1e-12
  %v844 = vadd.f32 %v835, 1e-12
  %v845 = vrsqrt.pop %v836
  %v846 = vrsqrt.pop %v837
  %v847 = vrsqrt.pop %v838
  %v848 = vrsqrt.pop %v839
  %v849 = vrsqrt.pop %v840
  %v850 = vrsqrt.pop %v841
  %v851 = vrsqrt.pop %v842
  %v852 = vrsqrt.pop %v843
  %v853 = vrsqrt.pop %v844
  %v854 = vmul.f32 %v782, %v845
  %v855 = vmul.f32 %v783, %v846
  %v856 = vmul.f32 %v784, %v847
  %v857 = vmul.f32 %v785, %v848
  %v858 = vmul.f32 %v786, %v849
  %v859 = vmul.f32 %v787, %v850
  %v860 = vmul.f32 %v788, %v851
  %v861 = vmul.f32 %v789, %v852
  %v862 = vmul.f32 %v790, %v853
  %v863 = vlaneseq
  %v864 = vshrl.u32 %v863, 7
  %v865 = vsub.s32 0, %v864
  %v866 = vrot.slane %v742, %v865
  %v867 = vmul.f32 %v854, %v866
  %v868 = vmul.f32 %v855, %v866
  %v869 = vmul.f32 %v856, %v866
  %v870 = vmul.f32 %v857, %v866
  %v871 = vmul.f32 %v858, %v866
  %v872 = vmul.f32 %v859, %v866
  %v873 = vmul.f32 %v860, %v866
  %v874 = vmul.f32 %v861, %v866
  %v875 = vmul.f32 %v862, %v866
  %v876 = vlaneseq
  %v877 = vshrl.u32 %v876, 7
  %v878 = vsub.s32 0, %v877
  %v879 = vrot.slane %v743, %v878
  %v880 = vadd.f32 %v867, %v879
  %v881 = vadd.f32 %v868, %v879
  %v882 = vadd.f32 %v869, %v879
  %v883 = vadd.f32 %v870, %v879
  %v884 = vadd.f32 %v871, %v879
  %v885 = vadd.f32 %v872, %v879
  %v886 = vadd.f32 %v873, %v879
  %v887 = vadd.f32 %v874, %v879
  %v888 = vadd.f32 %v875, %v879
  %v889 = vadd.f32 %v513, 1.0
  %v890 = vadd.f32 %v519, 1.0
  %v891 = vadd.f32 %v525, 1.0
  %v892 = vadd.f32 %v531, 1.0
  %v893 = vadd.f32 %v537, 1.0
  %v894 = vadd.f32 %v543, 1.0
  %v895 = vadd.f32 %v549, 1.0
  %v896 = vadd.f32 %v555, 1.0
  %v897 = vadd.f32 %v561, 1.0
  %907 = vrot.lane.b32.xlu0 %v889, 96
  %v908 = vpop.permute.xlu0 %907
  %909 = vrot.lane.b32.xlu0 %v890, 96
  %v910 = vpop.permute.xlu0 %909
  %911 = vrot.lane.b32.xlu0 %v891, 96
  %v912 = vpop.permute.xlu0 %911
  %913 = vrot.lane.b32.xlu0 %v892, 96
  %v914 = vpop.permute.xlu0 %913
  %915 = vrot.lane.b32.xlu0 %v893, 96
  %v916 = vpop.permute.xlu0 %915
  %917 = vrot.lane.b32.xlu0 %v894, 96
  %v918 = vpop.permute.xlu0 %917
  %919 = vrot.lane.b32.xlu0 %v895, 96
  %v920 = vpop.permute.xlu0 %919
  %921 = vrot.lane.b32.xlu0 %v896, 96
  %v922 = vpop.permute.xlu0 %921
  %923 = vrot.lane.b32.xlu0 %v897, 96
  %v924 = vpop.permute.xlu0 %923
  %v934 = vmul.f32 %v880, %v908
  %v935 = vmul.f32 %v881, %v910
  %v936 = vmul.f32 %v882, %v912
  %v937 = vmul.f32 %v883, %v914
  %v938 = vmul.f32 %v884, %v916
  %v939 = vmul.f32 %v885, %v918
  %v940 = vmul.f32 %v886, %v920
  %v941 = vmul.f32 %v887, %v922
  %v942 = vmul.f32 %v888, %v924
  %v943 = vadd.f32 %v934, %v513
  %v944 = vadd.f32 %v935, %v519
  %v945 = vadd.f32 %v936, %v525
  %v946 = vadd.f32 %v937, %v531
  %v947 = vadd.f32 %v938, %v537
  %v948 = vadd.f32 %v939, %v543
  %v949 = vadd.f32 %v940, %v549
  %v950 = vadd.f32 %v941, %v555
  %v951 = vadd.f32 %v942, %v561
  %v952 = vld [vmem:[%s35] sm:$0xff]
  %v953 = vld [vmem:[%s35 + $0x8] sm:$0xff]
  %v954 = vld [vmem:[%s35 + $0x10] sm:$0xff]
  %v955 = vld [vmem:[%s35 + $0x18] sm:$0xff]
  %v956 = vld [vmem:[%s37] sm:$0x1]
  %v957 = vlaneseq
  %v958 = vshrl.u32 %v957, 7
  %v959 = vsub.s32 0, %v958
  %v960 = vrot.slane %v956, %v959
  %v962 = vsel %vm227, %v943, 0
  %v965 = vsel %vm227, %v944, 0
  %v968 = vsel %vm227, %v945, 0
  %v971 = vsel %vm227, %v946, 0
  %v974 = vsel %vm227, %v947, 0
  %v977 = vsel %vm227, %v948, 0
  %v980 = vsel %vm227, %v949, 0
  %v983 = vsel %vm227, %v950, 0
  %v986 = vsel %vm227, %v951, 0
  %988 = vmatprep.subr.mxu0 0.0
  %989 = vmatpush1.msra.mxu0 0.0
  %990 = vmatprep.subr.mxu0 0.0
  %991 = vmatpush1.msra.mxu0 0.0
  %992 = vmatprep.subr.mxu0 0.0
  %993 = vmatpush1.msra.mxu0 0.0
  %994 = vmatprep.subr.mxu0 0.0
  %995 = vmatpush1.msra.mxu0 0.0
  %996 = vmatprep.subr.mxu0 0.0
  %997 = vmatpush1.msra.mxu0 0.0
  %998 = vmatprep.subr.mxu0 0.0
  %999 = vmatpush1.msra.mxu0 0.0
  %1000 = vmatprep.subr.mxu0 0.0
  %1001 = vmatpush1.msra.mxu0 0.0
  %1002 = vmatprep.subr.mxu0 0.0
  %1003 = vmatpush1.msra.mxu0 0.0
  %1004 = vmatprep.subr.mxu0 0.0
  %1005 = vmatpush1.msra.mxu0 0.0
  %1006 = vmatprep.subr.mxu0 0.0
  %1007 = vmatpush1.msra.mxu0 0.0
  %1008 = vmatprep.subr.mxu0 0.0
  %1009 = vmatpush1.msra.mxu0 0.0
  %1010 = vmatprep.subr.mxu0 0.0
  %1011 = vmatpush1.msra.mxu0 0.0
  %1012 = vmatprep.subr.mxu0 0.0
  %1013 = vmatpush1.msra.mxu0 %v955
  %1014 = vmatprep.subr.mxu0 0.0
  %1015 = vmatpush1.msra.mxu0 %v954
  %1016 = vmatprep.subr.mxu0 0.0
  %1017 = vmatpush1.msra.mxu0 %v953
  %1018 = vmatprep.subr.mxu0 0.0
  %1019 = vmatpush1.msra.mxu0 %v952
  %1020 = vmatprep.subr.mxu0 0.0
  %1021 = vmatpush2.msra.mxu0 0.0
  %1022 = vmatprep.subr.mxu0 0.0
  %1023 = vmatpush2.msra.mxu0 0.0
  %1024 = vmatprep.subr.mxu0 0.0
  %1025 = vmatpush2.msra.mxu0 0.0
  %1026 = vmatprep.subr.mxu0 0.0
  %1027 = vmatpush2.msra.mxu0 0.0
  %1028 = vmatprep.subr.mxu0 0.0
  %1029 = vmatpush2.msra.mxu0 0.0
  %1030 = vmatprep.subr.mxu0 0.0
  %1031 = vmatpush2.msra.mxu0 0.0
  %1032 = vmatprep.subr.mxu0 0.0
  %1033 = vmatpush2.msra.mxu0 0.0
  %1034 = vmatprep.subr.mxu0 0.0
  %1035 = vmatpush2.msra.mxu0 0.0
  %1036 = vmatprep.subr.mxu0 0.0
  %1037 = vmatpush2.msra.mxu0 0.0
  %1038 = vmatprep.subr.mxu0 0.0
  %1039 = vmatpush2.msra.mxu0 0.0
  %1040 = vmatprep.subr.mxu0 0.0
  %1041 = vmatpush2.msra.mxu0 0.0
  %1042 = vmatprep.subr.mxu0 0.0
  %1043 = vmatpush2.msra.mxu0 0.0
  %1044 = vmatprep.subr.mxu0 0.0
  %1045 = vmatpush2.msra.mxu0 0.0
  %1046 = vmatprep.subr.mxu0 0.0
  %1047 = vmatpush2.msra.mxu0 0.0
  %1048 = vmatprep.subr.mxu0 0.0
  %1049 = vmatpush2.msra.mxu0 0.0
  %1050 = vmatprep.subr.mxu0 0.0
  %1051 = vmatpush2.msra.mxu0 0.0
  %1052 = vmatprep.mubr.f32.mxu0 0.0
  %1053 = vmatmul.mubr.f32.gmra.mxu0 %v962
  %v1054 = vpop.f32.mrf.mxu0
  %v1055 = vadd.f32 %v960, %v1054
  %v1056 = vpop.f32.mrf.mxu0
  %1057 = vmatprep.mubr.f32.mxu0 0.0
  %1058 = vmatmul.mubr.f32.gmra.mxu0 %v965
  %v1059 = vpop.f32.mrf.mxu0
  %v1060 = vadd.f32 %v960, %v1059
  %v1061 = vpop.f32.mrf.mxu0
  %1062 = vmatprep.mubr.f32.mxu0 0.0
  %1063 = vmatmul.mubr.f32.gmra.mxu0 %v968
  %v1064 = vpop.f32.mrf.mxu0
  %v1065 = vadd.f32 %v960, %v1064
  %v1066 = vpop.f32.mrf.mxu0
  %1067 = vmatprep.mubr.f32.mxu0 0.0
  %1068 = vmatmul.mubr.f32.gmra.mxu0 %v971
  %v1069 = vpop.f32.mrf.mxu0
  %v1070 = vadd.f32 %v960, %v1069
  %v1071 = vpop.f32.mrf.mxu0
  %1072 = vmatprep.mubr.f32.mxu0 0.0
  %1073 = vmatmul.mubr.f32.gmra.mxu0 %v974
  %v1074 = vpop.f32.mrf.mxu0
  %v1075 = vadd.f32 %v960, %v1074
  %v1076 = vpop.f32.mrf.mxu0
  %1077 = vmatprep.mubr.f32.mxu0 0.0
  %1078 = vmatmul.mubr.f32.gmra.mxu0 %v977
  %v1079 = vpop.f32.mrf.mxu0
  %v1080 = vadd.f32 %v960, %v1079
  %v1081 = vpop.f32.mrf.mxu0
  %1082 = vmatprep.mubr.f32.mxu0 0.0
  %1083 = vmatmul.mubr.f32.gmra.mxu0 %v980
  %v1084 = vpop.f32.mrf.mxu0
  %v1085 = vadd.f32 %v960, %v1084
  %v1086 = vpop.f32.mrf.mxu0
  %1087 = vmatprep.mubr.f32.mxu0 0.0
  %1088 = vmatmul.mubr.f32.gmra.mxu0 %v983
  %v1089 = vpop.f32.mrf.mxu0
  %v1090 = vadd.f32 %v960, %v1089
  %v1091 = vpop.f32.mrf.mxu0
  %1092 = vmatprep.mubr.f32.mxu0 0.0
  %1093 = vmatmul.mubr.f32.gmra.mxu0 %v986
  %v1094 = vpop.f32.mrf.mxu0
  %v1095 = vadd.f32 %v960, %v1094
  %v1096 = vpop.f32.mrf.mxu0
  %1097 = vdwg.mxu0
  %1107 = vrot.lane.b32.xlu0 %v1055, 96
  %v1108 = vpop.permute.xlu0 %1107
  %1109 = vrot.lane.b32.xlu0 %v1060, 96
  %v1110 = vpop.permute.xlu0 %1109
  %1111 = vrot.lane.b32.xlu0 %v1065, 96
  %v1112 = vpop.permute.xlu0 %1111
  %1113 = vrot.lane.b32.xlu0 %v1070, 96
  %v1114 = vpop.permute.xlu0 %1113
  %1115 = vrot.lane.b32.xlu0 %v1075, 96
  %v1116 = vpop.permute.xlu0 %1115
  %1117 = vrot.lane.b32.xlu0 %v1080, 96
  %v1118 = vpop.permute.xlu0 %1117
  %1119 = vrot.lane.b32.xlu0 %v1085, 96
  %v1120 = vpop.permute.xlu0 %1119
  %1121 = vrot.lane.b32.xlu0 %v1090, 96
  %v1122 = vpop.permute.xlu0 %1121
  %1123 = vrot.lane.b32.xlu0 %v1095, 96
  %v1124 = vpop.permute.xlu0 %1123
  %vm1125 = vcmask 130048
  %v1126 = vsel %vm1125, %v1055, 0
  %v1128 = vsel %vm1125, %v1060, 0
  %v1130 = vsel %vm1125, %v1065, 0
  %v1132 = vsel %vm1125, %v1070, 0
  %v1134 = vsel %vm1125, %v1075, 0
  %v1136 = vsel %vm1125, %v1080, 0
  %v1138 = vsel %vm1125, %v1085, 0
  %v1140 = vsel %vm1125, %v1090, 0
  %v1142 = vsel %vm1125, %v1095, 0
  %v1144 = vsel %vm1125, %v1108, 0
  %v1146 = vsel %vm1125, %v1110, 0
  %v1148 = vsel %vm1125, %v1112, 0
  %v1150 = vsel %vm1125, %v1114, 0
  %v1152 = vsel %vm1125, %v1116, 0
  %v1154 = vsel %vm1125, %v1118, 0
  %v1156 = vsel %vm1125, %v1120, 0
  %v1158 = vsel %vm1125, %v1122, 0
  %v1160 = vsel %vm1125, %v1124, 0
  %1162 = vmatprep.subr.mxu0 0.0
  %1163 = vmatpush1.xpose.msra.mxu0 0.0
  %1164 = vmatprep.subr.mxu0 0.0
  %1165 = vmatpush1.xpose.msra.mxu0 0.0
  %1166 = vmatprep.subr.mxu0 0.0
  %1167 = vmatpush1.xpose.msra.mxu0 0.0
  %1168 = vmatprep.subr.mxu0 0.0
  %1169 = vmatpush1.xpose.msra.mxu0 0.0
  %1170 = vmatprep.subr.mxu0 0.0
  %1171 = vmatpush1.xpose.msra.mxu0 0.0
  %1172 = vmatprep.subr.mxu0 0.0
  %1173 = vmatpush1.xpose.msra.mxu0 0.0
  %1174 = vmatprep.subr.mxu0 0.0
  %1175 = vmatpush1.xpose.msra.mxu0 0.0
  %1176 = vmatprep.subr.mxu0 0.0
  %1177 = vmatpush1.xpose.msra.mxu0 %v1160
  %1178 = vmatprep.subr.mxu0 0.0
  %1179 = vmatpush1.xpose.msra.mxu0 %v1158
  %1180 = vmatprep.subr.mxu0 0.0
  %1181 = vmatpush1.xpose.msra.mxu0 %v1156
  %1182 = vmatprep.subr.mxu0 0.0
  %1183 = vmatpush1.xpose.msra.mxu0 %v1154
  %1184 = vmatprep.subr.mxu0 0.0
  %1185 = vmatpush1.xpose.msra.mxu0 %v1152
  %1186 = vmatprep.subr.mxu0 0.0
  %1187 = vmatpush1.xpose.msra.mxu0 %v1150
  %1188 = vmatprep.subr.mxu0 0.0
  %1189 = vmatpush1.xpose.msra.mxu0 %v1148
  %1190 = vmatprep.subr.mxu0 0.0
  %1191 = vmatpush1.xpose.msra.mxu0 %v1146
  %1192 = vmatprep.subr.mxu0 0.0
  %1193 = vmatpush1.xpose.msra.mxu0 %v1144
  %1194 = vmatprep.subr.mxu0 0.0
  %1195 = vmatpush2.xpose.msra.mxu0 0.0
  %1196 = vmatprep.subr.mxu0 0.0
  %1197 = vmatpush2.xpose.msra.mxu0 0.0
  %1198 = vmatprep.subr.mxu0 0.0
  %1199 = vmatpush2.xpose.msra.mxu0 0.0
  %1200 = vmatprep.subr.mxu0 0.0
  %1201 = vmatpush2.xpose.msra.mxu0 0.0
  %1202 = vmatprep.subr.mxu0 0.0
  %1203 = vmatpush2.xpose.msra.mxu0 0.0
  %1204 = vmatprep.subr.mxu0 0.0
  %1205 = vmatpush2.xpose.msra.mxu0 0.0
  %1206 = vmatprep.subr.mxu0 0.0
  %1207 = vmatpush2.xpose.msra.mxu0 0.0
  %1208 = vmatprep.subr.mxu0 0.0
  %1209 = vmatpush2.xpose.msra.mxu0 0.0
  %1210 = vmatprep.subr.mxu0 0.0
  %1211 = vmatpush2.xpose.msra.mxu0 0.0
  %1212 = vmatprep.subr.mxu0 0.0
  %1213 = vmatpush2.xpose.msra.mxu0 0.0
  %1214 = vmatprep.subr.mxu0 0.0
  %1215 = vmatpush2.xpose.msra.mxu0 0.0
  %1216 = vmatprep.subr.mxu0 0.0
  %1217 = vmatpush2.xpose.msra.mxu0 0.0
  %1218 = vmatprep.subr.mxu0 0.0
  %1219 = vmatpush2.xpose.msra.mxu0 0.0
  %1220 = vmatprep.subr.mxu0 0.0
  %1221 = vmatpush2.xpose.msra.mxu0 0.0
  %1222 = vmatprep.subr.mxu0 0.0
  %1223 = vmatpush2.xpose.msra.mxu0 0.0
  %1224 = vmatprep.subr.mxu0 0.0
  %1225 = vmatpush2.xpose.msra.mxu0 0.0
  %1226 = vmatprep.mubr.f32.mxu0 0.0
  %1227 = vmatmul.mubr.f32.gmra.mxu0 %v1126
  %v1228 = vpop.f32.mrf.mxu0
  %v1229 = vadd.f32 %v733, %v1228
  %v1230 = vpop.f32.mrf.mxu0
  %1231 = vmatprep.mubr.f32.mxu0 0.0
  %1232 = vmatmul.mubr.f32.gmra.mxu0 %v1128
  %v1233 = vpop.f32.mrf.mxu0
  %v1234 = vadd.f32 %v734, %v1233
  %v1235 = vpop.f32.mrf.mxu0
  %1236 = vmatprep.mubr.f32.mxu0 0.0
  %1237 = vmatmul.mubr.f32.gmra.mxu0 %v1130
  %v1238 = vpop.f32.mrf.mxu0
  %v1239 = vadd.f32 %v735, %v1238
  %v1240 = vpop.f32.mrf.mxu0
  %1241 = vmatprep.mubr.f32.mxu0 0.0
  %1242 = vmatmul.mubr.f32.gmra.mxu0 %v1132
  %v1243 = vpop.f32.mrf.mxu0
  %v1244 = vadd.f32 %v736, %v1243
  %v1245 = vpop.f32.mrf.mxu0
  %1246 = vmatprep.mubr.f32.mxu0 0.0
  %1247 = vmatmul.mubr.f32.gmra.mxu0 %v1134
  %v1248 = vpop.f32.mrf.mxu0
  %v1249 = vadd.f32 %v737, %v1248
  %v1250 = vpop.f32.mrf.mxu0
  %1251 = vmatprep.mubr.f32.mxu0 0.0
  %1252 = vmatmul.mubr.f32.gmra.mxu0 %v1136
  %v1253 = vpop.f32.mrf.mxu0
  %v1254 = vadd.f32 %v738, %v1253
  %v1255 = vpop.f32.mrf.mxu0
  %1256 = vmatprep.mubr.f32.mxu0 0.0
  %1257 = vmatmul.mubr.f32.gmra.mxu0 %v1138
  %v1258 = vpop.f32.mrf.mxu0
  %v1259 = vadd.f32 %v739, %v1258
  %v1260 = vpop.f32.mrf.mxu0
  %1261 = vmatprep.mubr.f32.mxu0 0.0
  %1262 = vmatmul.mubr.f32.gmra.mxu0 %v1140
  %v1263 = vpop.f32.mrf.mxu0
  %v1264 = vadd.f32 %v740, %v1263
  %v1265 = vpop.f32.mrf.mxu0
  %1266 = vmatprep.mubr.f32.mxu0 0.0
  %1267 = vmatmul.mubr.f32.gmra.mxu0 %v1142
  %v1268 = vpop.f32.mrf.mxu0
  %v1269 = vadd.f32 %v741, %v1268
  %v1270 = vpop.f32.mrf.mxu0
  %1271 = vdwg.mxu0
  %vm1272 = vcmask 556032
  %v1273 = vsel %vm1272, %v1229, -inf
  %1274 = vmax.xlane.f32.xlu0 %v1273
  %v1275 = vpop.xlane.xlu0 %1274
  %v1276 = vsel %vm1272, %v1234, -inf
  %1277 = vmax.xlane.f32.xlu0 %v1276
  %v1278 = vpop.xlane.xlu0 %1277
  %v1279 = vsel %vm1272, %v1239, -inf
  %1280 = vmax.xlane.f32.xlu0 %v1279
  %v1281 = vpop.xlane.xlu0 %1280
  %v1282 = vsel %vm1272, %v1244, -inf
  %1283 = vmax.xlane.f32.xlu0 %v1282
  %v1284 = vpop.xlane.xlu0 %1283
  %v1285 = vsel %vm1272, %v1249, -inf
  %1286 = vmax.xlane.f32.xlu0 %v1285
  %v1287 = vpop.xlane.xlu0 %1286
  %v1288 = vsel %vm1272, %v1254, -inf
  %1289 = vmax.xlane.f32.xlu0 %v1288
  %v1290 = vpop.xlane.xlu0 %1289
  %v1291 = vsel %vm1272, %v1259, -inf
  %1292 = vmax.xlane.f32.xlu0 %v1291
  %v1293 = vpop.xlane.xlu0 %1292
  %v1294 = vsel %vm1272, %v1264, -inf
  %1295 = vmax.xlane.f32.xlu0 %v1294
  %v1296 = vpop.xlane.xlu0 %1295
  %vm1297 = vcmask 551936
  %v1298 = vsel %vm1297, %v1269, -inf
  %1299 = vmax.xlane.f32.xlu0 %v1298
  %v1300 = vpop.xlane.xlu0 %1299
  %v1301 = vsub.f32 %v1229, %v1275
  %v1302 = vsub.f32 %v1234, %v1278
  %v1303 = vsub.f32 %v1239, %v1281
  %v1304 = vsub.f32 %v1244, %v1284
  %v1305 = vsub.f32 %v1249, %v1287
  %v1306 = vsub.f32 %v1254, %v1290
  %v1307 = vsub.f32 %v1259, %v1293
  %v1308 = vsub.f32 %v1264, %v1296
  %v1309 = vsub.f32 %v1269, %v1300
  %v1310 = vmul.f32 %v1301, 1.442695
  %v1311 = vpow.pop %v1310
  %v1312 = vmul.f32 %v1302, 1.442695
  %v1313 = vpow.pop %v1312
  %v1314 = vmul.f32 %v1303, 1.442695
  %v1315 = vpow.pop %v1314
  %v1316 = vmul.f32 %v1304, 1.442695
  %v1317 = vpow.pop %v1316
  %v1318 = vmul.f32 %v1305, 1.442695
  %v1319 = vpow.pop %v1318
  %v1320 = vmul.f32 %v1306, 1.442695
  %v1321 = vpow.pop %v1320
  %v1322 = vmul.f32 %v1307, 1.442695
  %v1323 = vpow.pop %v1322
  %v1324 = vmul.f32 %v1308, 1.442695
  %v1325 = vpow.pop %v1324
  %v1326 = vmul.f32 %v1309, 1.442695
  %v1327 = vpow.pop %v1326
  %v1328 = vsel %vm1272, %v1311, 0.0
  %1329 = vadd.xlane.f32.xlu0 %v1328
  %v1330 = vpop.xlane.xlu0 %1329
  %v1331 = vsel %vm1272, %v1313, 0.0
  %1332 = vadd.xlane.f32.xlu0 %v1331
  %v1333 = vpop.xlane.xlu0 %1332
  %v1334 = vsel %vm1272, %v1315, 0.0
  %1335 = vadd.xlane.f32.xlu0 %v1334
  %v1336 = vpop.xlane.xlu0 %1335
  %v1337 = vsel %vm1272, %v1317, 0.0
  %1338 = vadd.xlane.f32.xlu0 %v1337
  %v1339 = vpop.xlane.xlu0 %1338
  %v1340 = vsel %vm1272, %v1319, 0.0
  %1341 = vadd.xlane.f32.xlu0 %v1340
  %v1342 = vpop.xlane.xlu0 %1341
  %v1343 = vsel %vm1272, %v1321, 0.0
  %1344 = vadd.xlane.f32.xlu0 %v1343
  %v1345 = vpop.xlane.xlu0 %1344
  %v1346 = vsel %vm1272, %v1323, 0.0
  %1347 = vadd.xlane.f32.xlu0 %v1346
  %v1348 = vpop.xlane.xlu0 %1347
  %v1349 = vsel %vm1272, %v1325, 0.0
  %1350 = vadd.xlane.f32.xlu0 %v1349
  %v1351 = vpop.xlane.xlu0 %1350
  %v1352 = vsel %vm1297, %v1327, 0.0
  %1353 = vadd.xlane.f32.xlu0 %v1352
  %v1354 = vpop.xlane.xlu0 %1353
  %v1355 = vrcp.pop %v1330
  %v1356 = vrcp.pop %v1333
  %v1357 = vrcp.pop %v1336
  %v1358 = vrcp.pop %v1339
  %v1359 = vrcp.pop %v1342
  %v1360 = vrcp.pop %v1345
  %v1361 = vrcp.pop %v1348
  %v1362 = vrcp.pop %v1351
  %v1363 = vrcp.pop %v1354
  %v1364 = vmul.f32 %v1311, %v1355
  %v1365 = vmul.f32 %v1313, %v1356
  %v1366 = vmul.f32 %v1315, %v1357
  %v1367 = vmul.f32 %v1317, %v1358
  %v1368 = vmul.f32 %v1319, %v1359
  %v1369 = vmul.f32 %v1321, %v1360
  %v1370 = vmul.f32 %v1323, %v1361
  %v1371 = vmul.f32 %v1325, %v1362
  %v1372 = vmul.f32 %v1327, %v1363
  %1373 = vrot.lane.b32.xlu0 %v1055, 64
  %v1374 = vpop.permute.xlu0 %1373
  %1375 = vrot.lane.b32.xlu0 %v1060, 64
  %v1376 = vpop.permute.xlu0 %1375
  %1377 = vrot.lane.b32.xlu0 %v1065, 64
  %v1378 = vpop.permute.xlu0 %1377
  %1379 = vrot.lane.b32.xlu0 %v1070, 64
  %v1380 = vpop.permute.xlu0 %1379
  %1381 = vrot.lane.b32.xlu0 %v1075, 64
  %v1382 = vpop.permute.xlu0 %1381
  %1383 = vrot.lane.b32.xlu0 %v1080, 64
  %v1384 = vpop.permute.xlu0 %1383
  %1385 = vrot.lane.b32.xlu0 %v1085, 64
  %v1386 = vpop.permute.xlu0 %1385
  %1387 = vrot.lane.b32.xlu0 %v1090, 64
  %v1388 = vpop.permute.xlu0 %1387
  %1389 = vrot.lane.b32.xlu0 %v1095, 64
  %v1390 = vpop.permute.xlu0 %1389
  %v1400 = vsel %vm1272, %v1364, 0
  %v1403 = vsel %vm1272, %v1365, 0
  %v1406 = vsel %vm1272, %v1366, 0
  %v1409 = vsel %vm1272, %v1367, 0
  %v1412 = vsel %vm1272, %v1368, 0
  %v1415 = vsel %vm1272, %v1369, 0
  %v1418 = vsel %vm1272, %v1370, 0
  %v1421 = vsel %vm1272, %v1371, 0
  %v1424 = vsel %vm1272, %v1372, 0
  %v1426 = vsel %vm135, %v1390, 0
  %1428 = vmatprep.subr.mxu0 0.0
  %1429 = vmatpush1.msra.mxu0 0.0
  %1430 = vmatprep.subr.mxu0 0.0
  %1431 = vmatpush1.msra.mxu0 0.0
  %1432 = vmatprep.subr.mxu0 0.0
  %1433 = vmatpush1.msra.mxu0 0.0
  %1434 = vmatprep.subr.mxu0 0.0
  %1435 = vmatpush1.msra.mxu0 0.0
  %1436 = vmatprep.subr.mxu0 0.0
  %1437 = vmatpush1.msra.mxu0 0.0
  %1438 = vmatprep.subr.mxu0 0.0
  %1439 = vmatpush1.msra.mxu0 0.0
  %1440 = vmatprep.subr.mxu0 0.0
  %1441 = vmatpush1.msra.mxu0 0.0
  %1442 = vmatprep.subr.mxu0 0.0
  %1443 = vmatpush1.msra.mxu0 %v1426
  %1444 = vmatprep.subr.mxu0 0.0
  %1445 = vmatpush1.msra.mxu0 %v1388
  %1446 = vmatprep.subr.mxu0 0.0
  %1447 = vmatpush1.msra.mxu0 %v1386
  %1448 = vmatprep.subr.mxu0 0.0
  %1449 = vmatpush1.msra.mxu0 %v1384
  %1450 = vmatprep.subr.mxu0 0.0
  %1451 = vmatpush1.msra.mxu0 %v1382
  %1452 = vmatprep.subr.mxu0 0.0
  %1453 = vmatpush1.msra.mxu0 %v1380
  %1454 = vmatprep.subr.mxu0 0.0
  %1455 = vmatpush1.msra.mxu0 %v1378
  %1456 = vmatprep.subr.mxu0 0.0
  %1457 = vmatpush1.msra.mxu0 %v1376
  %1458 = vmatprep.subr.mxu0 0.0
  %1459 = vmatpush1.msra.mxu0 %v1374
  %1460 = vmatprep.subr.mxu0 0.0
  %1461 = vmatpush2.msra.mxu0 0.0
  %1462 = vmatprep.subr.mxu0 0.0
  %1463 = vmatpush2.msra.mxu0 0.0
  %1464 = vmatprep.subr.mxu0 0.0
  %1465 = vmatpush2.msra.mxu0 0.0
  %1466 = vmatprep.subr.mxu0 0.0
  %1467 = vmatpush2.msra.mxu0 0.0
  %1468 = vmatprep.subr.mxu0 0.0
  %1469 = vmatpush2.msra.mxu0 0.0
  %1470 = vmatprep.subr.mxu0 0.0
  %1471 = vmatpush2.msra.mxu0 0.0
  %1472 = vmatprep.subr.mxu0 0.0
  %1473 = vmatpush2.msra.mxu0 0.0
  %1474 = vmatprep.subr.mxu0 0.0
  %1475 = vmatpush2.msra.mxu0 0.0
  %1476 = vmatprep.subr.mxu0 0.0
  %1477 = vmatpush2.msra.mxu0 0.0
  %1478 = vmatprep.subr.mxu0 0.0
  %1479 = vmatpush2.msra.mxu0 0.0
  %1480 = vmatprep.subr.mxu0 0.0
  %1481 = vmatpush2.msra.mxu0 0.0
  %1482 = vmatprep.subr.mxu0 0.0
  %1483 = vmatpush2.msra.mxu0 0.0
  %1484 = vmatprep.subr.mxu0 0.0
  %1485 = vmatpush2.msra.mxu0 0.0
  %1486 = vmatprep.subr.mxu0 0.0
  %1487 = vmatpush2.msra.mxu0 0.0
  %1488 = vmatprep.subr.mxu0 0.0
  %1489 = vmatpush2.msra.mxu0 0.0
  %1490 = vmatprep.subr.mxu0 0.0
  %1491 = vmatpush2.msra.mxu0 0.0
  %1492 = vmatprep.mubr.f32.mxu0 0.0
  %1493 = vmatmul.mubr.f32.gmra.mxu0 %v1400
  %v1494 = vpop.f32.mrf.mxu0
  %v1495 = vadd.f32 0.0, %v1494
  %v1496 = vpop.f32.mrf.mxu0
  %1497 = vmatprep.mubr.f32.mxu0 0.0
  %1498 = vmatmul.mubr.f32.gmra.mxu0 %v1403
  %v1499 = vpop.f32.mrf.mxu0
  %v1500 = vadd.f32 0.0, %v1499
  %v1501 = vpop.f32.mrf.mxu0
  %1502 = vmatprep.mubr.f32.mxu0 0.0
  %1503 = vmatmul.mubr.f32.gmra.mxu0 %v1406
  %v1504 = vpop.f32.mrf.mxu0
  %v1505 = vadd.f32 0.0, %v1504
  %v1506 = vpop.f32.mrf.mxu0
  %1507 = vmatprep.mubr.f32.mxu0 0.0
  %1508 = vmatmul.mubr.f32.gmra.mxu0 %v1409
  %v1509 = vpop.f32.mrf.mxu0
  %v1510 = vadd.f32 0.0, %v1509
  %v1511 = vpop.f32.mrf.mxu0
  %1512 = vmatprep.mubr.f32.mxu0 0.0
  %1513 = vmatmul.mubr.f32.gmra.mxu0 %v1412
  %v1514 = vpop.f32.mrf.mxu0
  %v1515 = vadd.f32 0.0, %v1514
  %v1516 = vpop.f32.mrf.mxu0
  %1517 = vmatprep.mubr.f32.mxu0 0.0
  %1518 = vmatmul.mubr.f32.gmra.mxu0 %v1415
  %v1519 = vpop.f32.mrf.mxu0
  %v1520 = vadd.f32 0.0, %v1519
  %v1521 = vpop.f32.mrf.mxu0
  %1522 = vmatprep.mubr.f32.mxu0 0.0
  %1523 = vmatmul.mubr.f32.gmra.mxu0 %v1418
  %v1524 = vpop.f32.mrf.mxu0
  %v1525 = vadd.f32 0.0, %v1524
  %v1526 = vpop.f32.mrf.mxu0
  %1527 = vmatprep.mubr.f32.mxu0 0.0
  %1528 = vmatmul.mubr.f32.gmra.mxu0 %v1421
  %v1529 = vpop.f32.mrf.mxu0
  %v1530 = vadd.f32 0.0, %v1529
  %v1531 = vpop.f32.mrf.mxu0
  %1532 = vmatprep.mubr.f32.mxu0 0.0
  %1533 = vmatmul.mubr.f32.gmra.mxu0 %v1424
  %v1534 = vpop.f32.mrf.mxu0
  %v1535 = vadd.f32 0.0, %v1534
  %v1536 = vpop.f32.mrf.mxu0
  %1537 = vdwg.mxu0
  %1538 = vrot.lane.b32.xlu0 %v1055, 112
  %v1539 = vpop.permute.xlu0 %1538
  %1540 = vrot.lane.b32.xlu0 %v1060, 112
  %v1541 = vpop.permute.xlu0 %1540
  %1542 = vrot.lane.b32.xlu0 %v1065, 112
  %v1543 = vpop.permute.xlu0 %1542
  %1544 = vrot.lane.b32.xlu0 %v1070, 112
  %v1545 = vpop.permute.xlu0 %1544
  %1546 = vrot.lane.b32.xlu0 %v1075, 112
  %v1547 = vpop.permute.xlu0 %1546
  %1548 = vrot.lane.b32.xlu0 %v1080, 112
  %v1549 = vpop.permute.xlu0 %1548
  %1550 = vrot.lane.b32.xlu0 %v1085, 112
  %v1551 = vpop.permute.xlu0 %1550
  %1552 = vrot.lane.b32.xlu0 %v1090, 112
  %v1553 = vpop.permute.xlu0 %1552
  %1554 = vrot.lane.b32.xlu0 %v1095, 112
  %v1555 = vpop.permute.xlu0 %1554
  %1556 = vrot.lane.b32.xlu0 %v1055, 80
  %v1557 = vpop.permute.xlu0 %1556
  %1558 = vrot.lane.b32.xlu0 %v1060, 80
  %v1559 = vpop.permute.xlu0 %1558
  %1560 = vrot.lane.b32.xlu0 %v1065, 80
  %v1561 = vpop.permute.xlu0 %1560
  %1562 = vrot.lane.b32.xlu0 %v1070, 80
  %v1563 = vpop.permute.xlu0 %1562
  %1564 = vrot.lane.b32.xlu0 %v1075, 80
  %v1565 = vpop.permute.xlu0 %1564
  %1566 = vrot.lane.b32.xlu0 %v1080, 80
  %v1567 = vpop.permute.xlu0 %1566
  %1568 = vrot.lane.b32.xlu0 %v1085, 80
  %v1569 = vpop.permute.xlu0 %1568
  %1570 = vrot.lane.b32.xlu0 %v1090, 80
  %v1571 = vpop.permute.xlu0 %1570
  %1572 = vrot.lane.b32.xlu0 %v1095, 80
  %v1573 = vpop.permute.xlu0 %1572
  %v1574 = vsel %vm1125, %v1539, 0
  %v1576 = vsel %vm1125, %v1541, 0
  %v1578 = vsel %vm1125, %v1543, 0
  %v1580 = vsel %vm1125, %v1545, 0
  %v1582 = vsel %vm1125, %v1547, 0
  %v1584 = vsel %vm1125, %v1549, 0
  %v1586 = vsel %vm1125, %v1551, 0
  %v1588 = vsel %vm1125, %v1553, 0
  %v1590 = vsel %vm1125, %v1555, 0
  %v1592 = vsel %vm1125, %v1557, 0
  %v1594 = vsel %vm1125, %v1559, 0
  %v1596 = vsel %vm1125, %v1561, 0
  %v1598 = vsel %vm1125, %v1563, 0
  %v1600 = vsel %vm1125, %v1565, 0
  %v1602 = vsel %vm1125, %v1567, 0
  %v1604 = vsel %vm1125, %v1569, 0
  %v1606 = vsel %vm1125, %v1571, 0
  %v1608 = vsel %vm1125, %v1573, 0
  %1610 = vmatprep.subr.mxu0 0.0
  %1611 = vmatpush1.xpose.msra.mxu0 0.0
  %1612 = vmatprep.subr.mxu0 0.0
  %1613 = vmatpush1.xpose.msra.mxu0 0.0
  %1614 = vmatprep.subr.mxu0 0.0
  %1615 = vmatpush1.xpose.msra.mxu0 0.0
  %1616 = vmatprep.subr.mxu0 0.0
  %1617 = vmatpush1.xpose.msra.mxu0 0.0
  %1618 = vmatprep.subr.mxu0 0.0
  %1619 = vmatpush1.xpose.msra.mxu0 0.0
  %1620 = vmatprep.subr.mxu0 0.0
  %1621 = vmatpush1.xpose.msra.mxu0 0.0
  %1622 = vmatprep.subr.mxu0 0.0
  %1623 = vmatpush1.xpose.msra.mxu0 0.0
  %1624 = vmatprep.subr.mxu0 0.0
  %1625 = vmatpush1.xpose.msra.mxu0 %v1608
  %1626 = vmatprep.subr.mxu0 0.0
  %1627 = vmatpush1.xpose.msra.mxu0 %v1606
  %1628 = vmatprep.subr.mxu0 0.0
  %1629 = vmatpush1.xpose.msra.mxu0 %v1604
  %1630 = vmatprep.subr.mxu0 0.0
  %1631 = vmatpush1.xpose.msra.mxu0 %v1602
  %1632 = vmatprep.subr.mxu0 0.0
  %1633 = vmatpush1.xpose.msra.mxu0 %v1600
  %1634 = vmatprep.subr.mxu0 0.0
  %1635 = vmatpush1.xpose.msra.mxu0 %v1598
  %1636 = vmatprep.subr.mxu0 0.0
  %1637 = vmatpush1.xpose.msra.mxu0 %v1596
  %1638 = vmatprep.subr.mxu0 0.0
  %1639 = vmatpush1.xpose.msra.mxu0 %v1594
  %1640 = vmatprep.subr.mxu0 0.0
  %1641 = vmatpush1.xpose.msra.mxu0 %v1592
  %1642 = vmatprep.subr.mxu0 0.0
  %1643 = vmatpush2.xpose.msra.mxu0 0.0
  %1644 = vmatprep.subr.mxu0 0.0
  %1645 = vmatpush2.xpose.msra.mxu0 0.0
  %1646 = vmatprep.subr.mxu0 0.0
  %1647 = vmatpush2.xpose.msra.mxu0 0.0
  %1648 = vmatprep.subr.mxu0 0.0
  %1649 = vmatpush2.xpose.msra.mxu0 0.0
  %1650 = vmatprep.subr.mxu0 0.0
  %1651 = vmatpush2.xpose.msra.mxu0 0.0
  %1652 = vmatprep.subr.mxu0 0.0
  %1653 = vmatpush2.xpose.msra.mxu0 0.0
  %1654 = vmatprep.subr.mxu0 0.0
  %1655 = vmatpush2.xpose.msra.mxu0 0.0
  %1656 = vmatprep.subr.mxu0 0.0
  %1657 = vmatpush2.xpose.msra.mxu0 0.0
  %1658 = vmatprep.subr.mxu0 0.0
  %1659 = vmatpush2.xpose.msra.mxu0 0.0
  %1660 = vmatprep.subr.mxu0 0.0
  %1661 = vmatpush2.xpose.msra.mxu0 0.0
  %1662 = vmatprep.subr.mxu0 0.0
  %1663 = vmatpush2.xpose.msra.mxu0 0.0
  %1664 = vmatprep.subr.mxu0 0.0
  %1665 = vmatpush2.xpose.msra.mxu0 0.0
  %1666 = vmatprep.subr.mxu0 0.0
  %1667 = vmatpush2.xpose.msra.mxu0 0.0
  %1668 = vmatprep.subr.mxu0 0.0
  %1669 = vmatpush2.xpose.msra.mxu0 0.0
  %1670 = vmatprep.subr.mxu0 0.0
  %1671 = vmatpush2.xpose.msra.mxu0 0.0
  %1672 = vmatprep.subr.mxu0 0.0
  %1673 = vmatpush2.xpose.msra.mxu0 0.0
  %1674 = vmatprep.mubr.f32.mxu0 0.0
  %1675 = vmatmul.mubr.f32.gmra.mxu0 %v1574
  %v1676 = vpop.f32.mrf.mxu0
  %v1677 = vadd.f32 %v733, %v1676
  %v1678 = vpop.f32.mrf.mxu0
  %1679 = vmatprep.mubr.f32.mxu0 0.0
  %1680 = vmatmul.mubr.f32.gmra.mxu0 %v1576
  %v1681 = vpop.f32.mrf.mxu0
  %v1682 = vadd.f32 %v734, %v1681
  %v1683 = vpop.f32.mrf.mxu0
  %1684 = vmatprep.mubr.f32.mxu0 0.0
  %1685 = vmatmul.mubr.f32.gmra.mxu0 %v1578
  %v1686 = vpop.f32.mrf.mxu0
  %v1687 = vadd.f32 %v735, %v1686
  %v1688 = vpop.f32.mrf.mxu0
  %1689 = vmatprep.mubr.f32.mxu0 0.0
  %1690 = vmatmul.mubr.f32.gmra.mxu0 %v1580
  %v1691 = vpop.f32.mrf.mxu0
  %v1692 = vadd.f32 %v736, %v1691
  %v1693 = vpop.f32.mrf.mxu0
  %1694 = vmatprep.mubr.f32.mxu0 0.0
  %1695 = vmatmul.mubr.f32.gmra.mxu0 %v1582
  %v1696 = vpop.f32.mrf.mxu0
  %v1697 = vadd.f32 %v737, %v1696
  %v1698 = vpop.f32.mrf.mxu0
  %1699 = vmatprep.mubr.f32.mxu0 0.0
  %1700 = vmatmul.mubr.f32.gmra.mxu0 %v1584
  %v1701 = vpop.f32.mrf.mxu0
  %v1702 = vadd.f32 %v738, %v1701
  %v1703 = vpop.f32.mrf.mxu0
  %1704 = vmatprep.mubr.f32.mxu0 0.0
  %1705 = vmatmul.mubr.f32.gmra.mxu0 %v1586
  %v1706 = vpop.f32.mrf.mxu0
  %v1707 = vadd.f32 %v739, %v1706
  %v1708 = vpop.f32.mrf.mxu0
  %1709 = vmatprep.mubr.f32.mxu0 0.0
  %1710 = vmatmul.mubr.f32.gmra.mxu0 %v1588
  %v1711 = vpop.f32.mrf.mxu0
  %v1712 = vadd.f32 %v740, %v1711
  %v1713 = vpop.f32.mrf.mxu0
  %1714 = vmatprep.mubr.f32.mxu0 0.0
  %1715 = vmatmul.mubr.f32.gmra.mxu0 %v1590
  %v1716 = vpop.f32.mrf.mxu0
  %v1717 = vadd.f32 %v741, %v1716
  %v1718 = vpop.f32.mrf.mxu0
  %1719 = vdwg.mxu0
  %v1720 = vsel %vm1272, %v1677, -inf
  %1721 = vmax.xlane.f32.xlu0 %v1720
  %v1722 = vpop.xlane.xlu0 %1721
  %v1723 = vsel %vm1272, %v1682, -inf
  %1724 = vmax.xlane.f32.xlu0 %v1723
  %v1725 = vpop.xlane.xlu0 %1724
  %v1726 = vsel %vm1272, %v1687, -inf
  %1727 = vmax.xlane.f32.xlu0 %v1726
  %v1728 = vpop.xlane.xlu0 %1727
  %v1729 = vsel %vm1272, %v1692, -inf
  %1730 = vmax.xlane.f32.xlu0 %v1729
  %v1731 = vpop.xlane.xlu0 %1730
  %v1732 = vsel %vm1272, %v1697, -inf
  %1733 = vmax.xlane.f32.xlu0 %v1732
  %v1734 = vpop.xlane.xlu0 %1733
  %v1735 = vsel %vm1272, %v1702, -inf
  %1736 = vmax.xlane.f32.xlu0 %v1735
  %v1737 = vpop.xlane.xlu0 %1736
  %v1738 = vsel %vm1272, %v1707, -inf
  %1739 = vmax.xlane.f32.xlu0 %v1738
  %v1740 = vpop.xlane.xlu0 %1739
  %v1741 = vsel %vm1272, %v1712, -inf
  %1742 = vmax.xlane.f32.xlu0 %v1741
  %v1743 = vpop.xlane.xlu0 %1742
  %v1744 = vsel %vm1297, %v1717, -inf
  %1745 = vmax.xlane.f32.xlu0 %v1744
  %v1746 = vpop.xlane.xlu0 %1745
  %v1747 = vsub.f32 %v1677, %v1722
  %v1748 = vsub.f32 %v1682, %v1725
  %v1749 = vsub.f32 %v1687, %v1728
  %v1750 = vsub.f32 %v1692, %v1731
  %v1751 = vsub.f32 %v1697, %v1734
  %v1752 = vsub.f32 %v1702, %v1737
  %v1753 = vsub.f32 %v1707, %v1740
  %v1754 = vsub.f32 %v1712, %v1743
  %v1755 = vsub.f32 %v1717, %v1746
  %v1756 = vmul.f32 %v1747, 1.442695
  %v1757 = vpow.pop %v1756
  %v1758 = vmul.f32 %v1748, 1.442695
  %v1759 = vpow.pop %v1758
  %v1760 = vmul.f32 %v1749, 1.442695
  %v1761 = vpow.pop %v1760
  %v1762 = vmul.f32 %v1750, 1.442695
  %v1763 = vpow.pop %v1762
  %v1764 = vmul.f32 %v1751, 1.442695
  %v1765 = vpow.pop %v1764
  %v1766 = vmul.f32 %v1752, 1.442695
  %v1767 = vpow.pop %v1766
  %v1768 = vmul.f32 %v1753, 1.442695
  %v1769 = vpow.pop %v1768
  %v1770 = vmul.f32 %v1754, 1.442695
  %v1771 = vpow.pop %v1770
  %v1772 = vmul.f32 %v1755, 1.442695
  %v1773 = vpow.pop %v1772
  %v1774 = vsel %vm1272, %v1757, 0.0
  %1775 = vadd.xlane.f32.xlu0 %v1774
  %v1776 = vpop.xlane.xlu0 %1775
  %v1777 = vsel %vm1272, %v1759, 0.0
  %1778 = vadd.xlane.f32.xlu0 %v1777
  %v1779 = vpop.xlane.xlu0 %1778
  %v1780 = vsel %vm1272, %v1761, 0.0
  %1781 = vadd.xlane.f32.xlu0 %v1780
  %v1782 = vpop.xlane.xlu0 %1781
  %v1783 = vsel %vm1272, %v1763, 0.0
  %1784 = vadd.xlane.f32.xlu0 %v1783
  %v1785 = vpop.xlane.xlu0 %1784
  %v1786 = vsel %vm1272, %v1765, 0.0
  %1787 = vadd.xlane.f32.xlu0 %v1786
  %v1788 = vpop.xlane.xlu0 %1787
  %v1789 = vsel %vm1272, %v1767, 0.0
  %1790 = vadd.xlane.f32.xlu0 %v1789
  %v1791 = vpop.xlane.xlu0 %1790
  %v1792 = vsel %vm1272, %v1769, 0.0
  %1793 = vadd.xlane.f32.xlu0 %v1792
  %v1794 = vpop.xlane.xlu0 %1793
  %v1795 = vsel %vm1272, %v1771, 0.0
  %1796 = vadd.xlane.f32.xlu0 %v1795
  %v1797 = vpop.xlane.xlu0 %1796
  %v1798 = vsel %vm1297, %v1773, 0.0
  %1799 = vadd.xlane.f32.xlu0 %v1798
  %v1800 = vpop.xlane.xlu0 %1799
  %v1801 = vrcp.pop %v1776
  %v1802 = vrcp.pop %v1779
  %v1803 = vrcp.pop %v1782
  %v1804 = vrcp.pop %v1785
  %v1805 = vrcp.pop %v1788
  %v1806 = vrcp.pop %v1791
  %v1807 = vrcp.pop %v1794
  %v1808 = vrcp.pop %v1797
  %v1809 = vrcp.pop %v1800
  %v1810 = vmul.f32 %v1757, %v1801
  %v1811 = vmul.f32 %v1759, %v1802
  %v1812 = vmul.f32 %v1761, %v1803
  %v1813 = vmul.f32 %v1763, %v1804
  %v1814 = vmul.f32 %v1765, %v1805
  %v1815 = vmul.f32 %v1767, %v1806
  %v1816 = vmul.f32 %v1769, %v1807
  %v1817 = vmul.f32 %v1771, %v1808
  %v1818 = vmul.f32 %v1773, %v1809
  %1819 = vrot.lane.b32.xlu0 %v1055, 48
  %v1820 = vpop.permute.xlu0 %1819
  %1821 = vrot.lane.b32.xlu0 %v1060, 48
  %v1822 = vpop.permute.xlu0 %1821
  %1823 = vrot.lane.b32.xlu0 %v1065, 48
  %v1824 = vpop.permute.xlu0 %1823
  %1825 = vrot.lane.b32.xlu0 %v1070, 48
  %v1826 = vpop.permute.xlu0 %1825
  %1827 = vrot.lane.b32.xlu0 %v1075, 48
  %v1828 = vpop.permute.xlu0 %1827
  %1829 = vrot.lane.b32.xlu0 %v1080, 48
  %v1830 = vpop.permute.xlu0 %1829
  %1831 = vrot.lane.b32.xlu0 %v1085, 48
  %v1832 = vpop.permute.xlu0 %1831
  %1833 = vrot.lane.b32.xlu0 %v1090, 48
  %v1834 = vpop.permute.xlu0 %1833
  %1835 = vrot.lane.b32.xlu0 %v1095, 48
  %v1836 = vpop.permute.xlu0 %1835
  %v1846 = vsel %vm1272, %v1810, 0
  %v1849 = vsel %vm1272, %v1811, 0
  %v1852 = vsel %vm1272, %v1812, 0
  %v1855 = vsel %vm1272, %v1813, 0
  %v1858 = vsel %vm1272, %v1814, 0
  %v1861 = vsel %vm1272, %v1815, 0
  %v1864 = vsel %vm1272, %v1816, 0
  %v1867 = vsel %vm1272, %v1817, 0
  %v1870 = vsel %vm1272, %v1818, 0
  %v1872 = vsel %vm135, %v1836, 0
  %1874 = vmatprep.subr.mxu0 0.0
  %1875 = vmatpush1.msra.mxu0 0.0
  %1876 = vmatprep.subr.mxu0 0.0
  %1877 = vmatpush1.msra.mxu0 0.0
  %1878 = vmatprep.subr.mxu0 0.0
  %1879 = vmatpush1.msra.mxu0 0.0
  %1880 = vmatprep.subr.mxu0 0.0
  %1881 = vmatpush1.msra.mxu0 0.0
  %1882 = vmatprep.subr.mxu0 0.0
  %1883 = vmatpush1.msra.mxu0 0.0
  %1884 = vmatprep.subr.mxu0 0.0
  %1885 = vmatpush1.msra.mxu0 0.0
  %1886 = vmatprep.subr.mxu0 0.0
  %1887 = vmatpush1.msra.mxu0 0.0
  %1888 = vmatprep.subr.mxu0 0.0
  %1889 = vmatpush1.msra.mxu0 %v1872
  %1890 = vmatprep.subr.mxu0 0.0
  %1891 = vmatpush1.msra.mxu0 %v1834
  %1892 = vmatprep.subr.mxu0 0.0
  %1893 = vmatpush1.msra.mxu0 %v1832
  %1894 = vmatprep.subr.mxu0 0.0
  %1895 = vmatpush1.msra.mxu0 %v1830
  %1896 = vmatprep.subr.mxu0 0.0
  %1897 = vmatpush1.msra.mxu0 %v1828
  %1898 = vmatprep.subr.mxu0 0.0
  %1899 = vmatpush1.msra.mxu0 %v1826
  %1900 = vmatprep.subr.mxu0 0.0
  %1901 = vmatpush1.msra.mxu0 %v1824
  %1902 = vmatprep.subr.mxu0 0.0
  %1903 = vmatpush1.msra.mxu0 %v1822
  %1904 = vmatprep.subr.mxu0 0.0
  %1905 = vmatpush1.msra.mxu0 %v1820
  %1906 = vmatprep.subr.mxu0 0.0
  %1907 = vmatpush2.msra.mxu0 0.0
  %1908 = vmatprep.subr.mxu0 0.0
  %1909 = vmatpush2.msra.mxu0 0.0
  %1910 = vmatprep.subr.mxu0 0.0
  %1911 = vmatpush2.msra.mxu0 0.0
  %1912 = vmatprep.subr.mxu0 0.0
  %1913 = vmatpush2.msra.mxu0 0.0
  %1914 = vmatprep.subr.mxu0 0.0
  %1915 = vmatpush2.msra.mxu0 0.0
  %1916 = vmatprep.subr.mxu0 0.0
  %1917 = vmatpush2.msra.mxu0 0.0
  %1918 = vmatprep.subr.mxu0 0.0
  %1919 = vmatpush2.msra.mxu0 0.0
  %1920 = vmatprep.subr.mxu0 0.0
  %1921 = vmatpush2.msra.mxu0 0.0
  %1922 = vmatprep.subr.mxu0 0.0
  %1923 = vmatpush2.msra.mxu0 0.0
  %1924 = vmatprep.subr.mxu0 0.0
  %1925 = vmatpush2.msra.mxu0 0.0
  %1926 = vmatprep.subr.mxu0 0.0
  %1927 = vmatpush2.msra.mxu0 0.0
  %1928 = vmatprep.subr.mxu0 0.0
  %1929 = vmatpush2.msra.mxu0 0.0
  %1930 = vmatprep.subr.mxu0 0.0
  %1931 = vmatpush2.msra.mxu0 0.0
  %1932 = vmatprep.subr.mxu0 0.0
  %1933 = vmatpush2.msra.mxu0 0.0
  %1934 = vmatprep.subr.mxu0 0.0
  %1935 = vmatpush2.msra.mxu0 0.0
  %1936 = vmatprep.subr.mxu0 0.0
  %1937 = vmatpush2.msra.mxu0 0.0
  %1938 = vmatprep.mubr.f32.mxu0 0.0
  %1939 = vmatmul.mubr.f32.gmra.mxu0 %v1846
  %v1940 = vpop.f32.mrf.mxu0
  %v1941 = vadd.f32 0.0, %v1940
  %v1942 = vpop.f32.mrf.mxu0
  %1943 = vmatprep.mubr.f32.mxu0 0.0
  %1944 = vmatmul.mubr.f32.gmra.mxu0 %v1849
  %v1945 = vpop.f32.mrf.mxu0
  %v1946 = vadd.f32 0.0, %v1945
  %v1947 = vpop.f32.mrf.mxu0
  %1948 = vmatprep.mubr.f32.mxu0 0.0
  %1949 = vmatmul.mubr.f32.gmra.mxu0 %v1852
  %v1950 = vpop.f32.mrf.mxu0
  %v1951 = vadd.f32 0.0, %v1950
  %v1952 = vpop.f32.mrf.mxu0
  %1953 = vmatprep.mubr.f32.mxu0 0.0
  %1954 = vmatmul.mubr.f32.gmra.mxu0 %v1855
  %v1955 = vpop.f32.mrf.mxu0
  %v1956 = vadd.f32 0.0, %v1955
  %v1957 = vpop.f32.mrf.mxu0
  %1958 = vmatprep.mubr.f32.mxu0 0.0
  %1959 = vmatmul.mubr.f32.gmra.mxu0 %v1858
  %v1960 = vpop.f32.mrf.mxu0
  %v1961 = vadd.f32 0.0, %v1960
  %v1962 = vpop.f32.mrf.mxu0
  %1963 = vmatprep.mubr.f32.mxu0 0.0
  %1964 = vmatmul.mubr.f32.gmra.mxu0 %v1861
  %v1965 = vpop.f32.mrf.mxu0
  %v1966 = vadd.f32 0.0, %v1965
  %v1967 = vpop.f32.mrf.mxu0
  %1968 = vmatprep.mubr.f32.mxu0 0.0
  %1969 = vmatmul.mubr.f32.gmra.mxu0 %v1864
  %v1970 = vpop.f32.mrf.mxu0
  %v1971 = vadd.f32 0.0, %v1970
  %v1972 = vpop.f32.mrf.mxu0
  %1973 = vmatprep.mubr.f32.mxu0 0.0
  %1974 = vmatmul.mubr.f32.gmra.mxu0 %v1867
  %v1975 = vpop.f32.mrf.mxu0
  %v1976 = vadd.f32 0.0, %v1975
  %v1977 = vpop.f32.mrf.mxu0
  %1978 = vmatprep.mubr.f32.mxu0 0.0
  %1979 = vmatmul.mubr.f32.gmra.mxu0 %v1870
  %v1980 = vpop.f32.mrf.mxu0
  %v1981 = vadd.f32 0.0, %v1980
  %v1982 = vpop.f32.mrf.mxu0
  %1983 = vdwg.mxu0
  %1993 = vrot.lane.b32.xlu0 %v1941, 16
  %v1994 = vpop.permute.xlu0 %1993
  %1995 = vrot.lane.b32.xlu0 %v1946, 16
  %v1996 = vpop.permute.xlu0 %1995
  %1997 = vrot.lane.b32.xlu0 %v1951, 16
  %v1998 = vpop.permute.xlu0 %1997
  %1999 = vrot.lane.b32.xlu0 %v1956, 16
  %v2000 = vpop.permute.xlu0 %1999
  %2001 = vrot.lane.b32.xlu0 %v1961, 16
  %v2002 = vpop.permute.xlu0 %2001
  %2003 = vrot.lane.b32.xlu0 %v1966, 16
  %v2004 = vpop.permute.xlu0 %2003
  %2005 = vrot.lane.b32.xlu0 %v1971, 16
  %v2006 = vpop.permute.xlu0 %2005
  %2007 = vrot.lane.b32.xlu0 %v1976, 16
  %v2008 = vpop.permute.xlu0 %2007
  %2009 = vrot.lane.b32.xlu0 %v1981, 16
  %v2010 = vpop.permute.xlu0 %2009
  %v2020 = vsel %vm1125, %v1495, %v1994
  %v2021 = vsel %vm1125, %v1500, %v1996
  %v2022 = vsel %vm1125, %v1505, %v1998
  %v2023 = vsel %vm1125, %v1510, %v2000
  %v2024 = vsel %vm1125, %v1515, %v2002
  %v2025 = vsel %vm1125, %v1520, %v2004
  %v2026 = vsel %vm1125, %v1525, %v2006
  %v2027 = vsel %vm1125, %v1530, %v2008
  %v2028 = vsel %vm1125, %v1535, %v2010
  %v2029 = vld [vmem:[%s39] sm:$0xff]
  %v2030 = vld [vmem:[%s39 + $0x8] sm:$0xff]
  %v2031 = vld [vmem:[%s39 + $0x10] sm:$0xff]
  %v2032 = vld [vmem:[%s39 + $0x18] sm:$0xff]
  %v2034 = vsel %vm227, %v2020, 0
  %v2037 = vsel %vm227, %v2021, 0
  %v2040 = vsel %vm227, %v2022, 0
  %v2043 = vsel %vm227, %v2023, 0
  %v2046 = vsel %vm227, %v2024, 0
  %v2049 = vsel %vm227, %v2025, 0
  %v2052 = vsel %vm227, %v2026, 0
  %v2055 = vsel %vm227, %v2027, 0
  %v2058 = vsel %vm227, %v2028, 0
  %2060 = vmatprep.subr.mxu0 0.0
  %2061 = vmatpush1.msra.mxu0 0.0
  %2062 = vmatprep.subr.mxu0 0.0
  %2063 = vmatpush1.msra.mxu0 0.0
  %2064 = vmatprep.subr.mxu0 0.0
  %2065 = vmatpush1.msra.mxu0 0.0
  %2066 = vmatprep.subr.mxu0 0.0
  %2067 = vmatpush1.msra.mxu0 0.0
  %2068 = vmatprep.subr.mxu0 0.0
  %2069 = vmatpush1.msra.mxu0 0.0
  %2070 = vmatprep.subr.mxu0 0.0
  %2071 = vmatpush1.msra.mxu0 0.0
  %2072 = vmatprep.subr.mxu0 0.0
  %2073 = vmatpush1.msra.mxu0 0.0
  %2074 = vmatprep.subr.mxu0 0.0
  %2075 = vmatpush1.msra.mxu0 0.0
  %2076 = vmatprep.subr.mxu0 0.0
  %2077 = vmatpush1.msra.mxu0 0.0
  %2078 = vmatprep.subr.mxu0 0.0
  %2079 = vmatpush1.msra.mxu0 0.0
  %2080 = vmatprep.subr.mxu0 0.0
  %2081 = vmatpush1.msra.mxu0 0.0
  %2082 = vmatprep.subr.mxu0 0.0
  %2083 = vmatpush1.msra.mxu0 0.0
  %2084 = vmatprep.subr.mxu0 0.0
  %2085 = vmatpush1.msra.mxu0 %v2032
  %2086 = vmatprep.subr.mxu0 0.0
  %2087 = vmatpush1.msra.mxu0 %v2031
  %2088 = vmatprep.subr.mxu0 0.0
  %2089 = vmatpush1.msra.mxu0 %v2030
  %2090 = vmatprep.subr.mxu0 0.0
  %2091 = vmatpush1.msra.mxu0 %v2029
  %2092 = vmatprep.subr.mxu0 0.0
  %2093 = vmatpush2.msra.mxu0 0.0
  %2094 = vmatprep.subr.mxu0 0.0
  %2095 = vmatpush2.msra.mxu0 0.0
  %2096 = vmatprep.subr.mxu0 0.0
  %2097 = vmatpush2.msra.mxu0 0.0
  %2098 = vmatprep.subr.mxu0 0.0
  %2099 = vmatpush2.msra.mxu0 0.0
  %2100 = vmatprep.subr.mxu0 0.0
  %2101 = vmatpush2.msra.mxu0 0.0
  %2102 = vmatprep.subr.mxu0 0.0
  %2103 = vmatpush2.msra.mxu0 0.0
  %2104 = vmatprep.subr.mxu0 0.0
  %2105 = vmatpush2.msra.mxu0 0.0
  %2106 = vmatprep.subr.mxu0 0.0
  %2107 = vmatpush2.msra.mxu0 0.0
  %2108 = vmatprep.subr.mxu0 0.0
  %2109 = vmatpush2.msra.mxu0 0.0
  %2110 = vmatprep.subr.mxu0 0.0
  %2111 = vmatpush2.msra.mxu0 0.0
  %2112 = vmatprep.subr.mxu0 0.0
  %2113 = vmatpush2.msra.mxu0 0.0
  %2114 = vmatprep.subr.mxu0 0.0
  %2115 = vmatpush2.msra.mxu0 0.0
  %2116 = vmatprep.subr.mxu0 0.0
  %2117 = vmatpush2.msra.mxu0 0.0
  %2118 = vmatprep.subr.mxu0 0.0
  %2119 = vmatpush2.msra.mxu0 0.0
  %2120 = vmatprep.subr.mxu0 0.0
  %2121 = vmatpush2.msra.mxu0 0.0
  %2122 = vmatprep.subr.mxu0 0.0
  %2123 = vmatpush2.msra.mxu0 0.0
  %2124 = vmatprep.mubr.f32.mxu0 0.0
  %2125 = vmatmul.mubr.f32.gmra.mxu0 %v2034
  %v2126 = vpop.f32.mrf.mxu0
  %v2127 = vadd.f32 0.0, %v2126
  %v2128 = vpop.f32.mrf.mxu0
  %2129 = vmatprep.mubr.f32.mxu0 0.0
  %2130 = vmatmul.mubr.f32.gmra.mxu0 %v2037
  %v2131 = vpop.f32.mrf.mxu0
  %v2132 = vadd.f32 0.0, %v2131
  %v2133 = vpop.f32.mrf.mxu0
  %2134 = vmatprep.mubr.f32.mxu0 0.0
  %2135 = vmatmul.mubr.f32.gmra.mxu0 %v2040
  %v2136 = vpop.f32.mrf.mxu0
  %v2137 = vadd.f32 0.0, %v2136
  %v2138 = vpop.f32.mrf.mxu0
  %2139 = vmatprep.mubr.f32.mxu0 0.0
  %2140 = vmatmul.mubr.f32.gmra.mxu0 %v2043
  %v2141 = vpop.f32.mrf.mxu0
  %v2142 = vadd.f32 0.0, %v2141
  %v2143 = vpop.f32.mrf.mxu0
  %2144 = vmatprep.mubr.f32.mxu0 0.0
  %2145 = vmatmul.mubr.f32.gmra.mxu0 %v2046
  %v2146 = vpop.f32.mrf.mxu0
  %v2147 = vadd.f32 0.0, %v2146
  %v2148 = vpop.f32.mrf.mxu0
  %2149 = vmatprep.mubr.f32.mxu0 0.0
  %2150 = vmatmul.mubr.f32.gmra.mxu0 %v2049
  %v2151 = vpop.f32.mrf.mxu0
  %v2152 = vadd.f32 0.0, %v2151
  %v2153 = vpop.f32.mrf.mxu0
  %2154 = vmatprep.mubr.f32.mxu0 0.0
  %2155 = vmatmul.mubr.f32.gmra.mxu0 %v2052
  %v2156 = vpop.f32.mrf.mxu0
  %v2157 = vadd.f32 0.0, %v2156
  %v2158 = vpop.f32.mrf.mxu0
  %2159 = vmatprep.mubr.f32.mxu0 0.0
  %2160 = vmatmul.mubr.f32.gmra.mxu0 %v2055
  %v2161 = vpop.f32.mrf.mxu0
  %v2162 = vadd.f32 0.0, %v2161
  %v2163 = vpop.f32.mrf.mxu0
  %2164 = vmatprep.mubr.f32.mxu0 0.0
  %2165 = vmatmul.mubr.f32.gmra.mxu0 %v2058
  %v2166 = vpop.f32.mrf.mxu0
  %v2167 = vadd.f32 0.0, %v2166
  %v2168 = vpop.f32.mrf.mxu0
  %2169 = vdwg.mxu0
  %v2170 = vadd.f32 %v724, %v2127
  %v2171 = vadd.f32 %v725, %v2132
  %v2172 = vadd.f32 %v726, %v2137
  %v2173 = vadd.f32 %v727, %v2142
  %v2174 = vadd.f32 %v728, %v2147
  %v2175 = vadd.f32 %v729, %v2152
  %v2176 = vadd.f32 %v730, %v2157
  %v2177 = vadd.f32 %v731, %v2162
  %v2178 = vadd.f32 %v732, %v2167
  %v2179 = vld [vmem:[%s41] sm:$0x1]
  %v2180 = vlaneseq
  %v2181 = vshrl.u32 %v2180, 7
  %v2182 = vsub.s32 0, %v2181
  %v2183 = vrot.slane %v2179, %v2182
  %v2184 = vadd.f32 %v2170, %v2183
  %v2185 = vadd.f32 %v2171, %v2183
  %v2186 = vadd.f32 %v2172, %v2183
  %v2187 = vadd.f32 %v2173, %v2183
  %v2188 = vadd.f32 %v2174, %v2183
  %v2189 = vadd.f32 %v2175, %v2183
  %v2190 = vadd.f32 %v2176, %v2183
  %v2191 = vadd.f32 %v2177, %v2183
  %v2192 = vadd.f32 %v2178, %v2183
  %v2193 = vld [vmem:[%s43] sm:$0x1]
  %v2194 = vld [vmem:[%s45] sm:$0x1]
  %v2195 = vsel %vm227, %v2184, 0.0
  %2196 = vadd.xlane.f32.xlu0 %v2195
  %v2197 = vpop.xlane.xlu0 %2196
  %v2198 = vsel %vm227, %v2185, 0.0
  %2199 = vadd.xlane.f32.xlu0 %v2198
  %v2200 = vpop.xlane.xlu0 %2199
  %v2201 = vsel %vm227, %v2186, 0.0
  %2202 = vadd.xlane.f32.xlu0 %v2201
  %v2203 = vpop.xlane.xlu0 %2202
  %v2204 = vsel %vm227, %v2187, 0.0
  %2205 = vadd.xlane.f32.xlu0 %v2204
  %v2206 = vpop.xlane.xlu0 %2205
  %v2207 = vsel %vm227, %v2188, 0.0
  %2208 = vadd.xlane.f32.xlu0 %v2207
  %v2209 = vpop.xlane.xlu0 %2208
  %v2210 = vsel %vm227, %v2189, 0.0
  %2211 = vadd.xlane.f32.xlu0 %v2210
  %v2212 = vpop.xlane.xlu0 %2211
  %v2213 = vsel %vm227, %v2190, 0.0
  %2214 = vadd.xlane.f32.xlu0 %v2213
  %v2215 = vpop.xlane.xlu0 %2214
  %v2216 = vsel %vm227, %v2191, 0.0
  %2217 = vadd.xlane.f32.xlu0 %v2216
  %v2218 = vpop.xlane.xlu0 %2217
  %v2219 = vsel %vm768, %v2192, 0.0
  %2220 = vadd.xlane.f32.xlu0 %v2219
  %v2221 = vpop.xlane.xlu0 %2220
  %v2222 = vmul.f32 %v2197, %v772
  %v2223 = vmul.f32 %v2200, %v772
  %v2224 = vmul.f32 %v2203, %v772
  %v2225 = vmul.f32 %v2206, %v772
  %v2226 = vmul.f32 %v2209, %v772
  %v2227 = vmul.f32 %v2212, %v772
  %v2228 = vmul.f32 %v2215, %v772
  %v2229 = vmul.f32 %v2218, %v772
  %v2230 = vmul.f32 %v2221, %v772
  %v2231 = vsub.f32 %v2184, %v2222
  %v2232 = vsub.f32 %v2185, %v2223
  %v2233 = vsub.f32 %v2186, %v2224
  %v2234 = vsub.f32 %v2187, %v2225
  %v2235 = vsub.f32 %v2188, %v2226
  %v2236 = vsub.f32 %v2189, %v2227
  %v2237 = vsub.f32 %v2190, %v2228
  %v2238 = vsub.f32 %v2191, %v2229
  %v2239 = vsub.f32 %v2192, %v2230
  %v2240 = vmul.f32 %v2231, %v2231
  %v2241 = vmul.f32 %v2232, %v2232
  %v2242 = vmul.f32 %v2233, %v2233
  %v2243 = vmul.f32 %v2234, %v2234
  %v2244 = vmul.f32 %v2235, %v2235
  %v2245 = vmul.f32 %v2236, %v2236
  %v2246 = vmul.f32 %v2237, %v2237
  %v2247 = vmul.f32 %v2238, %v2238
  %v2248 = vmul.f32 %v2239, %v2239
  %v2249 = vsel %vm227, %v2240, 0.0
  %2250 = vadd.xlane.f32.xlu0 %v2249
  %v2251 = vpop.xlane.xlu0 %2250
  %v2252 = vsel %vm227, %v2241, 0.0
  %2253 = vadd.xlane.f32.xlu0 %v2252
  %v2254 = vpop.xlane.xlu0 %2253
  %v2255 = vsel %vm227, %v2242, 0.0
  %2256 = vadd.xlane.f32.xlu0 %v2255
  %v2257 = vpop.xlane.xlu0 %2256
  %v2258 = vsel %vm227, %v2243, 0.0
  %2259 = vadd.xlane.f32.xlu0 %v2258
  %v2260 = vpop.xlane.xlu0 %2259
  %v2261 = vsel %vm227, %v2244, 0.0
  %2262 = vadd.xlane.f32.xlu0 %v2261
  %v2263 = vpop.xlane.xlu0 %2262
  %v2264 = vsel %vm227, %v2245, 0.0
  %2265 = vadd.xlane.f32.xlu0 %v2264
  %v2266 = vpop.xlane.xlu0 %2265
  %v2267 = vsel %vm227, %v2246, 0.0
  %2268 = vadd.xlane.f32.xlu0 %v2267
  %v2269 = vpop.xlane.xlu0 %2268
  %v2270 = vsel %vm227, %v2247, 0.0
  %2271 = vadd.xlane.f32.xlu0 %v2270
  %v2272 = vpop.xlane.xlu0 %2271
  %v2273 = vsel %vm768, %v2248, 0.0
  %2274 = vadd.xlane.f32.xlu0 %v2273
  %v2275 = vpop.xlane.xlu0 %2274
  %v2276 = vmul.f32 %v2251, %v772
  %v2277 = vmul.f32 %v2254, %v772
  %v2278 = vmul.f32 %v2257, %v772
  %v2279 = vmul.f32 %v2260, %v772
  %v2280 = vmul.f32 %v2263, %v772
  %v2281 = vmul.f32 %v2266, %v772
  %v2282 = vmul.f32 %v2269, %v772
  %v2283 = vmul.f32 %v2272, %v772
  %v2284 = vmul.f32 %v2275, %v772
  %v2285 = vadd.f32 %v2276, 1e-12
  %v2286 = vadd.f32 %v2277, 1e-12
  %v2287 = vadd.f32 %v2278, 1e-12
  %v2288 = vadd.f32 %v2279, 1e-12
  %v2289 = vadd.f32 %v2280, 1e-12
  %v2290 = vadd.f32 %v2281, 1e-12
  %v2291 = vadd.f32 %v2282, 1e-12
  %v2292 = vadd.f32 %v2283, 1e-12
  %v2293 = vadd.f32 %v2284, 1e-12
  %v2294 = vrsqrt.pop %v2285
  %v2295 = vrsqrt.pop %v2286
  %v2296 = vrsqrt.pop %v2287
  %v2297 = vrsqrt.pop %v2288
  %v2298 = vrsqrt.pop %v2289
  %v2299 = vrsqrt.pop %v2290
  %v2300 = vrsqrt.pop %v2291
  %v2301 = vrsqrt.pop %v2292
  %v2302 = vrsqrt.pop %v2293
  %v2303 = vmul.f32 %v2231, %v2294
  %v2304 = vmul.f32 %v2232, %v2295
  %v2305 = vmul.f32 %v2233, %v2296
  %v2306 = vmul.f32 %v2234, %v2297
  %v2307 = vmul.f32 %v2235, %v2298
  %v2308 = vmul.f32 %v2236, %v2299
  %v2309 = vmul.f32 %v2237, %v2300
  %v2310 = vmul.f32 %v2238, %v2301
  %v2311 = vmul.f32 %v2239, %v2302
  %v2312 = vlaneseq
  %v2313 = vshrl.u32 %v2312, 7
  %v2314 = vsub.s32 0, %v2313
  %v2315 = vrot.slane %v2193, %v2314
  %v2316 = vmul.f32 %v2303, %v2315
  %v2317 = vmul.f32 %v2304, %v2315
  %v2318 = vmul.f32 %v2305, %v2315
  %v2319 = vmul.f32 %v2306, %v2315
  %v2320 = vmul.f32 %v2307, %v2315
  %v2321 = vmul.f32 %v2308, %v2315
  %v2322 = vmul.f32 %v2309, %v2315
  %v2323 = vmul.f32 %v2310, %v2315
  %v2324 = vmul.f32 %v2311, %v2315
  %v2325 = vlaneseq
  %v2326 = vshrl.u32 %v2325, 7
  %v2327 = vsub.s32 0, %v2326
  %v2328 = vrot.slane %v2194, %v2327
  %v2329 = vadd.f32 %v2316, %v2328
  %v2330 = vadd.f32 %v2317, %v2328
  %v2331 = vadd.f32 %v2318, %v2328
  %v2332 = vadd.f32 %v2319, %v2328
  %v2333 = vadd.f32 %v2320, %v2328
  %v2334 = vadd.f32 %v2321, %v2328
  %v2335 = vadd.f32 %v2322, %v2328
  %v2336 = vadd.f32 %v2323, %v2328
  %v2337 = vadd.f32 %v2324, %v2328
  %2338 = vrot.lane.b32.xlu0 %v889, 32
  %v2339 = vpop.permute.xlu0 %2338
  %2340 = vrot.lane.b32.xlu0 %v890, 32
  %v2341 = vpop.permute.xlu0 %2340
  %2342 = vrot.lane.b32.xlu0 %v891, 32
  %v2343 = vpop.permute.xlu0 %2342
  %2344 = vrot.lane.b32.xlu0 %v892, 32
  %v2345 = vpop.permute.xlu0 %2344
  %2346 = vrot.lane.b32.xlu0 %v893, 32
  %v2347 = vpop.permute.xlu0 %2346
  %2348 = vrot.lane.b32.xlu0 %v894, 32
  %v2349 = vpop.permute.xlu0 %2348
  %2350 = vrot.lane.b32.xlu0 %v895, 32
  %v2351 = vpop.permute.xlu0 %2350
  %2352 = vrot.lane.b32.xlu0 %v896, 32
  %v2353 = vpop.permute.xlu0 %2352
  %2354 = vrot.lane.b32.xlu0 %v897, 32
  %v2355 = vpop.permute.xlu0 %2354
  %v2365 = vmul.f32 %v2329, %v2339
  %v2366 = vmul.f32 %v2330, %v2341
  %v2367 = vmul.f32 %v2331, %v2343
  %v2368 = vmul.f32 %v2332, %v2345
  %v2369 = vmul.f32 %v2333, %v2347
  %v2370 = vmul.f32 %v2334, %v2349
  %v2371 = vmul.f32 %v2335, %v2351
  %v2372 = vmul.f32 %v2336, %v2353
  %v2373 = vmul.f32 %v2337, %v2355
  %2383 = vrot.lane.b32.xlu0 %v513, 64
  %v2384 = vpop.permute.xlu0 %2383
  %2385 = vrot.lane.b32.xlu0 %v519, 64
  %v2386 = vpop.permute.xlu0 %2385
  %2387 = vrot.lane.b32.xlu0 %v525, 64
  %v2388 = vpop.permute.xlu0 %2387
  %2389 = vrot.lane.b32.xlu0 %v531, 64
  %v2390 = vpop.permute.xlu0 %2389
  %2391 = vrot.lane.b32.xlu0 %v537, 64
  %v2392 = vpop.permute.xlu0 %2391
  %2393 = vrot.lane.b32.xlu0 %v543, 64
  %v2394 = vpop.permute.xlu0 %2393
  %2395 = vrot.lane.b32.xlu0 %v549, 64
  %v2396 = vpop.permute.xlu0 %2395
  %2397 = vrot.lane.b32.xlu0 %v555, 64
  %v2398 = vpop.permute.xlu0 %2397
  %2399 = vrot.lane.b32.xlu0 %v561, 64
  %v2400 = vpop.permute.xlu0 %2399
  %v2410 = vadd.f32 %v2365, %v2384
  %v2411 = vadd.f32 %v2366, %v2386
  %v2412 = vadd.f32 %v2367, %v2388
  %v2413 = vadd.f32 %v2368, %v2390
  %v2414 = vadd.f32 %v2369, %v2392
  %v2415 = vadd.f32 %v2370, %v2394
  %v2416 = vadd.f32 %v2371, %v2396
  %v2417 = vadd.f32 %v2372, %v2398
  %v2418 = vadd.f32 %v2373, %v2400
  %v2419 = vld [vmem:[%s47] sm:$0xff]
  %v2420 = vld [vmem:[%s47 + $0x8] sm:$0xff]
  %v2421 = vld [vmem:[%s47 + $0x10] sm:$0xff]
  %v2422 = vld [vmem:[%s47 + $0x18] sm:$0xff]
  %v2423 = vld [vmem:[%s49] sm:$0x1]
  %v2424 = vlaneseq
  %v2425 = vshrl.u32 %v2424, 7
  %v2426 = vsub.s32 0, %v2425
  %v2427 = vrot.slane %v2423, %v2426
  %v2429 = vsel %vm227, %v2410, 0
  %v2432 = vsel %vm227, %v2411, 0
  %v2435 = vsel %vm227, %v2412, 0
  %v2438 = vsel %vm227, %v2413, 0
  %v2441 = vsel %vm227, %v2414, 0
  %v2444 = vsel %vm227, %v2415, 0
  %v2447 = vsel %vm227, %v2416, 0
  %v2450 = vsel %vm227, %v2417, 0
  %v2453 = vsel %vm227, %v2418, 0
  %2455 = vmatprep.subr.mxu0 0.0
  %2456 = vmatpush1.msra.mxu0 0.0
  %2457 = vmatprep.subr.mxu0 0.0
  %2458 = vmatpush1.msra.mxu0 0.0
  %2459 = vmatprep.subr.mxu0 0.0
  %2460 = vmatpush1.msra.mxu0 0.0
  %2461 = vmatprep.subr.mxu0 0.0
  %2462 = vmatpush1.msra.mxu0 0.0
  %2463 = vmatprep.subr.mxu0 0.0
  %2464 = vmatpush1.msra.mxu0 0.0
  %2465 = vmatprep.subr.mxu0 0.0
  %2466 = vmatpush1.msra.mxu0 0.0
  %2467 = vmatprep.subr.mxu0 0.0
  %2468 = vmatpush1.msra.mxu0 0.0
  %2469 = vmatprep.subr.mxu0 0.0
  %2470 = vmatpush1.msra.mxu0 0.0
  %2471 = vmatprep.subr.mxu0 0.0
  %2472 = vmatpush1.msra.mxu0 0.0
  %2473 = vmatprep.subr.mxu0 0.0
  %2474 = vmatpush1.msra.mxu0 0.0
  %2475 = vmatprep.subr.mxu0 0.0
  %2476 = vmatpush1.msra.mxu0 0.0
  %2477 = vmatprep.subr.mxu0 0.0
  %2478 = vmatpush1.msra.mxu0 0.0
  %2479 = vmatprep.subr.mxu0 0.0
  %2480 = vmatpush1.msra.mxu0 %v2422
  %2481 = vmatprep.subr.mxu0 0.0
  %2482 = vmatpush1.msra.mxu0 %v2421
  %2483 = vmatprep.subr.mxu0 0.0
  %2484 = vmatpush1.msra.mxu0 %v2420
  %2485 = vmatprep.subr.mxu0 0.0
  %2486 = vmatpush1.msra.mxu0 %v2419
  %2487 = vmatprep.subr.mxu0 0.0
  %2488 = vmatpush2.msra.mxu0 0.0
  %2489 = vmatprep.subr.mxu0 0.0
  %2490 = vmatpush2.msra.mxu0 0.0
  %2491 = vmatprep.subr.mxu0 0.0
  %2492 = vmatpush2.msra.mxu0 0.0
  %2493 = vmatprep.subr.mxu0 0.0
  %2494 = vmatpush2.msra.mxu0 0.0
  %2495 = vmatprep.subr.mxu0 0.0
  %2496 = vmatpush2.msra.mxu0 0.0
  %2497 = vmatprep.subr.mxu0 0.0
  %2498 = vmatpush2.msra.mxu0 0.0
  %2499 = vmatprep.subr.mxu0 0.0
  %2500 = vmatpush2.msra.mxu0 0.0
  %2501 = vmatprep.subr.mxu0 0.0
  %2502 = vmatpush2.msra.mxu0 0.0
  %2503 = vmatprep.subr.mxu0 0.0
  %2504 = vmatpush2.msra.mxu0 0.0
  %2505 = vmatprep.subr.mxu0 0.0
  %2506 = vmatpush2.msra.mxu0 0.0
  %2507 = vmatprep.subr.mxu0 0.0
  %2508 = vmatpush2.msra.mxu0 0.0
  %2509 = vmatprep.subr.mxu0 0.0
  %2510 = vmatpush2.msra.mxu0 0.0
  %2511 = vmatprep.subr.mxu0 0.0
  %2512 = vmatpush2.msra.mxu0 0.0
  %2513 = vmatprep.subr.mxu0 0.0
  %2514 = vmatpush2.msra.mxu0 0.0
  %2515 = vmatprep.subr.mxu0 0.0
  %2516 = vmatpush2.msra.mxu0 0.0
  %2517 = vmatprep.subr.mxu0 0.0
  %2518 = vmatpush2.msra.mxu0 0.0
  %2519 = vmatprep.mubr.f32.mxu0 0.0
  %2520 = vmatmul.mubr.f32.gmra.mxu0 %v2429
  %v2521 = vpop.f32.mrf.mxu0
  %v2522 = vadd.f32 %v2427, %v2521
  %v2523 = vpop.f32.mrf.mxu0
  %2524 = vmatprep.mubr.f32.mxu0 0.0
  %2525 = vmatmul.mubr.f32.gmra.mxu0 %v2432
  %v2526 = vpop.f32.mrf.mxu0
  %v2527 = vadd.f32 %v2427, %v2526
  %v2528 = vpop.f32.mrf.mxu0
  %2529 = vmatprep.mubr.f32.mxu0 0.0
  %2530 = vmatmul.mubr.f32.gmra.mxu0 %v2435
  %v2531 = vpop.f32.mrf.mxu0
  %v2532 = vadd.f32 %v2427, %v2531
  %v2533 = vpop.f32.mrf.mxu0
  %2534 = vmatprep.mubr.f32.mxu0 0.0
  %2535 = vmatmul.mubr.f32.gmra.mxu0 %v2438
  %v2536 = vpop.f32.mrf.mxu0
  %v2537 = vadd.f32 %v2427, %v2536
  %v2538 = vpop.f32.mrf.mxu0
  %2539 = vmatprep.mubr.f32.mxu0 0.0
  %2540 = vmatmul.mubr.f32.gmra.mxu0 %v2441
  %v2541 = vpop.f32.mrf.mxu0
  %v2542 = vadd.f32 %v2427, %v2541
  %v2543 = vpop.f32.mrf.mxu0
  %2544 = vmatprep.mubr.f32.mxu0 0.0
  %2545 = vmatmul.mubr.f32.gmra.mxu0 %v2444
  %v2546 = vpop.f32.mrf.mxu0
  %v2547 = vadd.f32 %v2427, %v2546
  %v2548 = vpop.f32.mrf.mxu0
  %2549 = vmatprep.mubr.f32.mxu0 0.0
  %2550 = vmatmul.mubr.f32.gmra.mxu0 %v2447
  %v2551 = vpop.f32.mrf.mxu0
  %v2552 = vadd.f32 %v2427, %v2551
  %v2553 = vpop.f32.mrf.mxu0
  %2554 = vmatprep.mubr.f32.mxu0 0.0
  %2555 = vmatmul.mubr.f32.gmra.mxu0 %v2450
  %v2556 = vpop.f32.mrf.mxu0
  %v2557 = vadd.f32 %v2427, %v2556
  %v2558 = vpop.f32.mrf.mxu0
  %2559 = vmatprep.mubr.f32.mxu0 0.0
  %2560 = vmatmul.mubr.f32.gmra.mxu0 %v2453
  %v2561 = vpop.f32.mrf.mxu0
  %v2562 = vadd.f32 %v2427, %v2561
  %v2563 = vpop.f32.mrf.mxu0
  %2564 = vdwg.mxu0
  %v2565 = vmul.f32 %v2522, %v2522
  %v2566 = vmul.f32 %v2527, %v2527
  %v2567 = vmul.f32 %v2532, %v2532
  %v2568 = vmul.f32 %v2537, %v2537
  %v2569 = vmul.f32 %v2542, %v2542
  %v2570 = vmul.f32 %v2547, %v2547
  %v2571 = vmul.f32 %v2552, %v2552
  %v2572 = vmul.f32 %v2557, %v2557
  %v2573 = vmul.f32 %v2562, %v2562
  %v2574 = vmul.f32 %v2522, %v2565
  %v2575 = vmul.f32 %v2527, %v2566
  %v2576 = vmul.f32 %v2532, %v2567
  %v2577 = vmul.f32 %v2537, %v2568
  %v2578 = vmul.f32 %v2542, %v2569
  %v2579 = vmul.f32 %v2547, %v2570
  %v2580 = vmul.f32 %v2552, %v2571
  %v2581 = vmul.f32 %v2557, %v2572
  %v2582 = vmul.f32 %v2562, %v2573
  %v2583 = vmul.f32 %v2574, 0.044715
  %v2584 = vmul.f32 %v2575, 0.044715
  %v2585 = vmul.f32 %v2576, 0.044715
  %v2586 = vmul.f32 %v2577, 0.044715
  %v2587 = vmul.f32 %v2578, 0.044715
  %v2588 = vmul.f32 %v2579, 0.044715
  %v2589 = vmul.f32 %v2580, 0.044715
  %v2590 = vmul.f32 %v2581, 0.044715
  %v2591 = vmul.f32 %v2582, 0.044715
  %v2592 = vadd.f32 %v2522, %v2583
  %v2593 = vadd.f32 %v2527, %v2584
  %v2594 = vadd.f32 %v2532, %v2585
  %v2595 = vadd.f32 %v2537, %v2586
  %v2596 = vadd.f32 %v2542, %v2587
  %v2597 = vadd.f32 %v2547, %v2588
  %v2598 = vadd.f32 %v2552, %v2589
  %v2599 = vadd.f32 %v2557, %v2590
  %v2600 = vadd.f32 %v2562, %v2591
  %v2601 = vmul.f32 %v2592, 0.7978846
  %v2602 = vmul.f32 %v2593, 0.7978846
  %v2603 = vmul.f32 %v2594, 0.7978846
  %v2604 = vmul.f32 %v2595, 0.7978846
  %v2605 = vmul.f32 %v2596, 0.7978846
  %v2606 = vmul.f32 %v2597, 0.7978846
  %v2607 = vmul.f32 %v2598, 0.7978846
  %v2608 = vmul.f32 %v2599, 0.7978846
  %v2609 = vmul.f32 %v2600, 0.7978846
  %v2610 = vtanh.pop %v2601
  %v2611 = vtanh.pop %v2602
  %v2612 = vtanh.pop %v2603
  %v2613 = vtanh.pop %v2604
  %v2614 = vtanh.pop %v2605
  %v2615 = vtanh.pop %v2606
  %v2616 = vtanh.pop %v2607
  %v2617 = vtanh.pop %v2608
  %v2618 = vtanh.pop %v2609
  %v2619 = vadd.f32 %v2610, 1.0
  %v2620 = vadd.f32 %v2611, 1.0
  %v2621 = vadd.f32 %v2612, 1.0
  %v2622 = vadd.f32 %v2613, 1.0
  %v2623 = vadd.f32 %v2614, 1.0
  %v2624 = vadd.f32 %v2615, 1.0
  %v2625 = vadd.f32 %v2616, 1.0
  %v2626 = vadd.f32 %v2617, 1.0
  %v2627 = vadd.f32 %v2618, 1.0
  %v2628 = vmul.f32 %v2619, 0.5
  %v2629 = vmul.f32 %v2620, 0.5
  %v2630 = vmul.f32 %v2621, 0.5
  %v2631 = vmul.f32 %v2622, 0.5
  %v2632 = vmul.f32 %v2623, 0.5
  %v2633 = vmul.f32 %v2624, 0.5
  %v2634 = vmul.f32 %v2625, 0.5
  %v2635 = vmul.f32 %v2626, 0.5
  %v2636 = vmul.f32 %v2627, 0.5
  %v2637 = vmul.f32 %v2522, %v2628
  %v2638 = vmul.f32 %v2527, %v2629
  %v2639 = vmul.f32 %v2532, %v2630
  %v2640 = vmul.f32 %v2537, %v2631
  %v2641 = vmul.f32 %v2542, %v2632
  %v2642 = vmul.f32 %v2547, %v2633
  %v2643 = vmul.f32 %v2552, %v2634
  %v2644 = vmul.f32 %v2557, %v2635
  %v2645 = vmul.f32 %v2562, %v2636
  %v2646 = vld [vmem:[%s51] sm:$0xff]
  %v2647 = vld [vmem:[%s51 + $0x8] sm:$0xff]
  %v2648 = vld [vmem:[%s51 + $0x10] sm:$0xff]
  %v2649 = vld [vmem:[%s51 + $0x18] sm:$0xff]
  %v2650 = vld [vmem:[%s51 + $0x20] sm:$0xff]
  %v2651 = vld [vmem:[%s51 + $0x28] sm:$0xff]
  %v2652 = vld [vmem:[%s51 + $0x30] sm:$0xff]
  %v2653 = vld [vmem:[%s51 + $0x38] sm:$0xff]
  %v2654 = vld [vmem:[%s51 + $0x40] sm:$0xff]
  %v2655 = vld [vmem:[%s51 + $0x48] sm:$0xff]
  %v2656 = vld [vmem:[%s51 + $0x50] sm:$0xff]
  %v2657 = vld [vmem:[%s51 + $0x58] sm:$0xff]
  %v2658 = vld [vmem:[%s51 + $0x60] sm:$0xff]
  %v2659 = vld [vmem:[%s51 + $0x68] sm:$0xff]
  %v2660 = vld [vmem:[%s51 + $0x70] sm:$0xff]
  %v2661 = vld [vmem:[%s51 + $0x78] sm:$0xff]
  %2662 = vmatprep.subr.mxu0 0.0
  %2663 = vmatpush1.msra.mxu0 %v2661
  %2664 = vmatprep.subr.mxu0 0.0
  %2665 = vmatpush1.msra.mxu0 %v2660
  %2666 = vmatprep.subr.mxu0 0.0
  %2667 = vmatpush1.msra.mxu0 %v2659
  %2668 = vmatprep.subr.mxu0 0.0
  %2669 = vmatpush1.msra.mxu0 %v2658
  %2670 = vmatprep.subr.mxu0 0.0
  %2671 = vmatpush1.msra.mxu0 %v2657
  %2672 = vmatprep.subr.mxu0 0.0
  %2673 = vmatpush1.msra.mxu0 %v2656
  %2674 = vmatprep.subr.mxu0 0.0
  %2675 = vmatpush1.msra.mxu0 %v2655
  %2676 = vmatprep.subr.mxu0 0.0
  %2677 = vmatpush1.msra.mxu0 %v2654
  %2678 = vmatprep.subr.mxu0 0.0
  %2679 = vmatpush1.msra.mxu0 %v2653
  %2680 = vmatprep.subr.mxu0 0.0
  %2681 = vmatpush1.msra.mxu0 %v2652
  %2682 = vmatprep.subr.mxu0 0.0
  %2683 = vmatpush1.msra.mxu0 %v2651
  %2684 = vmatprep.subr.mxu0 0.0
  %2685 = vmatpush1.msra.mxu0 %v2650
  %2686 = vmatprep.subr.mxu0 0.0
  %2687 = vmatpush1.msra.mxu0 %v2649
  %2688 = vmatprep.subr.mxu0 0.0
  %2689 = vmatpush1.msra.mxu0 %v2648
  %2690 = vmatprep.subr.mxu0 0.0
  %2691 = vmatpush1.msra.mxu0 %v2647
  %2692 = vmatprep.subr.mxu0 0.0
  %2693 = vmatpush1.msra.mxu0 %v2646
  %2694 = vmatprep.subr.mxu0 0.0
  %2695 = vmatpush2.msra.mxu0 0.0
  %2696 = vmatprep.subr.mxu0 0.0
  %2697 = vmatpush2.msra.mxu0 0.0
  %2698 = vmatprep.subr.mxu0 0.0
  %2699 = vmatpush2.msra.mxu0 0.0
  %2700 = vmatprep.subr.mxu0 0.0
  %2701 = vmatpush2.msra.mxu0 0.0
  %2702 = vmatprep.subr.mxu0 0.0
  %2703 = vmatpush2.msra.mxu0 0.0
  %2704 = vmatprep.subr.mxu0 0.0
  %2705 = vmatpush2.msra.mxu0 0.0
  %2706 = vmatprep.subr.mxu0 0.0
  %2707 = vmatpush2.msra.mxu0 0.0
  %2708 = vmatprep.subr.mxu0 0.0
  %2709 = vmatpush2.msra.mxu0 0.0
  %2710 = vmatprep.subr.mxu0 0.0
  %2711 = vmatpush2.msra.mxu0 0.0
  %2712 = vmatprep.subr.mxu0 0.0
  %2713 = vmatpush2.msra.mxu0 0.0
  %2714 = vmatprep.subr.mxu0 0.0
  %2715 = vmatpush2.msra.mxu0 0.0
  %2716 = vmatprep.subr.mxu0 0.0
  %2717 = vmatpush2.msra.mxu0 0.0
  %2718 = vmatprep.subr.mxu0 0.0
  %2719 = vmatpush2.msra.mxu0 0.0
  %2720 = vmatprep.subr.mxu0 0.0
  %2721 = vmatpush2.msra.mxu0 0.0
  %2722 = vmatprep.subr.mxu0 0.0
  %2723 = vmatpush2.msra.mxu0 0.0
  %2724 = vmatprep.subr.mxu0 0.0
  %2725 = vmatpush2.msra.mxu0 0.0
  %2726 = vmatprep.mubr.f32.mxu0 0.0
  %2727 = vmatmul.mubr.f32.gmra.mxu0 %v2637
  %v2728 = vpop.f32.mrf.mxu0
  %v2729 = vadd.f32 0.0, %v2728
  %v2730 = vpop.f32.mrf.mxu0
  %2731 = vmatprep.mubr.f32.mxu0 0.0
  %2732 = vmatmul.mubr.f32.gmra.mxu0 %v2638
  %v2733 = vpop.f32.mrf.mxu0
  %v2734 = vadd.f32 0.0, %v2733
  %v2735 = vpop.f32.mrf.mxu0
  %2736 = vmatprep.mubr.f32.mxu0 0.0
  %2737 = vmatmul.mubr.f32.gmra.mxu0 %v2639
  %v2738 = vpop.f32.mrf.mxu0
  %v2739 = vadd.f32 0.0, %v2738
  %v2740 = vpop.f32.mrf.mxu0
  %2741 = vmatprep.mubr.f32.mxu0 0.0
  %2742 = vmatmul.mubr.f32.gmra.mxu0 %v2640
  %v2743 = vpop.f32.mrf.mxu0
  %v2744 = vadd.f32 0.0, %v2743
  %v2745 = vpop.f32.mrf.mxu0
  %2746 = vmatprep.mubr.f32.mxu0 0.0
  %2747 = vmatmul.mubr.f32.gmra.mxu0 %v2641
  %v2748 = vpop.f32.mrf.mxu0
  %v2749 = vadd.f32 0.0, %v2748
  %v2750 = vpop.f32.mrf.mxu0
  %2751 = vmatprep.mubr.f32.mxu0 0.0
  %2752 = vmatmul.mubr.f32.gmra.mxu0 %v2642
  %v2753 = vpop.f32.mrf.mxu0
  %v2754 = vadd.f32 0.0, %v2753
  %v2755 = vpop.f32.mrf.mxu0
  %2756 = vmatprep.mubr.f32.mxu0 0.0
  %2757 = vmatmul.mubr.f32.gmra.mxu0 %v2643
  %v2758 = vpop.f32.mrf.mxu0
  %v2759 = vadd.f32 0.0, %v2758
  %v2760 = vpop.f32.mrf.mxu0
  %2761 = vmatprep.mubr.f32.mxu0 0.0
  %2762 = vmatmul.mubr.f32.gmra.mxu0 %v2644
  %v2763 = vpop.f32.mrf.mxu0
  %v2764 = vadd.f32 0.0, %v2763
  %v2765 = vpop.f32.mrf.mxu0
  %2766 = vmatprep.mubr.f32.mxu0 0.0
  %2767 = vmatmul.mubr.f32.gmra.mxu0 %v2645
  %v2768 = vpop.f32.mrf.mxu0
  %v2769 = vadd.f32 0.0, %v2768
  %v2770 = vpop.f32.mrf.mxu0
  %2771 = vdwg.mxu0
  %v2772 = vadd.f32 %v2184, %v2729
  %v2773 = vadd.f32 %v2185, %v2734
  %v2774 = vadd.f32 %v2186, %v2739
  %v2775 = vadd.f32 %v2187, %v2744
  %v2776 = vadd.f32 %v2188, %v2749
  %v2777 = vadd.f32 %v2189, %v2754
  %v2778 = vadd.f32 %v2190, %v2759
  %v2779 = vadd.f32 %v2191, %v2764
  %v2780 = vadd.f32 %v2192, %v2769
  %v2781 = vld [vmem:[%s53] sm:$0x1]
  %v2782 = vlaneseq
  %v2783 = vshrl.u32 %v2782, 7
  %v2784 = vsub.s32 0, %v2783
  %v2785 = vrot.slane %v2781, %v2784
  %v2786 = vadd.f32 %v2772, %v2785
  %v2787 = vadd.f32 %v2773, %v2785
  %v2788 = vadd.f32 %v2774, %v2785
  %v2789 = vadd.f32 %v2775, %v2785
  %v2790 = vadd.f32 %v2776, %v2785
  %v2791 = vadd.f32 %v2777, %v2785
  %v2792 = vadd.f32 %v2778, %v2785
  %v2793 = vadd.f32 %v2779, %v2785
  %v2794 = vadd.f32 %v2780, %v2785
  %v2795 = vld [vmem:[%s31 + $0x1] sm:$0x1]
  %v2796 = vld [vmem:[%s33 + $0x1] sm:$0x1]
  %v2797 = vsel %vm227, %v2786, 0.0
  %2798 = vadd.xlane.f32.xlu0 %v2797
  %v2799 = vpop.xlane.xlu0 %2798
  %v2800 = vsel %vm227, %v2787, 0.0
  %2801 = vadd.xlane.f32.xlu0 %v2800
  %v2802 = vpop.xlane.xlu0 %2801
  %v2803 = vsel %vm227, %v2788, 0.0
  %2804 = vadd.xlane.f32.xlu0 %v2803
  %v2805 = vpop.xlane.xlu0 %2804
  %v2806 = vsel %vm227, %v2789, 0.0
  %2807 = vadd.xlane.f32.xlu0 %v2806
  %v2808 = vpop.xlane.xlu0 %2807
  %v2809 = vsel %vm227, %v2790, 0.0
  %2810 = vadd.xlane.f32.xlu0 %v2809
  %v2811 = vpop.xlane.xlu0 %2810
  %v2812 = vsel %vm227, %v2791, 0.0
  %2813 = vadd.xlane.f32.xlu0 %v2812
  %v2814 = vpop.xlane.xlu0 %2813
  %v2815 = vsel %vm227, %v2792, 0.0
  %2816 = vadd.xlane.f32.xlu0 %v2815
  %v2817 = vpop.xlane.xlu0 %2816
  %v2818 = vsel %vm227, %v2793, 0.0
  %2819 = vadd.xlane.f32.xlu0 %v2818
  %v2820 = vpop.xlane.xlu0 %2819
  %v2821 = vsel %vm768, %v2794, 0.0
  %2822 = vadd.xlane.f32.xlu0 %v2821
  %v2823 = vpop.xlane.xlu0 %2822
  %v2824 = vmul.f32 %v2799, %v772
  %v2825 = vmul.f32 %v2802, %v772
  %v2826 = vmul.f32 %v2805, %v772
  %v2827 = vmul.f32 %v2808, %v772
  %v2828 = vmul.f32 %v2811, %v772
  %v2829 = vmul.f32 %v2814, %v772
  %v2830 = vmul.f32 %v2817, %v772
  %v2831 = vmul.f32 %v2820, %v772
  %v2832 = vmul.f32 %v2823, %v772
  %v2833 = vsub.f32 %v2786, %v2824
  %v2834 = vsub.f32 %v2787, %v2825
  %v2835 = vsub.f32 %v2788, %v2826
  %v2836 = vsub.f32 %v2789, %v2827
  %v2837 = vsub.f32 %v2790, %v2828
  %v2838 = vsub.f32 %v2791, %v2829
  %v2839 = vsub.f32 %v2792, %v2830
  %v2840 = vsub.f32 %v2793, %v2831
  %v2841 = vsub.f32 %v2794, %v2832
  %v2842 = vmul.f32 %v2833, %v2833
  %v2843 = vmul.f32 %v2834, %v2834
  %v2844 = vmul.f32 %v2835, %v2835
  %v2845 = vmul.f32 %v2836, %v2836
  %v2846 = vmul.f32 %v2837, %v2837
  %v2847 = vmul.f32 %v2838, %v2838
  %v2848 = vmul.f32 %v2839, %v2839
  %v2849 = vmul.f32 %v2840, %v2840
  %v2850 = vmul.f32 %v2841, %v2841
  %v2851 = vsel %vm227, %v2842, 0.0
  %2852 = vadd.xlane.f32.xlu0 %v2851
  %v2853 = vpop.xlane.xlu0 %2852
  %v2854 = vsel %vm227, %v2843, 0.0
  %2855 = vadd.xlane.f32.xlu0 %v2854
  %v2856 = vpop.xlane.xlu0 %2855
  %v2857 = vsel %vm227, %v2844, 0.0
  %2858 = vadd.xlane.f32.xlu0 %v2857
  %v2859 = vpop.xlane.xlu0 %2858
  %v2860 = vsel %vm227, %v2845, 0.0
  %2861 = vadd.xlane.f32.xlu0 %v2860
  %v2862 = vpop.xlane.xlu0 %2861
  %v2863 = vsel %vm227, %v2846, 0.0
  %2864 = vadd.xlane.f32.xlu0 %v2863
  %v2865 = vpop.xlane.xlu0 %2864
  %v2866 = vsel %vm227, %v2847, 0.0
  %2867 = vadd.xlane.f32.xlu0 %v2866
  %v2868 = vpop.xlane.xlu0 %2867
  %v2869 = vsel %vm227, %v2848, 0.0
  %2870 = vadd.xlane.f32.xlu0 %v2869
  %v2871 = vpop.xlane.xlu0 %2870
  %v2872 = vsel %vm227, %v2849, 0.0
  %2873 = vadd.xlane.f32.xlu0 %v2872
  %v2874 = vpop.xlane.xlu0 %2873
  %v2875 = vsel %vm768, %v2850, 0.0
  %2876 = vadd.xlane.f32.xlu0 %v2875
  %v2877 = vpop.xlane.xlu0 %2876
  %v2878 = vmul.f32 %v2853, %v772
  %v2879 = vmul.f32 %v2856, %v772
  %v2880 = vmul.f32 %v2859, %v772
  %v2881 = vmul.f32 %v2862, %v772
  %v2882 = vmul.f32 %v2865, %v772
  %v2883 = vmul.f32 %v2868, %v772
  %v2884 = vmul.f32 %v2871, %v772
  %v2885 = vmul.f32 %v2874, %v772
  %v2886 = vmul.f32 %v2877, %v772
  %v2887 = vadd.f32 %v2878, 1e-12
  %v2888 = vadd.f32 %v2879, 1e-12
  %v2889 = vadd.f32 %v2880, 1e-12
  %v2890 = vadd.f32 %v2881, 1e-12
  %v2891 = vadd.f32 %v2882, 1e-12
  %v2892 = vadd.f32 %v2883, 1e-12
  %v2893 = vadd.f32 %v2884, 1e-12
  %v2894 = vadd.f32 %v2885, 1e-12
  %v2895 = vadd.f32 %v2886, 1e-12
  %v2896 = vrsqrt.pop %v2887
  %v2897 = vrsqrt.pop %v2888
  %v2898 = vrsqrt.pop %v2889
  %v2899 = vrsqrt.pop %v2890
  %v2900 = vrsqrt.pop %v2891
  %v2901 = vrsqrt.pop %v2892
  %v2902 = vrsqrt.pop %v2893
  %v2903 = vrsqrt.pop %v2894
  %v2904 = vrsqrt.pop %v2895
  %v2905 = vmul.f32 %v2833, %v2896
  %v2906 = vmul.f32 %v2834, %v2897
  %v2907 = vmul.f32 %v2835, %v2898
  %v2908 = vmul.f32 %v2836, %v2899
  %v2909 = vmul.f32 %v2837, %v2900
  %v2910 = vmul.f32 %v2838, %v2901
  %v2911 = vmul.f32 %v2839, %v2902
  %v2912 = vmul.f32 %v2840, %v2903
  %v2913 = vmul.f32 %v2841, %v2904
  %v2914 = vlaneseq
  %v2915 = vshrl.u32 %v2914, 7
  %v2916 = vsub.s32 0, %v2915
  %v2917 = vrot.slane %v2795, %v2916
  %v2918 = vmul.f32 %v2905, %v2917
  %v2919 = vmul.f32 %v2906, %v2917
  %v2920 = vmul.f32 %v2907, %v2917
  %v2921 = vmul.f32 %v2908, %v2917
  %v2922 = vmul.f32 %v2909, %v2917
  %v2923 = vmul.f32 %v2910, %v2917
  %v2924 = vmul.f32 %v2911, %v2917
  %v2925 = vmul.f32 %v2912, %v2917
  %v2926 = vmul.f32 %v2913, %v2917
  %v2927 = vlaneseq
  %v2928 = vshrl.u32 %v2927, 7
  %v2929 = vsub.s32 0, %v2928
  %v2930 = vrot.slane %v2796, %v2929
  %v2931 = vadd.f32 %v2918, %v2930
  %v2932 = vadd.f32 %v2919, %v2930
  %v2933 = vadd.f32 %v2920, %v2930
  %v2934 = vadd.f32 %v2921, %v2930
  %v2935 = vadd.f32 %v2922, %v2930
  %v2936 = vadd.f32 %v2923, %v2930
  %v2937 = vadd.f32 %v2924, %v2930
  %v2938 = vadd.f32 %v2925, %v2930
  %v2939 = vadd.f32 %v2926, %v2930
  %v2940 = vadd.f32 %v515, 1.0
  %v2941 = vadd.f32 %v521, 1.0
  %v2942 = vadd.f32 %v527, 1.0
  %v2943 = vadd.f32 %v533, 1.0
  %v2944 = vadd.f32 %v539, 1.0
  %v2945 = vadd.f32 %v545, 1.0
  %v2946 = vadd.f32 %v551, 1.0
  %v2947 = vadd.f32 %v557, 1.0
  %v2948 = vadd.f32 %v563, 1.0
  %2958 = vrot.lane.b32.xlu0 %v2940, 96
  %v2959 = vpop.permute.xlu0 %2958
  %2960 = vrot.lane.b32.xlu0 %v2941, 96
  %v2961 = vpop.permute.xlu0 %2960
  %2962 = vrot.lane.b32.xlu0 %v2942, 96
  %v2963 = vpop.permute.xlu0 %2962
  %2964 = vrot.lane.b32.xlu0 %v2943, 96
  %v2965 = vpop.permute.xlu0 %2964
  %2966 = vrot.lane.b32.xlu0 %v2944, 96
  %v2967 = vpop.permute.xlu0 %2966
  %2968 = vrot.lane.b32.xlu0 %v2945, 96
  %v2969 = vpop.permute.xlu0 %2968
  %2970 = vrot.lane.b32.xlu0 %v2946, 96
  %v2971 = vpop.permute.xlu0 %2970
  %2972 = vrot.lane.b32.xlu0 %v2947, 96
  %v2973 = vpop.permute.xlu0 %2972
  %2974 = vrot.lane.b32.xlu0 %v2948, 96
  %v2975 = vpop.permute.xlu0 %2974
  %v2985 = vmul.f32 %v2931, %v2959
  %v2986 = vmul.f32 %v2932, %v2961
  %v2987 = vmul.f32 %v2933, %v2963
  %v2988 = vmul.f32 %v2934, %v2965
  %v2989 = vmul.f32 %v2935, %v2967
  %v2990 = vmul.f32 %v2936, %v2969
  %v2991 = vmul.f32 %v2937, %v2971
  %v2992 = vmul.f32 %v2938, %v2973
  %v2993 = vmul.f32 %v2939, %v2975
  %v2994 = vadd.f32 %v2985, %v515
  %v2995 = vadd.f32 %v2986, %v521
  %v2996 = vadd.f32 %v2987, %v527
  %v2997 = vadd.f32 %v2988, %v533
  %v2998 = vadd.f32 %v2989, %v539
  %v2999 = vadd.f32 %v2990, %v545
  %v3000 = vadd.f32 %v2991, %v551
  %v3001 = vadd.f32 %v2992, %v557
  %v3002 = vadd.f32 %v2993, %v563
  %s3003 = scalar_lea.vmem %s35, 32
  %v3004 = vld [vmem:[%s3003] sm:$0xff]
  %v3005 = vld [vmem:[%s3003 + $0x8] sm:$0xff]
  %v3006 = vld [vmem:[%s3003 + $0x10] sm:$0xff]
  %v3007 = vld [vmem:[%s3003 + $0x18] sm:$0xff]
  %v3008 = vld [vmem:[%s37 + $0x1] sm:$0x1]
  %v3009 = vlaneseq
  %v3010 = vshrl.u32 %v3009, 7
  %v3011 = vsub.s32 0, %v3010
  %v3012 = vrot.slane %v3008, %v3011
  %v3014 = vsel %vm227, %v2994, 0
  %v3017 = vsel %vm227, %v2995, 0
  %v3020 = vsel %vm227, %v2996, 0
  %v3023 = vsel %vm227, %v2997, 0
  %v3026 = vsel %vm227, %v2998, 0
  %v3029 = vsel %vm227, %v2999, 0
  %v3032 = vsel %vm227, %v3000, 0
  %v3035 = vsel %vm227, %v3001, 0
  %v3038 = vsel %vm227, %v3002, 0
  %3040 = vmatprep.subr.mxu0 0.0
  %3041 = vmatpush1.msra.mxu0 0.0
  %3042 = vmatprep.subr.mxu0 0.0
  %3043 = vmatpush1.msra.mxu0 0.0
  %3044 = vmatprep.subr.mxu0 0.0
  %3045 = vmatpush1.msra.mxu0 0.0
  %3046 = vmatprep.subr.mxu0 0.0
  %3047 = vmatpush1.msra.mxu0 0.0
  %3048 = vmatprep.subr.mxu0 0.0
  %3049 = vmatpush1.msra.mxu0 0.0
  %3050 = vmatprep.subr.mxu0 0.0
  %3051 = vmatpush1.msra.mxu0 0.0
  %3052 = vmatprep.subr.mxu0 0.0
  %3053 = vmatpush1.msra.mxu0 0.0
  %3054 = vmatprep.subr.mxu0 0.0
  %3055 = vmatpush1.msra.mxu0 0.0
  %3056 = vmatprep.subr.mxu0 0.0
  %3057 = vmatpush1.msra.mxu0 0.0
  %3058 = vmatprep.subr.mxu0 0.0
  %3059 = vmatpush1.msra.mxu0 0.0
  %3060 = vmatprep.subr.mxu0 0.0
  %3061 = vmatpush1.msra.mxu0 0.0
  %3062 = vmatprep.subr.mxu0 0.0
  %3063 = vmatpush1.msra.mxu0 0.0
  %3064 = vmatprep.subr.mxu0 0.0
  %3065 = vmatpush1.msra.mxu0 %v3007
  %3066 = vmatprep.subr.mxu0 0.0
  %3067 = vmatpush1.msra.mxu0 %v3006
  %3068 = vmatprep.subr.mxu0 0.0
  %3069 = vmatpush1.msra.mxu0 %v3005
  %3070 = vmatprep.subr.mxu0 0.0
  %3071 = vmatpush1.msra.mxu0 %v3004
  %3072 = vmatprep.subr.mxu0 0.0
  %3073 = vmatpush2.msra.mxu0 0.0
  %3074 = vmatprep.subr.mxu0 0.0
  %3075 = vmatpush2.msra.mxu0 0.0
  %3076 = vmatprep.subr.mxu0 0.0
  %3077 = vmatpush2.msra.mxu0 0.0
  %3078 = vmatprep.subr.mxu0 0.0
  %3079 = vmatpush2.msra.mxu0 0.0
  %3080 = vmatprep.subr.mxu0 0.0
  %3081 = vmatpush2.msra.mxu0 0.0
  %3082 = vmatprep.subr.mxu0 0.0
  %3083 = vmatpush2.msra.mxu0 0.0
  %3084 = vmatprep.subr.mxu0 0.0
  %3085 = vmatpush2.msra.mxu0 0.0
  %3086 = vmatprep.subr.mxu0 0.0
  %3087 = vmatpush2.msra.mxu0 0.0
  %3088 = vmatprep.subr.mxu0 0.0
  %3089 = vmatpush2.msra.mxu0 0.0
  %3090 = vmatprep.subr.mxu0 0.0
  %3091 = vmatpush2.msra.mxu0 0.0
  %3092 = vmatprep.subr.mxu0 0.0
  %3093 = vmatpush2.msra.mxu0 0.0
  %3094 = vmatprep.subr.mxu0 0.0
  %3095 = vmatpush2.msra.mxu0 0.0
  %3096 = vmatprep.subr.mxu0 0.0
  %3097 = vmatpush2.msra.mxu0 0.0
  %3098 = vmatprep.subr.mxu0 0.0
  %3099 = vmatpush2.msra.mxu0 0.0
  %3100 = vmatprep.subr.mxu0 0.0
  %3101 = vmatpush2.msra.mxu0 0.0
  %3102 = vmatprep.subr.mxu0 0.0
  %3103 = vmatpush2.msra.mxu0 0.0
  %3104 = vmatprep.mubr.f32.mxu0 0.0
  %3105 = vmatmul.mubr.f32.gmra.mxu0 %v3014
  %v3106 = vpop.f32.mrf.mxu0
  %v3107 = vadd.f32 %v3012, %v3106
  %v3108 = vpop.f32.mrf.mxu0
  %3109 = vmatprep.mubr.f32.mxu0 0.0
  %3110 = vmatmul.mubr.f32.gmra.mxu0 %v3017
  %v3111 = vpop.f32.mrf.mxu0
  %v3112 = vadd.f32 %v3012, %v3111
  %v3113 = vpop.f32.mrf.mxu0
  %3114 = vmatprep.mubr.f32.mxu0 0.0
  %3115 = vmatmul.mubr.f32.gmra.mxu0 %v3020
  %v3116 = vpop.f32.mrf.mxu0
  %v3117 = vadd.f32 %v3012, %v3116
  %v3118 = vpop.f32.mrf.mxu0
  %3119 = vmatprep.mubr.f32.mxu0 0.0
  %3120 = vmatmul.mubr.f32.gmra.mxu0 %v3023
  %v3121 = vpop.f32.mrf.mxu0
  %v3122 = vadd.f32 %v3012, %v3121
  %v3123 = vpop.f32.mrf.mxu0
  %3124 = vmatprep.mubr.f32.mxu0 0.0
  %3125 = vmatmul.mubr.f32.gmra.mxu0 %v3026
  %v3126 = vpop.f32.mrf.mxu0
  %v3127 = vadd.f32 %v3012, %v3126
  %v3128 = vpop.f32.mrf.mxu0
  %3129 = vmatprep.mubr.f32.mxu0 0.0
  %3130 = vmatmul.mubr.f32.gmra.mxu0 %v3029
  %v3131 = vpop.f32.mrf.mxu0
  %v3132 = vadd.f32 %v3012, %v3131
  %v3133 = vpop.f32.mrf.mxu0
  %3134 = vmatprep.mubr.f32.mxu0 0.0
  %3135 = vmatmul.mubr.f32.gmra.mxu0 %v3032
  %v3136 = vpop.f32.mrf.mxu0
  %v3137 = vadd.f32 %v3012, %v3136
  %v3138 = vpop.f32.mrf.mxu0
  %3139 = vmatprep.mubr.f32.mxu0 0.0
  %3140 = vmatmul.mubr.f32.gmra.mxu0 %v3035
  %v3141 = vpop.f32.mrf.mxu0
  %v3142 = vadd.f32 %v3012, %v3141
  %v3143 = vpop.f32.mrf.mxu0
  %3144 = vmatprep.mubr.f32.mxu0 0.0
  %3145 = vmatmul.mubr.f32.gmra.mxu0 %v3038
  %v3146 = vpop.f32.mrf.mxu0
  %v3147 = vadd.f32 %v3012, %v3146
  %v3148 = vpop.f32.mrf.mxu0
  %3149 = vdwg.mxu0
  %3159 = vrot.lane.b32.xlu0 %v3107, 96
  %v3160 = vpop.permute.xlu0 %3159
  %3161 = vrot.lane.b32.xlu0 %v3112, 96
  %v3162 = vpop.permute.xlu0 %3161
  %3163 = vrot.lane.b32.xlu0 %v3117, 96
  %v3164 = vpop.permute.xlu0 %3163
  %3165 = vrot.lane.b32.xlu0 %v3122, 96
  %v3166 = vpop.permute.xlu0 %3165
  %3167 = vrot.lane.b32.xlu0 %v3127, 96
  %v3168 = vpop.permute.xlu0 %3167
  %3169 = vrot.lane.b32.xlu0 %v3132, 96
  %v3170 = vpop.permute.xlu0 %3169
  %3171 = vrot.lane.b32.xlu0 %v3137, 96
  %v3172 = vpop.permute.xlu0 %3171
  %3173 = vrot.lane.b32.xlu0 %v3142, 96
  %v3174 = vpop.permute.xlu0 %3173
  %3175 = vrot.lane.b32.xlu0 %v3147, 96
  %v3176 = vpop.permute.xlu0 %3175
  %v3177 = vsel %vm1125, %v3107, 0
  %v3179 = vsel %vm1125, %v3112, 0
  %v3181 = vsel %vm1125, %v3117, 0
  %v3183 = vsel %vm1125, %v3122, 0
  %v3185 = vsel %vm1125, %v3127, 0
  %v3187 = vsel %vm1125, %v3132, 0
  %v3189 = vsel %vm1125, %v3137, 0
  %v3191 = vsel %vm1125, %v3142, 0
  %v3193 = vsel %vm1125, %v3147, 0
  %v3195 = vsel %vm1125, %v3160, 0
  %v3197 = vsel %vm1125, %v3162, 0
  %v3199 = vsel %vm1125, %v3164, 0
  %v3201 = vsel %vm1125, %v3166, 0
  %v3203 = vsel %vm1125, %v3168, 0
  %v3205 = vsel %vm1125, %v3170, 0
  %v3207 = vsel %vm1125, %v3172, 0
  %v3209 = vsel %vm1125, %v3174, 0
  %v3211 = vsel %vm1125, %v3176, 0
  %3213 = vmatprep.subr.mxu0 0.0
  %3214 = vmatpush1.xpose.msra.mxu0 0.0
  %3215 = vmatprep.subr.mxu0 0.0
  %3216 = vmatpush1.xpose.msra.mxu0 0.0
  %3217 = vmatprep.subr.mxu0 0.0
  %3218 = vmatpush1.xpose.msra.mxu0 0.0
  %3219 = vmatprep.subr.mxu0 0.0
  %3220 = vmatpush1.xpose.msra.mxu0 0.0
  %3221 = vmatprep.subr.mxu0 0.0
  %3222 = vmatpush1.xpose.msra.mxu0 0.0
  %3223 = vmatprep.subr.mxu0 0.0
  %3224 = vmatpush1.xpose.msra.mxu0 0.0
  %3225 = vmatprep.subr.mxu0 0.0
  %3226 = vmatpush1.xpose.msra.mxu0 0.0
  %3227 = vmatprep.subr.mxu0 0.0
  %3228 = vmatpush1.xpose.msra.mxu0 %v3211
  %3229 = vmatprep.subr.mxu0 0.0
  %3230 = vmatpush1.xpose.msra.mxu0 %v3209
  %3231 = vmatprep.subr.mxu0 0.0
  %3232 = vmatpush1.xpose.msra.mxu0 %v3207
  %3233 = vmatprep.subr.mxu0 0.0
  %3234 = vmatpush1.xpose.msra.mxu0 %v3205
  %3235 = vmatprep.subr.mxu0 0.0
  %3236 = vmatpush1.xpose.msra.mxu0 %v3203
  %3237 = vmatprep.subr.mxu0 0.0
  %3238 = vmatpush1.xpose.msra.mxu0 %v3201
  %3239 = vmatprep.subr.mxu0 0.0
  %3240 = vmatpush1.xpose.msra.mxu0 %v3199
  %3241 = vmatprep.subr.mxu0 0.0
  %3242 = vmatpush1.xpose.msra.mxu0 %v3197
  %3243 = vmatprep.subr.mxu0 0.0
  %3244 = vmatpush1.xpose.msra.mxu0 %v3195
  %3245 = vmatprep.subr.mxu0 0.0
  %3246 = vmatpush2.xpose.msra.mxu0 0.0
  %3247 = vmatprep.subr.mxu0 0.0
  %3248 = vmatpush2.xpose.msra.mxu0 0.0
  %3249 = vmatprep.subr.mxu0 0.0
  %3250 = vmatpush2.xpose.msra.mxu0 0.0
  %3251 = vmatprep.subr.mxu0 0.0
  %3252 = vmatpush2.xpose.msra.mxu0 0.0
  %3253 = vmatprep.subr.mxu0 0.0
  %3254 = vmatpush2.xpose.msra.mxu0 0.0
  %3255 = vmatprep.subr.mxu0 0.0
  %3256 = vmatpush2.xpose.msra.mxu0 0.0
  %3257 = vmatprep.subr.mxu0 0.0
  %3258 = vmatpush2.xpose.msra.mxu0 0.0
  %3259 = vmatprep.subr.mxu0 0.0
  %3260 = vmatpush2.xpose.msra.mxu0 0.0
  %3261 = vmatprep.subr.mxu0 0.0
  %3262 = vmatpush2.xpose.msra.mxu0 0.0
  %3263 = vmatprep.subr.mxu0 0.0
  %3264 = vmatpush2.xpose.msra.mxu0 0.0
  %3265 = vmatprep.subr.mxu0 0.0
  %3266 = vmatpush2.xpose.msra.mxu0 0.0
  %3267 = vmatprep.subr.mxu0 0.0
  %3268 = vmatpush2.xpose.msra.mxu0 0.0
  %3269 = vmatprep.subr.mxu0 0.0
  %3270 = vmatpush2.xpose.msra.mxu0 0.0
  %3271 = vmatprep.subr.mxu0 0.0
  %3272 = vmatpush2.xpose.msra.mxu0 0.0
  %3273 = vmatprep.subr.mxu0 0.0
  %3274 = vmatpush2.xpose.msra.mxu0 0.0
  %3275 = vmatprep.subr.mxu0 0.0
  %3276 = vmatpush2.xpose.msra.mxu0 0.0
  %3277 = vmatprep.mubr.f32.mxu0 0.0
  %3278 = vmatmul.mubr.f32.gmra.mxu0 %v3177
  %v3279 = vpop.f32.mrf.mxu0
  %v3280 = vadd.f32 %v733, %v3279
  %v3281 = vpop.f32.mrf.mxu0
  %3282 = vmatprep.mubr.f32.mxu0 0.0
  %3283 = vmatmul.mubr.f32.gmra.mxu0 %v3179
  %v3284 = vpop.f32.mrf.mxu0
  %v3285 = vadd.f32 %v734, %v3284
  %v3286 = vpop.f32.mrf.mxu0
  %3287 = vmatprep.mubr.f32.mxu0 0.0
  %3288 = vmatmul.mubr.f32.gmra.mxu0 %v3181
  %v3289 = vpop.f32.mrf.mxu0
  %v3290 = vadd.f32 %v735, %v3289
  %v3291 = vpop.f32.mrf.mxu0
  %3292 = vmatprep.mubr.f32.mxu0 0.0
  %3293 = vmatmul.mubr.f32.gmra.mxu0 %v3183
  %v3294 = vpop.f32.mrf.mxu0
  %v3295 = vadd.f32 %v736, %v3294
  %v3296 = vpop.f32.mrf.mxu0
  %3297 = vmatprep.mubr.f32.mxu0 0.0
  %3298 = vmatmul.mubr.f32.gmra.mxu0 %v3185
  %v3299 = vpop.f32.mrf.mxu0
  %v3300 = vadd.f32 %v737, %v3299
  %v3301 = vpop.f32.mrf.mxu0
  %3302 = vmatprep.mubr.f32.mxu0 0.0
  %3303 = vmatmul.mubr.f32.gmra.mxu0 %v3187
  %v3304 = vpop.f32.mrf.mxu0
  %v3305 = vadd.f32 %v738, %v3304
  %v3306 = vpop.f32.mrf.mxu0
  %3307 = vmatprep.mubr.f32.mxu0 0.0
  %3308 = vmatmul.mubr.f32.gmra.mxu0 %v3189
  %v3309 = vpop.f32.mrf.mxu0
  %v3310 = vadd.f32 %v739, %v3309
  %v3311 = vpop.f32.mrf.mxu0
  %3312 = vmatprep.mubr.f32.mxu0 0.0
  %3313 = vmatmul.mubr.f32.gmra.mxu0 %v3191
  %v3314 = vpop.f32.mrf.mxu0
  %v3315 = vadd.f32 %v740, %v3314
  %v3316 = vpop.f32.mrf.mxu0
  %3317 = vmatprep.mubr.f32.mxu0 0.0
  %3318 = vmatmul.mubr.f32.gmra.mxu0 %v3193
  %v3319 = vpop.f32.mrf.mxu0
  %v3320 = vadd.f32 %v741, %v3319
  %v3321 = vpop.f32.mrf.mxu0
  %3322 = vdwg.mxu0
  %v3323 = vsel %vm1272, %v3280, -inf
  %3324 = vmax.xlane.f32.xlu0 %v3323
  %v3325 = vpop.xlane.xlu0 %3324
  %v3326 = vsel %vm1272, %v3285, -inf
  %3327 = vmax.xlane.f32.xlu0 %v3326
  %v3328 = vpop.xlane.xlu0 %3327
  %v3329 = vsel %vm1272, %v3290, -inf
  %3330 = vmax.xlane.f32.xlu0 %v3329
  %v3331 = vpop.xlane.xlu0 %3330
  %v3332 = vsel %vm1272, %v3295, -inf
  %3333 = vmax.xlane.f32.xlu0 %v3332
  %v3334 = vpop.xlane.xlu0 %3333
  %v3335 = vsel %vm1272, %v3300, -inf
  %3336 = vmax.xlane.f32.xlu0 %v3335
  %v3337 = vpop.xlane.xlu0 %3336
  %v3338 = vsel %vm1272, %v3305, -inf
  %3339 = vmax.xlane.f32.xlu0 %v3338
  %v3340 = vpop.xlane.xlu0 %3339
  %v3341 = vsel %vm1272, %v3310, -inf
  %3342 = vmax.xlane.f32.xlu0 %v3341
  %v3343 = vpop.xlane.xlu0 %3342
  %v3344 = vsel %vm1272, %v3315, -inf
  %3345 = vmax.xlane.f32.xlu0 %v3344
  %v3346 = vpop.xlane.xlu0 %3345
  %v3347 = vsel %vm1297, %v3320, -inf
  %3348 = vmax.xlane.f32.xlu0 %v3347
  %v3349 = vpop.xlane.xlu0 %3348
  %v3350 = vsub.f32 %v3280, %v3325
  %v3351 = vsub.f32 %v3285, %v3328
  %v3352 = vsub.f32 %v3290, %v3331
  %v3353 = vsub.f32 %v3295, %v3334
  %v3354 = vsub.f32 %v3300, %v3337
  %v3355 = vsub.f32 %v3305, %v3340
  %v3356 = vsub.f32 %v3310, %v3343
  %v3357 = vsub.f32 %v3315, %v3346
  %v3358 = vsub.f32 %v3320, %v3349
  %v3359 = vmul.f32 %v3350, 1.442695
  %v3360 = vpow.pop %v3359
  %v3361 = vmul.f32 %v3351, 1.442695
  %v3362 = vpow.pop %v3361
  %v3363 = vmul.f32 %v3352, 1.442695
  %v3364 = vpow.pop %v3363
  %v3365 = vmul.f32 %v3353, 1.442695
  %v3366 = vpow.pop %v3365
  %v3367 = vmul.f32 %v3354, 1.442695
  %v3368 = vpow.pop %v3367
  %v3369 = vmul.f32 %v3355, 1.442695
  %v3370 = vpow.pop %v3369
  %v3371 = vmul.f32 %v3356, 1.442695
  %v3372 = vpow.pop %v3371
  %v3373 = vmul.f32 %v3357, 1.442695
  %v3374 = vpow.pop %v3373
  %v3375 = vmul.f32 %v3358, 1.442695
  %v3376 = vpow.pop %v3375
  %v3377 = vsel %vm1272, %v3360, 0.0
  %3378 = vadd.xlane.f32.xlu0 %v3377
  %v3379 = vpop.xlane.xlu0 %3378
  %v3380 = vsel %vm1272, %v3362, 0.0
  %3381 = vadd.xlane.f32.xlu0 %v3380
  %v3382 = vpop.xlane.xlu0 %3381
  %v3383 = vsel %vm1272, %v3364, 0.0
  %3384 = vadd.xlane.f32.xlu0 %v3383
  %v3385 = vpop.xlane.xlu0 %3384
  %v3386 = vsel %vm1272, %v3366, 0.0
  %3387 = vadd.xlane.f32.xlu0 %v3386
  %v3388 = vpop.xlane.xlu0 %3387
  %v3389 = vsel %vm1272, %v3368, 0.0
  %3390 = vadd.xlane.f32.xlu0 %v3389
  %v3391 = vpop.xlane.xlu0 %3390
  %v3392 = vsel %vm1272, %v3370, 0.0
  %3393 = vadd.xlane.f32.xlu0 %v3392
  %v3394 = vpop.xlane.xlu0 %3393
  %v3395 = vsel %vm1272, %v3372, 0.0
  %3396 = vadd.xlane.f32.xlu0 %v3395
  %v3397 = vpop.xlane.xlu0 %3396
  %v3398 = vsel %vm1272, %v3374, 0.0
  %3399 = vadd.xlane.f32.xlu0 %v3398
  %v3400 = vpop.xlane.xlu0 %3399
  %v3401 = vsel %vm1297, %v3376, 0.0
  %3402 = vadd.xlane.f32.xlu0 %v3401
  %v3403 = vpop.xlane.xlu0 %3402
  %v3404 = vrcp.pop %v3379
  %v3405 = vrcp.pop %v3382
  %v3406 = vrcp.pop %v3385
  %v3407 = vrcp.pop %v3388
  %v3408 = vrcp.pop %v3391
  %v3409 = vrcp.pop %v3394
  %v3410 = vrcp.pop %v3397
  %v3411 = vrcp.pop %v3400
  %v3412 = vrcp.pop %v3403
  %v3413 = vmul.f32 %v3360, %v3404
  %v3414 = vmul.f32 %v3362, %v3405
  %v3415 = vmul.f32 %v3364, %v3406
  %v3416 = vmul.f32 %v3366, %v3407
  %v3417 = vmul.f32 %v3368, %v3408
  %v3418 = vmul.f32 %v3370, %v3409
  %v3419 = vmul.f32 %v3372, %v3410
  %v3420 = vmul.f32 %v3374, %v3411
  %v3421 = vmul.f32 %v3376, %v3412
  %3422 = vrot.lane.b32.xlu0 %v3107, 64
  %v3423 = vpop.permute.xlu0 %3422
  %3424 = vrot.lane.b32.xlu0 %v3112, 64
  %v3425 = vpop.permute.xlu0 %3424
  %3426 = vrot.lane.b32.xlu0 %v3117, 64
  %v3427 = vpop.permute.xlu0 %3426
  %3428 = vrot.lane.b32.xlu0 %v3122, 64
  %v3429 = vpop.permute.xlu0 %3428
  %3430 = vrot.lane.b32.xlu0 %v3127, 64
  %v3431 = vpop.permute.xlu0 %3430
  %3432 = vrot.lane.b32.xlu0 %v3132, 64
  %v3433 = vpop.permute.xlu0 %3432
  %3434 = vrot.lane.b32.xlu0 %v3137, 64
  %v3435 = vpop.permute.xlu0 %3434
  %3436 = vrot.lane.b32.xlu0 %v3142, 64
  %v3437 = vpop.permute.xlu0 %3436
  %3438 = vrot.lane.b32.xlu0 %v3147, 64
  %v3439 = vpop.permute.xlu0 %3438
  %v3449 = vsel %vm1272, %v3413, 0
  %v3452 = vsel %vm1272, %v3414, 0
  %v3455 = vsel %vm1272, %v3415, 0
  %v3458 = vsel %vm1272, %v3416, 0
  %v3461 = vsel %vm1272, %v3417, 0
  %v3464 = vsel %vm1272, %v3418, 0
  %v3467 = vsel %vm1272, %v3419, 0
  %v3470 = vsel %vm1272, %v3420, 0
  %v3473 = vsel %vm1272, %v3421, 0
  %v3475 = vsel %vm135, %v3439, 0
  %3477 = vmatprep.subr.mxu0 0.0
  %3478 = vmatpush1.msra.mxu0 0.0
  %3479 = vmatprep.subr.mxu0 0.0
  %3480 = vmatpush1.msra.mxu0 0.0
  %3481 = vmatprep.subr.mxu0 0.0
  %3482 = vmatpush1.msra.mxu0 0.0
  %3483 = vmatprep.subr.mxu0 0.0
  %3484 = vmatpush1.msra.mxu0 0.0
  %3485 = vmatprep.subr.mxu0 0.0
  %3486 = vmatpush1.msra.mxu0 0.0
  %3487 = vmatprep.subr.mxu0 0.0
  %3488 = vmatpush1.msra.mxu0 0.0
  %3489 = vmatprep.subr.mxu0 0.0
  %3490 = vmatpush1.msra.mxu0 0.0
  %3491 = vmatprep.subr.mxu0 0.0
  %3492 = vmatpush1.msra.mxu0 %v3475
  %3493 = vmatprep.subr.mxu0 0.0
  %3494 = vmatpush1.msra.mxu0 %v3437
  %3495 = vmatprep.subr.mxu0 0.0
  %3496 = vmatpush1.msra.mxu0 %v3435
  %3497 = vmatprep.subr.mxu0 0.0
  %3498 = vmatpush1.msra.mxu0 %v3433
  %3499 = vmatprep.subr.mxu0 0.0
  %3500 = vmatpush1.msra.mxu0 %v3431
  %3501 = vmatprep.subr.mxu0 0.0
  %3502 = vmatpush1.msra.mxu0 %v3429
  %3503 = vmatprep.subr.mxu0 0.0
  %3504 = vmatpush1.msra.mxu0 %v3427
  %3505 = vmatprep.subr.mxu0 0.0
  %3506 = vmatpush1.msra.mxu0 %v3425
  %3507 = vmatprep.subr.mxu0 0.0
  %3508 = vmatpush1.msra.mxu0 %v3423
  %3509 = vmatprep.subr.mxu0 0.0
  %3510 = vmatpush2.msra.mxu0 0.0
  %3511 = vmatprep.subr.mxu0 0.0
  %3512 = vmatpush2.msra.mxu0 0.0
  %3513 = vmatprep.subr.mxu0 0.0
  %3514 = vmatpush2.msra.mxu0 0.0
  %3515 = vmatprep.subr.mxu0 0.0
  %3516 = vmatpush2.msra.mxu0 0.0
  %3517 = vmatprep.subr.mxu0 0.0
  %3518 = vmatpush2.msra.mxu0 0.0
  %3519 = vmatprep.subr.mxu0 0.0
  %3520 = vmatpush2.msra.mxu0 0.0
  %3521 = vmatprep.subr.mxu0 0.0
  %3522 = vmatpush2.msra.mxu0 0.0
  %3523 = vmatprep.subr.mxu0 0.0
  %3524 = vmatpush2.msra.mxu0 0.0
  %3525 = vmatprep.subr.mxu0 0.0
  %3526 = vmatpush2.msra.mxu0 0.0
  %3527 = vmatprep.subr.mxu0 0.0
  %3528 = vmatpush2.msra.mxu0 0.0
  %3529 = vmatprep.subr.mxu0 0.0
  %3530 = vmatpush2.msra.mxu0 0.0
  %3531 = vmatprep.subr.mxu0 0.0
  %3532 = vmatpush2.msra.mxu0 0.0
  %3533 = vmatprep.subr.mxu0 0.0
  %3534 = vmatpush2.msra.mxu0 0.0
  %3535 = vmatprep.subr.mxu0 0.0
  %3536 = vmatpush2.msra.mxu0 0.0
  %3537 = vmatprep.subr.mxu0 0.0
  %3538 = vmatpush2.msra.mxu0 0.0
  %3539 = vmatprep.subr.mxu0 0.0
  %3540 = vmatpush2.msra.mxu0 0.0
  %3541 = vmatprep.mubr.f32.mxu0 0.0
  %3542 = vmatmul.mubr.f32.gmra.mxu0 %v3449
  %v3543 = vpop.f32.mrf.mxu0
  %v3544 = vadd.f32 0.0, %v3543
  %v3545 = vpop.f32.mrf.mxu0
  %3546 = vmatprep.mubr.f32.mxu0 0.0
  %3547 = vmatmul.mubr.f32.gmra.mxu0 %v3452
  %v3548 = vpop.f32.mrf.mxu0
  %v3549 = vadd.f32 0.0, %v3548
  %v3550 = vpop.f32.mrf.mxu0
  %3551 = vmatprep.mubr.f32.mxu0 0.0
  %3552 = vmatmul.mubr.f32.gmra.mxu0 %v3455
  %v3553 = vpop.f32.mrf.mxu0
  %v3554 = vadd.f32 0.0, %v3553
  %v3555 = vpop.f32.mrf.mxu0
  %3556 = vmatprep.mubr.f32.mxu0 0.0
  %3557 = vmatmul.mubr.f32.gmra.mxu0 %v3458
  %v3558 = vpop.f32.mrf.mxu0
  %v3559 = vadd.f32 0.0, %v3558
  %v3560 = vpop.f32.mrf.mxu0
  %3561 = vmatprep.mubr.f32.mxu0 0.0
  %3562 = vmatmul.mubr.f32.gmra.mxu0 %v3461
  %v3563 = vpop.f32.mrf.mxu0
  %v3564 = vadd.f32 0.0, %v3563
  %v3565 = vpop.f32.mrf.mxu0
  %3566 = vmatprep.mubr.f32.mxu0 0.0
  %3567 = vmatmul.mubr.f32.gmra.mxu0 %v3464
  %v3568 = vpop.f32.mrf.mxu0
  %v3569 = vadd.f32 0.0, %v3568
  %v3570 = vpop.f32.mrf.mxu0
  %3571 = vmatprep.mubr.f32.mxu0 0.0
  %3572 = vmatmul.mubr.f32.gmra.mxu0 %v3467
  %v3573 = vpop.f32.mrf.mxu0
  %v3574 = vadd.f32 0.0, %v3573
  %v3575 = vpop.f32.mrf.mxu0
  %3576 = vmatprep.mubr.f32.mxu0 0.0
  %3577 = vmatmul.mubr.f32.gmra.mxu0 %v3470
  %v3578 = vpop.f32.mrf.mxu0
  %v3579 = vadd.f32 0.0, %v3578
  %v3580 = vpop.f32.mrf.mxu0
  %3581 = vmatprep.mubr.f32.mxu0 0.0
  %3582 = vmatmul.mubr.f32.gmra.mxu0 %v3473
  %v3583 = vpop.f32.mrf.mxu0
  %v3584 = vadd.f32 0.0, %v3583
  %v3585 = vpop.f32.mrf.mxu0
  %3586 = vdwg.mxu0
  %3587 = vrot.lane.b32.xlu0 %v3107, 112
  %v3588 = vpop.permute.xlu0 %3587
  %3589 = vrot.lane.b32.xlu0 %v3112, 112
  %v3590 = vpop.permute.xlu0 %3589
  %3591 = vrot.lane.b32.xlu0 %v3117, 112
  %v3592 = vpop.permute.xlu0 %3591
  %3593 = vrot.lane.b32.xlu0 %v3122, 112
  %v3594 = vpop.permute.xlu0 %3593
  %3595 = vrot.lane.b32.xlu0 %v3127, 112
  %v3596 = vpop.permute.xlu0 %3595
  %3597 = vrot.lane.b32.xlu0 %v3132, 112
  %v3598 = vpop.permute.xlu0 %3597
  %3599 = vrot.lane.b32.xlu0 %v3137, 112
  %v3600 = vpop.permute.xlu0 %3599
  %3601 = vrot.lane.b32.xlu0 %v3142, 112
  %v3602 = vpop.permute.xlu0 %3601
  %3603 = vrot.lane.b32.xlu0 %v3147, 112
  %v3604 = vpop.permute.xlu0 %3603
  %3605 = vrot.lane.b32.xlu0 %v3107, 80
  %v3606 = vpop.permute.xlu0 %3605
  %3607 = vrot.lane.b32.xlu0 %v3112, 80
  %v3608 = vpop.permute.xlu0 %3607
  %3609 = vrot.lane.b32.xlu0 %v3117, 80
  %v3610 = vpop.permute.xlu0 %3609
  %3611 = vrot.lane.b32.xlu0 %v3122, 80
  %v3612 = vpop.permute.xlu0 %3611
  %3613 = vrot.lane.b32.xlu0 %v3127, 80
  %v3614 = vpop.permute.xlu0 %3613
  %3615 = vrot.lane.b32.xlu0 %v3132, 80
  %v3616 = vpop.permute.xlu0 %3615
  %3617 = vrot.lane.b32.xlu0 %v3137, 80
  %v3618 = vpop.permute.xlu0 %3617
  %3619 = vrot.lane.b32.xlu0 %v3142, 80
  %v3620 = vpop.permute.xlu0 %3619
  %3621 = vrot.lane.b32.xlu0 %v3147, 80
  %v3622 = vpop.permute.xlu0 %3621
  %v3623 = vsel %vm1125, %v3588, 0
  %v3625 = vsel %vm1125, %v3590, 0
  %v3627 = vsel %vm1125, %v3592, 0
  %v3629 = vsel %vm1125, %v3594, 0
  %v3631 = vsel %vm1125, %v3596, 0
  %v3633 = vsel %vm1125, %v3598, 0
  %v3635 = vsel %vm1125, %v3600, 0
  %v3637 = vsel %vm1125, %v3602, 0
  %v3639 = vsel %vm1125, %v3604, 0
  %v3641 = vsel %vm1125, %v3606, 0
  %v3643 = vsel %vm1125, %v3608, 0
  %v3645 = vsel %vm1125, %v3610, 0
  %v3647 = vsel %vm1125, %v3612, 0
  %v3649 = vsel %vm1125, %v3614, 0
  %v3651 = vsel %vm1125, %v3616, 0
  %v3653 = vsel %vm1125, %v3618, 0
  %v3655 = vsel %vm1125, %v3620, 0
  %v3657 = vsel %vm1125, %v3622, 0
  %3659 = vmatprep.subr.mxu0 0.0
  %3660 = vmatpush1.xpose.msra.mxu0 0.0
  %3661 = vmatprep.subr.mxu0 0.0
  %3662 = vmatpush1.xpose.msra.mxu0 0.0
  %3663 = vmatprep.subr.mxu0 0.0
  %3664 = vmatpush1.xpose.msra.mxu0 0.0
  %3665 = vmatprep.subr.mxu0 0.0
  %3666 = vmatpush1.xpose.msra.mxu0 0.0
  %3667 = vmatprep.subr.mxu0 0.0
  %3668 = vmatpush1.xpose.msra.mxu0 0.0
  %3669 = vmatprep.subr.mxu0 0.0
  %3670 = vmatpush1.xpose.msra.mxu0 0.0
  %3671 = vmatprep.subr.mxu0 0.0
  %3672 = vmatpush1.xpose.msra.mxu0 0.0
  %3673 = vmatprep.subr.mxu0 0.0
  %3674 = vmatpush1.xpose.msra.mxu0 %v3657
  %3675 = vmatprep.subr.mxu0 0.0
  %3676 = vmatpush1.xpose.msra.mxu0 %v3655
  %3677 = vmatprep.subr.mxu0 0.0
  %3678 = vmatpush1.xpose.msra.mxu0 %v3653
  %3679 = vmatprep.subr.mxu0 0.0
  %3680 = vmatpush1.xpose.msra.mxu0 %v3651
  %3681 = vmatprep.subr.mxu0 0.0
  %3682 = vmatpush1.xpose.msra.mxu0 %v3649
  %3683 = vmatprep.subr.mxu0 0.0
  %3684 = vmatpush1.xpose.msra.mxu0 %v3647
  %3685 = vmatprep.subr.mxu0 0.0
  %3686 = vmatpush1.xpose.msra.mxu0 %v3645
  %3687 = vmatprep.subr.mxu0 0.0
  %3688 = vmatpush1.xpose.msra.mxu0 %v3643
  %3689 = vmatprep.subr.mxu0 0.0
  %3690 = vmatpush1.xpose.msra.mxu0 %v3641
  %3691 = vmatprep.subr.mxu0 0.0
  %3692 = vmatpush2.xpose.msra.mxu0 0.0
  %3693 = vmatprep.subr.mxu0 0.0
  %3694 = vmatpush2.xpose.msra.mxu0 0.0
  %3695 = vmatprep.subr.mxu0 0.0
  %3696 = vmatpush2.xpose.msra.mxu0 0.0
  %3697 = vmatprep.subr.mxu0 0.0
  %3698 = vmatpush2.xpose.msra.mxu0 0.0
  %3699 = vmatprep.subr.mxu0 0.0
  %3700 = vmatpush2.xpose.msra.mxu0 0.0
  %3701 = vmatprep.subr.mxu0 0.0
  %3702 = vmatpush2.xpose.msra.mxu0 0.0
  %3703 = vmatprep.subr.mxu0 0.0
  %3704 = vmatpush2.xpose.msra.mxu0 0.0
  %3705 = vmatprep.subr.mxu0 0.0
  %3706 = vmatpush2.xpose.msra.mxu0 0.0
  %3707 = vmatprep.subr.mxu0 0.0
  %3708 = vmatpush2.xpose.msra.mxu0 0.0
  %3709 = vmatprep.subr.mxu0 0.0
  %3710 = vmatpush2.xpose.msra.mxu0 0.0
  %3711 = vmatprep.subr.mxu0 0.0
  %3712 = vmatpush2.xpose.msra.mxu0 0.0
  %3713 = vmatprep.subr.mxu0 0.0
  %3714 = vmatpush2.xpose.msra.mxu0 0.0
  %3715 = vmatprep.subr.mxu0 0.0
  %3716 = vmatpush2.xpose.msra.mxu0 0.0
  %3717 = vmatprep.subr.mxu0 0.0
  %3718 = vmatpush2.xpose.msra.mxu0 0.0
  %3719 = vmatprep.subr.mxu0 0.0
  %3720 = vmatpush2.xpose.msra.mxu0 0.0
  %3721 = vmatprep.subr.mxu0 0.0
  %3722 = vmatpush2.xpose.msra.mxu0 0.0
  %3723 = vmatprep.mubr.f32.mxu0 0.0
  %3724 = vmatmul.mubr.f32.gmra.mxu0 %v3623
  %v3725 = vpop.f32.mrf.mxu0
  %v3726 = vadd.f32 %v733, %v3725
  %v3727 = vpop.f32.mrf.mxu0
  %3728 = vmatprep.mubr.f32.mxu0 0.0
  %3729 = vmatmul.mubr.f32.gmra.mxu0 %v3625
  %v3730 = vpop.f32.mrf.mxu0
  %v3731 = vadd.f32 %v734, %v3730
  %v3732 = vpop.f32.mrf.mxu0
  %3733 = vmatprep.mubr.f32.mxu0 0.0
  %3734 = vmatmul.mubr.f32.gmra.mxu0 %v3627
  %v3735 = vpop.f32.mrf.mxu0
  %v3736 = vadd.f32 %v735, %v3735
  %v3737 = vpop.f32.mrf.mxu0
  %3738 = vmatprep.mubr.f32.mxu0 0.0
  %3739 = vmatmul.mubr.f32.gmra.mxu0 %v3629
  %v3740 = vpop.f32.mrf.mxu0
  %v3741 = vadd.f32 %v736, %v3740
  %v3742 = vpop.f32.mrf.mxu0
  %3743 = vmatprep.mubr.f32.mxu0 0.0
  %3744 = vmatmul.mubr.f32.gmra.mxu0 %v3631
  %v3745 = vpop.f32.mrf.mxu0
  %v3746 = vadd.f32 %v737, %v3745
  %v3747 = vpop.f32.mrf.mxu0
  %3748 = vmatprep.mubr.f32.mxu0 0.0
  %3749 = vmatmul.mubr.f32.gmra.mxu0 %v3633
  %v3750 = vpop.f32.mrf.mxu0
  %v3751 = vadd.f32 %v738, %v3750
  %v3752 = vpop.f32.mrf.mxu0
  %3753 = vmatprep.mubr.f32.mxu0 0.0
  %3754 = vmatmul.mubr.f32.gmra.mxu0 %v3635
  %v3755 = vpop.f32.mrf.mxu0
  %v3756 = vadd.f32 %v739, %v3755
  %v3757 = vpop.f32.mrf.mxu0
  %3758 = vmatprep.mubr.f32.mxu0 0.0
  %3759 = vmatmul.mubr.f32.gmra.mxu0 %v3637
  %v3760 = vpop.f32.mrf.mxu0
  %v3761 = vadd.f32 %v740, %v3760
  %v3762 = vpop.f32.mrf.mxu0
  %3763 = vmatprep.mubr.f32.mxu0 0.0
  %3764 = vmatmul.mubr.f32.gmra.mxu0 %v3639
  %v3765 = vpop.f32.mrf.mxu0
  %v3766 = vadd.f32 %v741, %v3765
  %v3767 = vpop.f32.mrf.mxu0
  %3768 = vdwg.mxu0
  %v3769 = vsel %vm1272, %v3726, -inf
  %3770 = vmax.xlane.f32.xlu0 %v3769
  %v3771 = vpop.xlane.xlu0 %3770
  %v3772 = vsel %vm1272, %v3731, -inf
  %3773 = vmax.xlane.f32.xlu0 %v3772
  %v3774 = vpop.xlane.xlu0 %3773
  %v3775 = vsel %vm1272, %v3736, -inf
  %3776 = vmax.xlane.f32.xlu0 %v3775
  %v3777 = vpop.xlane.xlu0 %3776
  %v3778 = vsel %vm1272, %v3741, -inf
  %3779 = vmax.xlane.f32.xlu0 %v3778
  %v3780 = vpop.xlane.xlu0 %3779
  %v3781 = vsel %vm1272, %v3746, -inf
  %3782 = vmax.xlane.f32.xlu0 %v3781
  %v3783 = vpop.xlane.xlu0 %3782
  %v3784 = vsel %vm1272, %v3751, -inf
  %3785 = vmax.xlane.f32.xlu0 %v3784
  %v3786 = vpop.xlane.xlu0 %3785
  %v3787 = vsel %vm1272, %v3756, -inf
  %3788 = vmax.xlane.f32.xlu0 %v3787
  %v3789 = vpop.xlane.xlu0 %3788
  %v3790 = vsel %vm1272, %v3761, -inf
  %3791 = vmax.xlane.f32.xlu0 %v3790
  %v3792 = vpop.xlane.xlu0 %3791
  %v3793 = vsel %vm1297, %v3766, -inf
  %3794 = vmax.xlane.f32.xlu0 %v3793
  %v3795 = vpop.xlane.xlu0 %3794
  %v3796 = vsub.f32 %v3726, %v3771
  %v3797 = vsub.f32 %v3731, %v3774
  %v3798 = vsub.f32 %v3736, %v3777
  %v3799 = vsub.f32 %v3741, %v3780
  %v3800 = vsub.f32 %v3746, %v3783
  %v3801 = vsub.f32 %v3751, %v3786
  %v3802 = vsub.f32 %v3756, %v3789
  %v3803 = vsub.f32 %v3761, %v3792
  %v3804 = vsub.f32 %v3766, %v3795
  %v3805 = vmul.f32 %v3796, 1.442695
  %v3806 = vpow.pop %v3805
  %v3807 = vmul.f32 %v3797, 1.442695
  %v3808 = vpow.pop %v3807
  %v3809 = vmul.f32 %v3798, 1.442695
  %v3810 = vpow.pop %v3809
  %v3811 = vmul.f32 %v3799, 1.442695
  %v3812 = vpow.pop %v3811
  %v3813 = vmul.f32 %v3800, 1.442695
  %v3814 = vpow.pop %v3813
  %v3815 = vmul.f32 %v3801, 1.442695
  %v3816 = vpow.pop %v3815
  %v3817 = vmul.f32 %v3802, 1.442695
  %v3818 = vpow.pop %v3817
  %v3819 = vmul.f32 %v3803, 1.442695
  %v3820 = vpow.pop %v3819
  %v3821 = vmul.f32 %v3804, 1.442695
  %v3822 = vpow.pop %v3821
  %v3823 = vsel %vm1272, %v3806, 0.0
  %3824 = vadd.xlane.f32.xlu0 %v3823
  %v3825 = vpop.xlane.xlu0 %3824
  %v3826 = vsel %vm1272, %v3808, 0.0
  %3827 = vadd.xlane.f32.xlu0 %v3826
  %v3828 = vpop.xlane.xlu0 %3827
  %v3829 = vsel %vm1272, %v3810, 0.0
  %3830 = vadd.xlane.f32.xlu0 %v3829
  %v3831 = vpop.xlane.xlu0 %3830
  %v3832 = vsel %vm1272, %v3812, 0.0
  %3833 = vadd.xlane.f32.xlu0 %v3832
  %v3834 = vpop.xlane.xlu0 %3833
  %v3835 = vsel %vm1272, %v3814, 0.0
  %3836 = vadd.xlane.f32.xlu0 %v3835
  %v3837 = vpop.xlane.xlu0 %3836
  %v3838 = vsel %vm1272, %v3816, 0.0
  %3839 = vadd.xlane.f32.xlu0 %v3838
  %v3840 = vpop.xlane.xlu0 %3839
  %v3841 = vsel %vm1272, %v3818, 0.0
  %3842 = vadd.xlane.f32.xlu0 %v3841
  %v3843 = vpop.xlane.xlu0 %3842
  %v3844 = vsel %vm1272, %v3820, 0.0
  %3845 = vadd.xlane.f32.xlu0 %v3844
  %v3846 = vpop.xlane.xlu0 %3845
  %v3847 = vsel %vm1297, %v3822, 0.0
  %3848 = vadd.xlane.f32.xlu0 %v3847
  %v3849 = vpop.xlane.xlu0 %3848
  %v3850 = vrcp.pop %v3825
  %v3851 = vrcp.pop %v3828
  %v3852 = vrcp.pop %v3831
  %v3853 = vrcp.pop %v3834
  %v3854 = vrcp.pop %v3837
  %v3855 = vrcp.pop %v3840
  %v3856 = vrcp.pop %v3843
  %v3857 = vrcp.pop %v3846
  %v3858 = vrcp.pop %v3849
  %v3859 = vmul.f32 %v3806, %v3850
  %v3860 = vmul.f32 %v3808, %v3851
  %v3861 = vmul.f32 %v3810, %v3852
  %v3862 = vmul.f32 %v3812, %v3853
  %v3863 = vmul.f32 %v3814, %v3854
  %v3864 = vmul.f32 %v3816, %v3855
  %v3865 = vmul.f32 %v3818, %v3856
  %v3866 = vmul.f32 %v3820, %v3857
  %v3867 = vmul.f32 %v3822, %v3858
  %3868 = vrot.lane.b32.xlu0 %v3107, 48
  %v3869 = vpop.permute.xlu0 %3868
  %3870 = vrot.lane.b32.xlu0 %v3112, 48
  %v3871 = vpop.permute.xlu0 %3870
  %3872 = vrot.lane.b32.xlu0 %v3117, 48
  %v3873 = vpop.permute.xlu0 %3872
  %3874 = vrot.lane.b32.xlu0 %v3122, 48
  %v3875 = vpop.permute.xlu0 %3874
  %3876 = vrot.lane.b32.xlu0 %v3127, 48
  %v3877 = vpop.permute.xlu0 %3876
  %3878 = vrot.lane.b32.xlu0 %v3132, 48
  %v3879 = vpop.permute.xlu0 %3878
  %3880 = vrot.lane.b32.xlu0 %v3137, 48
  %v3881 = vpop.permute.xlu0 %3880
  %3882 = vrot.lane.b32.xlu0 %v3142, 48
  %v3883 = vpop.permute.xlu0 %3882
  %3884 = vrot.lane.b32.xlu0 %v3147, 48
  %v3885 = vpop.permute.xlu0 %3884
  %v3895 = vsel %vm1272, %v3859, 0
  %v3898 = vsel %vm1272, %v3860, 0
  %v3901 = vsel %vm1272, %v3861, 0
  %v3904 = vsel %vm1272, %v3862, 0
  %v3907 = vsel %vm1272, %v3863, 0
  %v3910 = vsel %vm1272, %v3864, 0
  %v3913 = vsel %vm1272, %v3865, 0
  %v3916 = vsel %vm1272, %v3866, 0
  %v3919 = vsel %vm1272, %v3867, 0
  %v3921 = vsel %vm135, %v3885, 0
  %3923 = vmatprep.subr.mxu0 0.0
  %3924 = vmatpush1.msra.mxu0 0.0
  %3925 = vmatprep.subr.mxu0 0.0
  %3926 = vmatpush1.msra.mxu0 0.0
  %3927 = vmatprep.subr.mxu0 0.0
  %3928 = vmatpush1.msra.mxu0 0.0
  %3929 = vmatprep.subr.mxu0 0.0
  %3930 = vmatpush1.msra.mxu0 0.0
  %3931 = vmatprep.subr.mxu0 0.0
  %3932 = vmatpush1.msra.mxu0 0.0
  %3933 = vmatprep.subr.mxu0 0.0
  %3934 = vmatpush1.msra.mxu0 0.0
  %3935 = vmatprep.subr.mxu0 0.0
  %3936 = vmatpush1.msra.mxu0 0.0
  %3937 = vmatprep.subr.mxu0 0.0
  %3938 = vmatpush1.msra.mxu0 %v3921
  %3939 = vmatprep.subr.mxu0 0.0
  %3940 = vmatpush1.msra.mxu0 %v3883
  %3941 = vmatprep.subr.mxu0 0.0
  %3942 = vmatpush1.msra.mxu0 %v3881
  %3943 = vmatprep.subr.mxu0 0.0
  %3944 = vmatpush1.msra.mxu0 %v3879
  %3945 = vmatprep.subr.mxu0 0.0
  %3946 = vmatpush1.msra.mxu0 %v3877
  %3947 = vmatprep.subr.mxu0 0.0
  %3948 = vmatpush1.msra.mxu0 %v3875
  %3949 = vmatprep.subr.mxu0 0.0
  %3950 = vmatpush1.msra.mxu0 %v3873
  %3951 = vmatprep.subr.mxu0 0.0
  %3952 = vmatpush1.msra.mxu0 %v3871
  %3953 = vmatprep.subr.mxu0 0.0
  %3954 = vmatpush1.msra.mxu0 %v3869
  %3955 = vmatprep.subr.mxu0 0.0
  %3956 = vmatpush2.msra.mxu0 0.0
  %3957 = vmatprep.subr.mxu0 0.0
  %3958 = vmatpush2.msra.mxu0 0.0
  %3959 = vmatprep.subr.mxu0 0.0
  %3960 = vmatpush2.msra.mxu0 0.0
  %3961 = vmatprep.subr.mxu0 0.0
  %3962 = vmatpush2.msra.mxu0 0.0
  %3963 = vmatprep.subr.mxu0 0.0
  %3964 = vmatpush2.msra.mxu0 0.0
  %3965 = vmatprep.subr.mxu0 0.0
  %3966 = vmatpush2.msra.mxu0 0.0
  %3967 = vmatprep.subr.mxu0 0.0
  %3968 = vmatpush2.msra.mxu0 0.0
  %3969 = vmatprep.subr.mxu0 0.0
  %3970 = vmatpush2.msra.mxu0 0.0
  %3971 = vmatprep.subr.mxu0 0.0
  %3972 = vmatpush2.msra.mxu0 0.0
  %3973 = vmatprep.subr.mxu0 0.0
  %3974 = vmatpush2.msra.mxu0 0.0
  %3975 = vmatprep.subr.mxu0 0.0
  %3976 = vmatpush2.msra.mxu0 0.0
  %3977 = vmatprep.subr.mxu0 0.0
  %3978 = vmatpush2.msra.mxu0 0.0
  %3979 = vmatprep.subr.mxu0 0.0
  %3980 = vmatpush2.msra.mxu0 0.0
  %3981 = vmatprep.subr.mxu0 0.0
  %3982 = vmatpush2.msra.mxu0 0.0
  %3983 = vmatprep.subr.mxu0 0.0
  %3984 = vmatpush2.msra.mxu0 0.0
  %3985 = vmatprep.subr.mxu0 0.0
  %3986 = vmatpush2.msra.mxu0 0.0
  %3987 = vmatprep.mubr.f32.mxu0 0.0
  %3988 = vmatmul.mubr.f32.gmra.mxu0 %v3895
  %v3989 = vpop.f32.mrf.mxu0
  %v3990 = vadd.f32 0.0, %v3989
  %v3991 = vpop.f32.mrf.mxu0
  %3992 = vmatprep.mubr.f32.mxu0 0.0
  %3993 = vmatmul.mubr.f32.gmra.mxu0 %v3898
  %v3994 = vpop.f32.mrf.mxu0
  %v3995 = vadd.f32 0.0, %v3994
  %v3996 = vpop.f32.mrf.mxu0
  %3997 = vmatprep.mubr.f32.mxu0 0.0
  %3998 = vmatmul.mubr.f32.gmra.mxu0 %v3901
  %v3999 = vpop.f32.mrf.mxu0
  %v4000 = vadd.f32 0.0, %v3999
  %v4001 = vpop.f32.mrf.mxu0
  %4002 = vmatprep.mubr.f32.mxu0 0.0
  %4003 = vmatmul.mubr.f32.gmra.mxu0 %v3904
  %v4004 = vpop.f32.mrf.mxu0
  %v4005 = vadd.f32 0.0, %v4004
  %v4006 = vpop.f32.mrf.mxu0
  %4007 = vmatprep.mubr.f32.mxu0 0.0
  %4008 = vmatmul.mubr.f32.gmra.mxu0 %v3907
  %v4009 = vpop.f32.mrf.mxu0
  %v4010 = vadd.f32 0.0, %v4009
  %v4011 = vpop.f32.mrf.mxu0
  %4012 = vmatprep.mubr.f32.mxu0 0.0
  %4013 = vmatmul.mubr.f32.gmra.mxu0 %v3910
  %v4014 = vpop.f32.mrf.mxu0
  %v4015 = vadd.f32 0.0, %v4014
  %v4016 = vpop.f32.mrf.mxu0
  %4017 = vmatprep.mubr.f32.mxu0 0.0
  %4018 = vmatmul.mubr.f32.gmra.mxu0 %v3913
  %v4019 = vpop.f32.mrf.mxu0
  %v4020 = vadd.f32 0.0, %v4019
  %v4021 = vpop.f32.mrf.mxu0
  %4022 = vmatprep.mubr.f32.mxu0 0.0
  %4023 = vmatmul.mubr.f32.gmra.mxu0 %v3916
  %v4024 = vpop.f32.mrf.mxu0
  %v4025 = vadd.f32 0.0, %v4024
  %v4026 = vpop.f32.mrf.mxu0
  %4027 = vmatprep.mubr.f32.mxu0 0.0
  %4028 = vmatmul.mubr.f32.gmra.mxu0 %v3919
  %v4029 = vpop.f32.mrf.mxu0
  %v4030 = vadd.f32 0.0, %v4029
  %v4031 = vpop.f32.mrf.mxu0
  %4032 = vdwg.mxu0
  %4042 = vrot.lane.b32.xlu0 %v3990, 16
  %v4043 = vpop.permute.xlu0 %4042
  %4044 = vrot.lane.b32.xlu0 %v3995, 16
  %v4045 = vpop.permute.xlu0 %4044
  %4046 = vrot.lane.b32.xlu0 %v4000, 16
  %v4047 = vpop.permute.xlu0 %4046
  %4048 = vrot.lane.b32.xlu0 %v4005, 16
  %v4049 = vpop.permute.xlu0 %4048
  %4050 = vrot.lane.b32.xlu0 %v4010, 16
  %v4051 = vpop.permute.xlu0 %4050
  %4052 = vrot.lane.b32.xlu0 %v4015, 16
  %v4053 = vpop.permute.xlu0 %4052
  %4054 = vrot.lane.b32.xlu0 %v4020, 16
  %v4055 = vpop.permute.xlu0 %4054
  %4056 = vrot.lane.b32.xlu0 %v4025, 16
  %v4057 = vpop.permute.xlu0 %4056
  %4058 = vrot.lane.b32.xlu0 %v4030, 16
  %v4059 = vpop.permute.xlu0 %4058
  %v4069 = vsel %vm1125, %v3544, %v4043
  %v4070 = vsel %vm1125, %v3549, %v4045
  %v4071 = vsel %vm1125, %v3554, %v4047
  %v4072 = vsel %vm1125, %v3559, %v4049
  %v4073 = vsel %vm1125, %v3564, %v4051
  %v4074 = vsel %vm1125, %v3569, %v4053
  %v4075 = vsel %vm1125, %v3574, %v4055
  %v4076 = vsel %vm1125, %v3579, %v4057
  %v4077 = vsel %vm1125, %v3584, %v4059
  %s4078 = scalar_lea.vmem %s39, 32
  %v4079 = vld [vmem:[%s4078] sm:$0xff]
  %v4080 = vld [vmem:[%s4078 + $0x8] sm:$0xff]
  %v4081 = vld [vmem:[%s4078 + $0x10] sm:$0xff]
  %v4082 = vld [vmem:[%s4078 + $0x18] sm:$0xff]
  %v4084 = vsel %vm227, %v4069, 0
  %v4087 = vsel %vm227, %v4070, 0
  %v4090 = vsel %vm227, %v4071, 0
  %v4093 = vsel %vm227, %v4072, 0
  %v4096 = vsel %vm227, %v4073, 0
  %v4099 = vsel %vm227, %v4074, 0
  %v4102 = vsel %vm227, %v4075, 0
  %v4105 = vsel %vm227, %v4076, 0
  %v4108 = vsel %vm227, %v4077, 0
  %4110 = vmatprep.subr.mxu0 0.0
  %4111 = vmatpush1.msra.mxu0 0.0
  %4112 = vmatprep.subr.mxu0 0.0
  %4113 = vmatpush1.msra.mxu0 0.0
  %4114 = vmatprep.subr.mxu0 0.0
  %4115 = vmatpush1.msra.mxu0 0.0
  %4116 = vmatprep.subr.mxu0 0.0
  %4117 = vmatpush1.msra.mxu0 0.0
  %4118 = vmatprep.subr.mxu0 0.0
  %4119 = vmatpush1.msra.mxu0 0.0
  %4120 = vmatprep.subr.mxu0 0.0
  %4121 = vmatpush1.msra.mxu0 0.0
  %4122 = vmatprep.subr.mxu0 0.0
  %4123 = vmatpush1.msra.mxu0 0.0
  %4124 = vmatprep.subr.mxu0 0.0
  %4125 = vmatpush1.msra.mxu0 0.0
  %4126 = vmatprep.subr.mxu0 0.0
  %4127 = vmatpush1.msra.mxu0 0.0
  %4128 = vmatprep.subr.mxu0 0.0
  %4129 = vmatpush1.msra.mxu0 0.0
  %4130 = vmatprep.subr.mxu0 0.0
  %4131 = vmatpush1.msra.mxu0 0.0
  %4132 = vmatprep.subr.mxu0 0.0
  %4133 = vmatpush1.msra.mxu0 0.0
  %4134 = vmatprep.subr.mxu0 0.0
  %4135 = vmatpush1.msra.mxu0 %v4082
  %4136 = vmatprep.subr.mxu0 0.0
  %4137 = vmatpush1.msra.mxu0 %v4081
  %4138 = vmatprep.subr.mxu0 0.0
  %4139 = vmatpush1.msra.mxu0 %v4080
  %4140 = vmatprep.subr.mxu0 0.0
  %4141 = vmatpush1.msra.mxu0 %v4079
  %4142 = vmatprep.subr.mxu0 0.0
  %4143 = vmatpush2.msra.mxu0 0.0
  %4144 = vmatprep.subr.mxu0 0.0
  %4145 = vmatpush2.msra.mxu0 0.0
  %4146 = vmatprep.subr.mxu0 0.0
  %4147 = vmatpush2.msra.mxu0 0.0
  %4148 = vmatprep.subr.mxu0 0.0
  %4149 = vmatpush2.msra.mxu0 0.0
  %4150 = vmatprep.subr.mxu0 0.0
  %4151 = vmatpush2.msra.mxu0 0.0
  %4152 = vmatprep.subr.mxu0 0.0
  %4153 = vmatpush2.msra.mxu0 0.0
  %4154 = vmatprep.subr.mxu0 0.0
  %4155 = vmatpush2.msra.mxu0 0.0
  %4156 = vmatprep.subr.mxu0 0.0
  %4157 = vmatpush2.msra.mxu0 0.0
  %4158 = vmatprep.subr.mxu0 0.0
  %4159 = vmatpush2.msra.mxu0 0.0
  %4160 = vmatprep.subr.mxu0 0.0
  %4161 = vmatpush2.msra.mxu0 0.0
  %4162 = vmatprep.subr.mxu0 0.0
  %4163 = vmatpush2.msra.mxu0 0.0
  %4164 = vmatprep.subr.mxu0 0.0
  %4165 = vmatpush2.msra.mxu0 0.0
  %4166 = vmatprep.subr.mxu0 0.0
  %4167 = vmatpush2.msra.mxu0 0.0
  %4168 = vmatprep.subr.mxu0 0.0
  %4169 = vmatpush2.msra.mxu0 0.0
  %4170 = vmatprep.subr.mxu0 0.0
  %4171 = vmatpush2.msra.mxu0 0.0
  %4172 = vmatprep.subr.mxu0 0.0
  %4173 = vmatpush2.msra.mxu0 0.0
  %4174 = vmatprep.mubr.f32.mxu0 0.0
  %4175 = vmatmul.mubr.f32.gmra.mxu0 %v4084
  %v4176 = vpop.f32.mrf.mxu0
  %v4177 = vadd.f32 0.0, %v4176
  %v4178 = vpop.f32.mrf.mxu0
  %4179 = vmatprep.mubr.f32.mxu0 0.0
  %4180 = vmatmul.mubr.f32.gmra.mxu0 %v4087
  %v4181 = vpop.f32.mrf.mxu0
  %v4182 = vadd.f32 0.0, %v4181
  %v4183 = vpop.f32.mrf.mxu0
  %4184 = vmatprep.mubr.f32.mxu0 0.0
  %4185 = vmatmul.mubr.f32.gmra.mxu0 %v4090
  %v4186 = vpop.f32.mrf.mxu0
  %v4187 = vadd.f32 0.0, %v4186
  %v4188 = vpop.f32.mrf.mxu0
  %4189 = vmatprep.mubr.f32.mxu0 0.0
  %4190 = vmatmul.mubr.f32.gmra.mxu0 %v4093
  %v4191 = vpop.f32.mrf.mxu0
  %v4192 = vadd.f32 0.0, %v4191
  %v4193 = vpop.f32.mrf.mxu0
  %4194 = vmatprep.mubr.f32.mxu0 0.0
  %4195 = vmatmul.mubr.f32.gmra.mxu0 %v4096
  %v4196 = vpop.f32.mrf.mxu0
  %v4197 = vadd.f32 0.0, %v4196
  %v4198 = vpop.f32.mrf.mxu0
  %4199 = vmatprep.mubr.f32.mxu0 0.0
  %4200 = vmatmul.mubr.f32.gmra.mxu0 %v4099
  %v4201 = vpop.f32.mrf.mxu0
  %v4202 = vadd.f32 0.0, %v4201
  %v4203 = vpop.f32.mrf.mxu0
  %4204 = vmatprep.mubr.f32.mxu0 0.0
  %4205 = vmatmul.mubr.f32.gmra.mxu0 %v4102
  %v4206 = vpop.f32.mrf.mxu0
  %v4207 = vadd.f32 0.0, %v4206
  %v4208 = vpop.f32.mrf.mxu0
  %4209 = vmatprep.mubr.f32.mxu0 0.0
  %4210 = vmatmul.mubr.f32.gmra.mxu0 %v4105
  %v4211 = vpop.f32.mrf.mxu0
  %v4212 = vadd.f32 0.0, %v4211
  %v4213 = vpop.f32.mrf.mxu0
  %4214 = vmatprep.mubr.f32.mxu0 0.0
  %4215 = vmatmul.mubr.f32.gmra.mxu0 %v4108
  %v4216 = vpop.f32.mrf.mxu0
  %v4217 = vadd.f32 0.0, %v4216
  %v4218 = vpop.f32.mrf.mxu0
  %4219 = vdwg.mxu0
  %v4220 = vadd.f32 %v2786, %v4177
  %v4221 = vadd.f32 %v2787, %v4182
  %v4222 = vadd.f32 %v2788, %v4187
  %v4223 = vadd.f32 %v2789, %v4192
  %v4224 = vadd.f32 %v2790, %v4197
  %v4225 = vadd.f32 %v2791, %v4202
  %v4226 = vadd.f32 %v2792, %v4207
  %v4227 = vadd.f32 %v2793, %v4212
  %v4228 = vadd.f32 %v2794, %v4217
  %v4229 = vld [vmem:[%s41 + $0x1] sm:$0x1]
  %v4230 = vlaneseq
  %v4231 = vshrl.u32 %v4230, 7
  %v4232 = vsub.s32 0, %v4231
  %v4233 = vrot.slane %v4229, %v4232
  %v4234 = vadd.f32 %v4220, %v4233
  %v4235 = vadd.f32 %v4221, %v4233
  %v4236 = vadd.f32 %v4222, %v4233
  %v4237 = vadd.f32 %v4223, %v4233
  %v4238 = vadd.f32 %v4224, %v4233
  %v4239 = vadd.f32 %v4225, %v4233
  %v4240 = vadd.f32 %v4226, %v4233
  %v4241 = vadd.f32 %v4227, %v4233
  %v4242 = vadd.f32 %v4228, %v4233
  %v4243 = vld [vmem:[%s43 + $0x1] sm:$0x1]
  %v4244 = vld [vmem:[%s45 + $0x1] sm:$0x1]
  %v4245 = vsel %vm227, %v4234, 0.0
  %4246 = vadd.xlane.f32.xlu0 %v4245
  %v4247 = vpop.xlane.xlu0 %4246
  %v4248 = vsel %vm227, %v4235, 0.0
  %4249 = vadd.xlane.f32.xlu0 %v4248
  %v4250 = vpop.xlane.xlu0 %4249
  %v4251 = vsel %vm227, %v4236, 0.0
  %4252 = vadd.xlane.f32.xlu0 %v4251
  %v4253 = vpop.xlane.xlu0 %4252
  %v4254 = vsel %vm227, %v4237, 0.0
  %4255 = vadd.xlane.f32.xlu0 %v4254
  %v4256 = vpop.xlane.xlu0 %4255
  %v4257 = vsel %vm227, %v4238, 0.0
  %4258 = vadd.xlane.f32.xlu0 %v4257
  %v4259 = vpop.xlane.xlu0 %4258
  %v4260 = vsel %vm227, %v4239, 0.0
  %4261 = vadd.xlane.f32.xlu0 %v4260
  %v4262 = vpop.xlane.xlu0 %4261
  %v4263 = vsel %vm227, %v4240, 0.0
  %4264 = vadd.xlane.f32.xlu0 %v4263
  %v4265 = vpop.xlane.xlu0 %4264
  %v4266 = vsel %vm227, %v4241, 0.0
  %4267 = vadd.xlane.f32.xlu0 %v4266
  %v4268 = vpop.xlane.xlu0 %4267
  %v4269 = vsel %vm768, %v4242, 0.0
  %4270 = vadd.xlane.f32.xlu0 %v4269
  %v4271 = vpop.xlane.xlu0 %4270
  %v4272 = vmul.f32 %v4247, %v772
  %v4273 = vmul.f32 %v4250, %v772
  %v4274 = vmul.f32 %v4253, %v772
  %v4275 = vmul.f32 %v4256, %v772
  %v4276 = vmul.f32 %v4259, %v772
  %v4277 = vmul.f32 %v4262, %v772
  %v4278 = vmul.f32 %v4265, %v772
  %v4279 = vmul.f32 %v4268, %v772
  %v4280 = vmul.f32 %v4271, %v772
  %v4281 = vsub.f32 %v4234, %v4272
  %v4282 = vsub.f32 %v4235, %v4273
  %v4283 = vsub.f32 %v4236, %v4274
  %v4284 = vsub.f32 %v4237, %v4275
  %v4285 = vsub.f32 %v4238, %v4276
  %v4286 = vsub.f32 %v4239, %v4277
  %v4287 = vsub.f32 %v4240, %v4278
  %v4288 = vsub.f32 %v4241, %v4279
  %v4289 = vsub.f32 %v4242, %v4280
  %v4290 = vmul.f32 %v4281, %v4281
  %v4291 = vmul.f32 %v4282, %v4282
  %v4292 = vmul.f32 %v4283, %v4283
  %v4293 = vmul.f32 %v4284, %v4284
  %v4294 = vmul.f32 %v4285, %v4285
  %v4295 = vmul.f32 %v4286, %v4286
  %v4296 = vmul.f32 %v4287, %v4287
  %v4297 = vmul.f32 %v4288, %v4288
  %v4298 = vmul.f32 %v4289, %v4289
  %v4299 = vsel %vm227, %v4290, 0.0
  %4300 = vadd.xlane.f32.xlu0 %v4299
  %v4301 = vpop.xlane.xlu0 %4300
  %v4302 = vsel %vm227, %v4291, 0.0
  %4303 = vadd.xlane.f32.xlu0 %v4302
  %v4304 = vpop.xlane.xlu0 %4303
  %v4305 = vsel %vm227, %v4292, 0.0
  %4306 = vadd.xlane.f32.xlu0 %v4305
  %v4307 = vpop.xlane.xlu0 %4306
  %v4308 = vsel %vm227, %v4293, 0.0
  %4309 = vadd.xlane.f32.xlu0 %v4308
  %v4310 = vpop.xlane.xlu0 %4309
  %v4311 = vsel %vm227, %v4294, 0.0
  %4312 = vadd.xlane.f32.xlu0 %v4311
  %v4313 = vpop.xlane.xlu0 %4312
  %v4314 = vsel %vm227, %v4295, 0.0
  %4315 = vadd.xlane.f32.xlu0 %v4314
  %v4316 = vpop.xlane.xlu0 %4315
  %v4317 = vsel %vm227, %v4296, 0.0
  %4318 = vadd.xlane.f32.xlu0 %v4317
  %v4319 = vpop.xlane.xlu0 %4318
  %v4320 = vsel %vm227, %v4297, 0.0
  %4321 = vadd.xlane.f32.xlu0 %v4320
  %v4322 = vpop.xlane.xlu0 %4321
  %v4323 = vsel %vm768, %v4298, 0.0
  %4324 = vadd.xlane.f32.xlu0 %v4323
  %v4325 = vpop.xlane.xlu0 %4324
  %v4326 = vmul.f32 %v4301, %v772
  %v4327 = vmul.f32 %v4304, %v772
  %v4328 = vmul.f32 %v4307, %v772
  %v4329 = vmul.f32 %v4310, %v772
  %v4330 = vmul.f32 %v4313, %v772
  %v4331 = vmul.f32 %v4316, %v772
  %v4332 = vmul.f32 %v4319, %v772
  %v4333 = vmul.f32 %v4322, %v772
  %v4334 = vmul.f32 %v4325, %v772
  %v4335 = vadd.f32 %v4326, 1e-12
  %v4336 = vadd.f32 %v4327, 1e-12
  %v4337 = vadd.f32 %v4328, 1e-12
  %v4338 = vadd.f32 %v4329, 1e-12
  %v4339 = vadd.f32 %v4330, 1e-12
  %v4340 = vadd.f32 %v4331, 1e-12
  %v4341 = vadd.f32 %v4332, 1e-12
  %v4342 = vadd.f32 %v4333, 1e-12
  %v4343 = vadd.f32 %v4334, 1e-12
  %v4344 = vrsqrt.pop %v4335
  %v4345 = vrsqrt.pop %v4336
  %v4346 = vrsqrt.pop %v4337
  %v4347 = vrsqrt.pop %v4338
  %v4348 = vrsqrt.pop %v4339
  %v4349 = vrsqrt.pop %v4340
  %v4350 = vrsqrt.pop %v4341
  %v4351 = vrsqrt.pop %v4342
  %v4352 = vrsqrt.pop %v4343
  %v4353 = vmul.f32 %v4281, %v4344
  %v4354 = vmul.f32 %v4282, %v4345
  %v4355 = vmul.f32 %v4283, %v4346
  %v4356 = vmul.f32 %v4284, %v4347
  %v4357 = vmul.f32 %v4285, %v4348
  %v4358 = vmul.f32 %v4286, %v4349
  %v4359 = vmul.f32 %v4287, %v4350
  %v4360 = vmul.f32 %v4288, %v4351
  %v4361 = vmul.f32 %v4289, %v4352
  %v4362 = vlaneseq
  %v4363 = vshrl.u32 %v4362, 7
  %v4364 = vsub.s32 0, %v4363
  %v4365 = vrot.slane %v4243, %v4364
  %v4366 = vmul.f32 %v4353, %v4365
  %v4367 = vmul.f32 %v4354, %v4365
  %v4368 = vmul.f32 %v4355, %v4365
  %v4369 = vmul.f32 %v4356, %v4365
  %v4370 = vmul.f32 %v4357, %v4365
  %v4371 = vmul.f32 %v4358, %v4365
  %v4372 = vmul.f32 %v4359, %v4365
  %v4373 = vmul.f32 %v4360, %v4365
  %v4374 = vmul.f32 %v4361, %v4365
  %v4375 = vlaneseq
  %v4376 = vshrl.u32 %v4375, 7
  %v4377 = vsub.s32 0, %v4376
  %v4378 = vrot.slane %v4244, %v4377
  %v4379 = vadd.f32 %v4366, %v4378
  %v4380 = vadd.f32 %v4367, %v4378
  %v4381 = vadd.f32 %v4368, %v4378
  %v4382 = vadd.f32 %v4369, %v4378
  %v4383 = vadd.f32 %v4370, %v4378
  %v4384 = vadd.f32 %v4371, %v4378
  %v4385 = vadd.f32 %v4372, %v4378
  %v4386 = vadd.f32 %v4373, %v4378
  %v4387 = vadd.f32 %v4374, %v4378
  %4388 = vrot.lane.b32.xlu0 %v2940, 32
  %v4389 = vpop.permute.xlu0 %4388
  %4390 = vrot.lane.b32.xlu0 %v2941, 32
  %v4391 = vpop.permute.xlu0 %4390
  %4392 = vrot.lane.b32.xlu0 %v2942, 32
  %v4393 = vpop.permute.xlu0 %4392
  %4394 = vrot.lane.b32.xlu0 %v2943, 32
  %v4395 = vpop.permute.xlu0 %4394
  %4396 = vrot.lane.b32.xlu0 %v2944, 32
  %v4397 = vpop.permute.xlu0 %4396
  %4398 = vrot.lane.b32.xlu0 %v2945, 32
  %v4399 = vpop.permute.xlu0 %4398
  %4400 = vrot.lane.b32.xlu0 %v2946, 32
  %v4401 = vpop.permute.xlu0 %4400
  %4402 = vrot.lane.b32.xlu0 %v2947, 32
  %v4403 = vpop.permute.xlu0 %4402
  %4404 = vrot.lane.b32.xlu0 %v2948, 32
  %v4405 = vpop.permute.xlu0 %4404
  %v4415 = vmul.f32 %v4379, %v4389
  %v4416 = vmul.f32 %v4380, %v4391
  %v4417 = vmul.f32 %v4381, %v4393
  %v4418 = vmul.f32 %v4382, %v4395
  %v4419 = vmul.f32 %v4383, %v4397
  %v4420 = vmul.f32 %v4384, %v4399
  %v4421 = vmul.f32 %v4385, %v4401
  %v4422 = vmul.f32 %v4386, %v4403
  %v4423 = vmul.f32 %v4387, %v4405
  %4433 = vrot.lane.b32.xlu0 %v515, 64
  %v4434 = vpop.permute.xlu0 %4433
  %4435 = vrot.lane.b32.xlu0 %v521, 64
  %v4436 = vpop.permute.xlu0 %4435
  %4437 = vrot.lane.b32.xlu0 %v527, 64
  %v4438 = vpop.permute.xlu0 %4437
  %4439 = vrot.lane.b32.xlu0 %v533, 64
  %v4440 = vpop.permute.xlu0 %4439
  %4441 = vrot.lane.b32.xlu0 %v539, 64
  %v4442 = vpop.permute.xlu0 %4441
  %4443 = vrot.lane.b32.xlu0 %v545, 64
  %v4444 = vpop.permute.xlu0 %4443
  %4445 = vrot.lane.b32.xlu0 %v551, 64
  %v4446 = vpop.permute.xlu0 %4445
  %4447 = vrot.lane.b32.xlu0 %v557, 64
  %v4448 = vpop.permute.xlu0 %4447
  %4449 = vrot.lane.b32.xlu0 %v563, 64
  %v4450 = vpop.permute.xlu0 %4449
  %v4460 = vadd.f32 %v4415, %v4434
  %v4461 = vadd.f32 %v4416, %v4436
  %v4462 = vadd.f32 %v4417, %v4438
  %v4463 = vadd.f32 %v4418, %v4440
  %v4464 = vadd.f32 %v4419, %v4442
  %v4465 = vadd.f32 %v4420, %v4444
  %v4466 = vadd.f32 %v4421, %v4446
  %v4467 = vadd.f32 %v4422, %v4448
  %v4468 = vadd.f32 %v4423, %v4450
  %s4469 = scalar_lea.vmem %s47, 32
  %v4470 = vld [vmem:[%s4469] sm:$0xff]
  %v4471 = vld [vmem:[%s4469 + $0x8] sm:$0xff]
  %v4472 = vld [vmem:[%s4469 + $0x10] sm:$0xff]
  %v4473 = vld [vmem:[%s4469 + $0x18] sm:$0xff]
  %v4474 = vld [vmem:[%s49 + $0x1] sm:$0x1]
  %v4475 = vlaneseq
  %v4476 = vshrl.u32 %v4475, 7
  %v4477 = vsub.s32 0, %v4476
  %v4478 = vrot.slane %v4474, %v4477
  %v4480 = vsel %vm227, %v4460, 0
  %v4483 = vsel %vm227, %v4461, 0
  %v4486 = vsel %vm227, %v4462, 0
  %v4489 = vsel %vm227, %v4463, 0
  %v4492 = vsel %vm227, %v4464, 0
  %v4495 = vsel %vm227, %v4465, 0
  %v4498 = vsel %vm227, %v4466, 0
  %v4501 = vsel %vm227, %v4467, 0
  %v4504 = vsel %vm227, %v4468, 0
  %4506 = vmatprep.subr.mxu0 0.0
  %4507 = vmatpush1.msra.mxu0 0.0
  %4508 = vmatprep.subr.mxu0 0.0
  %4509 = vmatpush1.msra.mxu0 0.0
  %4510 = vmatprep.subr.mxu0 0.0
  %4511 = vmatpush1.msra.mxu0 0.0
  %4512 = vmatprep.subr.mxu0 0.0
  %4513 = vmatpush1.msra.mxu0 0.0
  %4514 = vmatprep.subr.mxu0 0.0
  %4515 = vmatpush1.msra.mxu0 0.0
  %4516 = vmatprep.subr.mxu0 0.0
  %4517 = vmatpush1.msra.mxu0 0.0
  %4518 = vmatprep.subr.mxu0 0.0
  %4519 = vmatpush1.msra.mxu0 0.0
  %4520 = vmatprep.subr.mxu0 0.0
  %4521 = vmatpush1.msra.mxu0 0.0
  %4522 = vmatprep.subr.mxu0 0.0
  %4523 = vmatpush1.msra.mxu0 0.0
  %4524 = vmatprep.subr.mxu0 0.0
  %4525 = vmatpush1.msra.mxu0 0.0
  %4526 = vmatprep.subr.mxu0 0.0
  %4527 = vmatpush1.msra.mxu0 0.0
  %4528 = vmatprep.subr.mxu0 0.0
  %4529 = vmatpush1.msra.mxu0 0.0
  %4530 = vmatprep.subr.mxu0 0.0
  %4531 = vmatpush1.msra.mxu0 %v4473
  %4532 = vmatprep.subr.mxu0 0.0
  %4533 = vmatpush1.msra.mxu0 %v4472
  %4534 = vmatprep.subr.mxu0 0.0
  %4535 = vmatpush1.msra.mxu0 %v4471
  %4536 = vmatprep.subr.mxu0 0.0
  %4537 = vmatpush1.msra.mxu0 %v4470
  %4538 = vmatprep.subr.mxu0 0.0
  %4539 = vmatpush2.msra.mxu0 0.0
  %4540 = vmatprep.subr.mxu0 0.0
  %4541 = vmatpush2.msra.mxu0 0.0
  %4542 = vmatprep.subr.mxu0 0.0
  %4543 = vmatpush2.msra.mxu0 0.0
  %4544 = vmatprep.subr.mxu0 0.0
  %4545 = vmatpush2.msra.mxu0 0.0
  %4546 = vmatprep.subr.mxu0 0.0
  %4547 = vmatpush2.msra.mxu0 0.0
  %4548 = vmatprep.subr.mxu0 0.0
  %4549 = vmatpush2.msra.mxu0 0.0
  %4550 = vmatprep.subr.mxu0 0.0
  %4551 = vmatpush2.msra.mxu0 0.0
  %4552 = vmatprep.subr.mxu0 0.0
  %4553 = vmatpush2.msra.mxu0 0.0
  %4554 = vmatprep.subr.mxu0 0.0
  %4555 = vmatpush2.msra.mxu0 0.0
  %4556 = vmatprep.subr.mxu0 0.0
  %4557 = vmatpush2.msra.mxu0 0.0
  %4558 = vmatprep.subr.mxu0 0.0
  %4559 = vmatpush2.msra.mxu0 0.0
  %4560 = vmatprep.subr.mxu0 0.0
  %4561 = vmatpush2.msra.mxu0 0.0
  %4562 = vmatprep.subr.mxu0 0.0
  %4563 = vmatpush2.msra.mxu0 0.0
  %4564 = vmatprep.subr.mxu0 0.0
  %4565 = vmatpush2.msra.mxu0 0.0
  %4566 = vmatprep.subr.mxu0 0.0
  %4567 = vmatpush2.msra.mxu0 0.0
  %4568 = vmatprep.subr.mxu0 0.0
  %4569 = vmatpush2.msra.mxu0 0.0
  %4570 = vmatprep.mubr.f32.mxu0 0.0
  %4571 = vmatmul.mubr.f32.gmra.mxu0 %v4480
  %v4572 = vpop.f32.mrf.mxu0
  %v4573 = vadd.f32 %v4478, %v4572
  %v4574 = vpop.f32.mrf.mxu0
  %4575 = vmatprep.mubr.f32.mxu0 0.0
  %4576 = vmatmul.mubr.f32.gmra.mxu0 %v4483
  %v4577 = vpop.f32.mrf.mxu0
  %v4578 = vadd.f32 %v4478, %v4577
  %v4579 = vpop.f32.mrf.mxu0
  %4580 = vmatprep.mubr.f32.mxu0 0.0
  %4581 = vmatmul.mubr.f32.gmra.mxu0 %v4486
  %v4582 = vpop.f32.mrf.mxu0
  %v4583 = vadd.f32 %v4478, %v4582
  %v4584 = vpop.f32.mrf.mxu0
  %4585 = vmatprep.mubr.f32.mxu0 0.0
  %4586 = vmatmul.mubr.f32.gmra.mxu0 %v4489
  %v4587 = vpop.f32.mrf.mxu0
  %v4588 = vadd.f32 %v4478, %v4587
  %v4589 = vpop.f32.mrf.mxu0
  %4590 = vmatprep.mubr.f32.mxu0 0.0
  %4591 = vmatmul.mubr.f32.gmra.mxu0 %v4492
  %v4592 = vpop.f32.mrf.mxu0
  %v4593 = vadd.f32 %v4478, %v4592
  %v4594 = vpop.f32.mrf.mxu0
  %4595 = vmatprep.mubr.f32.mxu0 0.0
  %4596 = vmatmul.mubr.f32.gmra.mxu0 %v4495
  %v4597 = vpop.f32.mrf.mxu0
  %v4598 = vadd.f32 %v4478, %v4597
  %v4599 = vpop.f32.mrf.mxu0
  %4600 = vmatprep.mubr.f32.mxu0 0.0
  %4601 = vmatmul.mubr.f32.gmra.mxu0 %v4498
  %v4602 = vpop.f32.mrf.mxu0
  %v4603 = vadd.f32 %v4478, %v4602
  %v4604 = vpop.f32.mrf.mxu0
  %4605 = vmatprep.mubr.f32.mxu0 0.0
  %4606 = vmatmul.mubr.f32.gmra.mxu0 %v4501
  %v4607 = vpop.f32.mrf.mxu0
  %v4608 = vadd.f32 %v4478, %v4607
  %v4609 = vpop.f32.mrf.mxu0
  %4610 = vmatprep.mubr.f32.mxu0 0.0
  %4611 = vmatmul.mubr.f32.gmra.mxu0 %v4504
  %v4612 = vpop.f32.mrf.mxu0
  %v4613 = vadd.f32 %v4478, %v4612
  %v4614 = vpop.f32.mrf.mxu0
  %4615 = vdwg.mxu0
  %v4616 = vmul.f32 %v4573, %v4573
  %v4617 = vmul.f32 %v4578, %v4578
  %v4618 = vmul.f32 %v4583, %v4583
  %v4619 = vmul.f32 %v4588, %v4588
  %v4620 = vmul.f32 %v4593, %v4593
  %v4621 = vmul.f32 %v4598, %v4598
  %v4622 = vmul.f32 %v4603, %v4603
  %v4623 = vmul.f32 %v4608, %v4608
  %v4624 = vmul.f32 %v4613, %v4613
  %v4625 = vmul.f32 %v4573, %v4616
  %v4626 = vmul.f32 %v4578, %v4617
  %v4627 = vmul.f32 %v4583, %v4618
  %v4628 = vmul.f32 %v4588, %v4619
  %v4629 = vmul.f32 %v4593, %v4620
  %v4630 = vmul.f32 %v4598, %v4621
  %v4631 = vmul.f32 %v4603, %v4622
  %v4632 = vmul.f32 %v4608, %v4623
  %v4633 = vmul.f32 %v4613, %v4624
  %v4634 = vmul.f32 %v4625, 0.044715
  %v4635 = vmul.f32 %v4626, 0.044715
  %v4636 = vmul.f32 %v4627, 0.044715
  %v4637 = vmul.f32 %v4628, 0.044715
  %v4638 = vmul.f32 %v4629, 0.044715
  %v4639 = vmul.f32 %v4630, 0.044715
  %v4640 = vmul.f32 %v4631, 0.044715
  %v4641 = vmul.f32 %v4632, 0.044715
  %v4642 = vmul.f32 %v4633, 0.044715
  %v4643 = vadd.f32 %v4573, %v4634
  %v4644 = vadd.f32 %v4578, %v4635
  %v4645 = vadd.f32 %v4583, %v4636
  %v4646 = vadd.f32 %v4588, %v4637
  %v4647 = vadd.f32 %v4593, %v4638
  %v4648 = vadd.f32 %v4598, %v4639
  %v4649 = vadd.f32 %v4603, %v4640
  %v4650 = vadd.f32 %v4608, %v4641
  %v4651 = vadd.f32 %v4613, %v4642
  %v4652 = vmul.f32 %v4643, 0.7978846
  %v4653 = vmul.f32 %v4644, 0.7978846
  %v4654 = vmul.f32 %v4645, 0.7978846
  %v4655 = vmul.f32 %v4646, 0.7978846
  %v4656 = vmul.f32 %v4647, 0.7978846
  %v4657 = vmul.f32 %v4648, 0.7978846
  %v4658 = vmul.f32 %v4649, 0.7978846
  %v4659 = vmul.f32 %v4650, 0.7978846
  %v4660 = vmul.f32 %v4651, 0.7978846
  %v4661 = vtanh.pop %v4652
  %v4662 = vtanh.pop %v4653
  %v4663 = vtanh.pop %v4654
  %v4664 = vtanh.pop %v4655
  %v4665 = vtanh.pop %v4656
  %v4666 = vtanh.pop %v4657
  %v4667 = vtanh.pop %v4658
  %v4668 = vtanh.pop %v4659
  %v4669 = vtanh.pop %v4660
  %v4670 = vadd.f32 %v4661, 1.0
  %v4671 = vadd.f32 %v4662, 1.0
  %v4672 = vadd.f32 %v4663, 1.0
  %v4673 = vadd.f32 %v4664, 1.0
  %v4674 = vadd.f32 %v4665, 1.0
  %v4675 = vadd.f32 %v4666, 1.0
  %v4676 = vadd.f32 %v4667, 1.0
  %v4677 = vadd.f32 %v4668, 1.0
  %v4678 = vadd.f32 %v4669, 1.0
  %v4679 = vmul.f32 %v4670, 0.5
  %v4680 = vmul.f32 %v4671, 0.5
  %v4681 = vmul.f32 %v4672, 0.5
  %v4682 = vmul.f32 %v4673, 0.5
  %v4683 = vmul.f32 %v4674, 0.5
  %v4684 = vmul.f32 %v4675, 0.5
  %v4685 = vmul.f32 %v4676, 0.5
  %v4686 = vmul.f32 %v4677, 0.5
  %v4687 = vmul.f32 %v4678, 0.5
  %v4688 = vmul.f32 %v4573, %v4679
  %v4689 = vmul.f32 %v4578, %v4680
  %v4690 = vmul.f32 %v4583, %v4681
  %v4691 = vmul.f32 %v4588, %v4682
  %v4692 = vmul.f32 %v4593, %v4683
  %v4693 = vmul.f32 %v4598, %v4684
  %v4694 = vmul.f32 %v4603, %v4685
  %v4695 = vmul.f32 %v4608, %v4686
  %v4696 = vmul.f32 %v4613, %v4687
  %s4697 = scalar_lea.vmem %s51, 128
  %v4698 = vld [vmem:[%s4697] sm:$0xff]
  %v4699 = vld [vmem:[%s4697 + $0x8] sm:$0xff]
  %v4700 = vld [vmem:[%s4697 + $0x10] sm:$0xff]
  %v4701 = vld [vmem:[%s4697 + $0x18] sm:$0xff]
  %v4702 = vld [vmem:[%s4697 + $0x20] sm:$0xff]
  %v4703 = vld [vmem:[%s4697 + $0x28] sm:$0xff]
  %v4704 = vld [vmem:[%s4697 + $0x30] sm:$0xff]
  %v4705 = vld [vmem:[%s4697 + $0x38] sm:$0xff]
  %v4706 = vld [vmem:[%s4697 + $0x40] sm:$0xff]
  %v4707 = vld [vmem:[%s4697 + $0x48] sm:$0xff]
  %v4708 = vld [vmem:[%s4697 + $0x50] sm:$0xff]
  %v4709 = vld [vmem:[%s4697 + $0x58] sm:$0xff]
  %v4710 = vld [vmem:[%s4697 + $0x60] sm:$0xff]
  %v4711 = vld [vmem:[%s4697 + $0x68] sm:$0xff]
  %v4712 = vld [vmem:[%s4697 + $0x70] sm:$0xff]
  %v4713 = vld [vmem:[%s4697 + $0x78] sm:$0xff]
  %4714 = vmatprep.subr.mxu0 0.0
  %4715 = vmatpush1.msra.mxu0 %v4713
  %4716 = vmatprep.subr.mxu0 0.0
  %4717 = vmatpush1.msra.mxu0 %v4712
  %4718 = vmatprep.subr.mxu0 0.0
  %4719 = vmatpush1.msra.mxu0 %v4711
  %4720 = vmatprep.subr.mxu0 0.0
  %4721 = vmatpush1.msra.mxu0 %v4710
  %4722 = vmatprep.subr.mxu0 0.0
  %4723 = vmatpush1.msra.mxu0 %v4709
  %4724 = vmatprep.subr.mxu0 0.0
  %4725 = vmatpush1.msra.mxu0 %v4708
  %4726 = vmatprep.subr.mxu0 0.0
  %4727 = vmatpush1.msra.mxu0 %v4707
  %4728 = vmatprep.subr.mxu0 0.0
  %4729 = vmatpush1.msra.mxu0 %v4706
  %4730 = vmatprep.subr.mxu0 0.0
  %4731 = vmatpush1.msra.mxu0 %v4705
  %4732 = vmatprep.subr.mxu0 0.0
  %4733 = vmatpush1.msra.mxu0 %v4704
  %4734 = vmatprep.subr.mxu0 0.0
  %4735 = vmatpush1.msra.mxu0 %v4703
  %4736 = vmatprep.subr.mxu0 0.0
  %4737 = vmatpush1.msra.mxu0 %v4702
  %4738 = vmatprep.subr.mxu0 0.0
  %4739 = vmatpush1.msra.mxu0 %v4701
  %4740 = vmatprep.subr.mxu0 0.0
  %4741 = vmatpush1.msra.mxu0 %v4700
  %4742 = vmatprep.subr.mxu0 0.0
  %4743 = vmatpush1.msra.mxu0 %v4699
  %4744 = vmatprep.subr.mxu0 0.0
  %4745 = vmatpush1.msra.mxu0 %v4698
  %4746 = vmatprep.subr.mxu0 0.0
  %4747 = vmatpush2.msra.mxu0 0.0
  %4748 = vmatprep.subr.mxu0 0.0
  %4749 = vmatpush2.msra.mxu0 0.0
  %4750 = vmatprep.subr.mxu0 0.0
  %4751 = vmatpush2.msra.mxu0 0.0
  %4752 = vmatprep.subr.mxu0 0.0
  %4753 = vmatpush2.msra.mxu0 0.0
  %4754 = vmatprep.subr.mxu0 0.0
  %4755 = vmatpush2.msra.mxu0 0.0
  %4756 = vmatprep.subr.mxu0 0.0
  %4757 = vmatpush2.msra.mxu0 0.0
  %4758 = vmatprep.subr.mxu0 0.0
  %4759 = vmatpush2.msra.mxu0 0.0
  %4760 = vmatprep.subr.mxu0 0.0
  %4761 = vmatpush2.msra.mxu0 0.0
  %4762 = vmatprep.subr.mxu0 0.0
  %4763 = vmatpush2.msra.mxu0 0.0
  %4764 = vmatprep.subr.mxu0 0.0
  %4765 = vmatpush2.msra.mxu0 0.0
  %4766 = vmatprep.subr.mxu0 0.0
  %4767 = vmatpush2.msra.mxu0 0.0
  %4768 = vmatprep.subr.mxu0 0.0
  %4769 = vmatpush2.msra.mxu0 0.0
  %4770 = vmatprep.subr.mxu0 0.0
  %4771 = vmatpush2.msra.mxu0 0.0
  %4772 = vmatprep.subr.mxu0 0.0
  %4773 = vmatpush2.msra.mxu0 0.0
  %4774 = vmatprep.subr.mxu0 0.0
  %4775 = vmatpush2.msra.mxu0 0.0
  %4776 = vmatprep.subr.mxu0 0.0
  %4777 = vmatpush2.msra.mxu0 0.0
  %4778 = vmatprep.mubr.f32.mxu0 0.0
  %4779 = vmatmul.mubr.f32.gmra.mxu0 %v4688
  %v4780 = vpop.f32.mrf.mxu0
  %v4781 = vadd.f32 0.0, %v4780
  %v4782 = vpop.f32.mrf.mxu0
  %4783 = vmatprep.mubr.f32.mxu0 0.0
  %4784 = vmatmul.mubr.f32.gmra.mxu0 %v4689
  %v4785 = vpop.f32.mrf.mxu0
  %v4786 = vadd.f32 0.0, %v4785
  %v4787 = vpop.f32.mrf.mxu0
  %4788 = vmatprep.mubr.f32.mxu0 0.0
  %4789 = vmatmul.mubr.f32.gmra.mxu0 %v4690
  %v4790 = vpop.f32.mrf.mxu0
  %v4791 = vadd.f32 0.0, %v4790
  %v4792 = vpop.f32.mrf.mxu0
  %4793 = vmatprep.mubr.f32.mxu0 0.0
  %4794 = vmatmul.mubr.f32.gmra.mxu0 %v4691
  %v4795 = vpop.f32.mrf.mxu0
  %v4796 = vadd.f32 0.0, %v4795
  %v4797 = vpop.f32.mrf.mxu0
  %4798 = vmatprep.mubr.f32.mxu0 0.0
  %4799 = vmatmul.mubr.f32.gmra.mxu0 %v4692
  %v4800 = vpop.f32.mrf.mxu0
  %v4801 = vadd.f32 0.0, %v4800
  %v4802 = vpop.f32.mrf.mxu0
  %4803 = vmatprep.mubr.f32.mxu0 0.0
  %4804 = vmatmul.mubr.f32.gmra.mxu0 %v4693
  %v4805 = vpop.f32.mrf.mxu0
  %v4806 = vadd.f32 0.0, %v4805
  %v4807 = vpop.f32.mrf.mxu0
  %4808 = vmatprep.mubr.f32.mxu0 0.0
  %4809 = vmatmul.mubr.f32.gmra.mxu0 %v4694
  %v4810 = vpop.f32.mrf.mxu0
  %v4811 = vadd.f32 0.0, %v4810
  %v4812 = vpop.f32.mrf.mxu0
  %4813 = vmatprep.mubr.f32.mxu0 0.0
  %4814 = vmatmul.mubr.f32.gmra.mxu0 %v4695
  %v4815 = vpop.f32.mrf.mxu0
  %v4816 = vadd.f32 0.0, %v4815
  %v4817 = vpop.f32.mrf.mxu0
  %4818 = vmatprep.mubr.f32.mxu0 0.0
  %4819 = vmatmul.mubr.f32.gmra.mxu0 %v4696
  %v4820 = vpop.f32.mrf.mxu0
  %v4821 = vpop.f32.mrf.mxu0
  %4822 = vdwg.mxu0
  %v4823 = vadd.f32 %v4234, %v4781
  %v4824 = vadd.f32 %v4235, %v4786
  %v4825 = vadd.f32 %v4236, %v4791
  %v4826 = vadd.f32 %v4237, %v4796
  %v4827 = vadd.f32 %v4238, %v4801
  %v4828 = vadd.f32 %v4239, %v4806
  %v4829 = vadd.f32 %v4240, %v4811
  %v4830 = vadd.f32 %v4241, %v4816
  %v4831 = vld [vmem:[%s53 + $0x1] sm:$0x1]
  %v4832 = vlaneseq
  %v4833 = vshrl.u32 %v4832, 7
  %v4834 = vsub.s32 0, %v4833
  %v4835 = vrot.slane %v4831, %v4834
  %v4836 = vadd.f32 %v4823, %v4835
  %v4837 = vadd.f32 %v4824, %v4835
  %v4838 = vadd.f32 %v4825, %v4835
  %v4839 = vadd.f32 %v4826, %v4835
  %v4840 = vadd.f32 %v4827, %v4835
  %v4841 = vadd.f32 %v4828, %v4835
  %v4842 = vadd.f32 %v4829, %v4835
  %v4843 = vadd.f32 %v4830, %v4835
  %v4844 = vld [vmem:[%s55] sm:$0x1]
  %v4845 = vld [vmem:[%s57] sm:$0x1]
  %v4846 = vsel %vm227, %v4836, 0.0
  %4847 = vadd.xlane.f32.xlu0 %v4846
  %v4848 = vpop.xlane.xlu0 %4847
  %v4849 = vsel %vm227, %v4837, 0.0
  %4850 = vadd.xlane.f32.xlu0 %v4849
  %v4851 = vpop.xlane.xlu0 %4850
  %v4852 = vsel %vm227, %v4838, 0.0
  %4853 = vadd.xlane.f32.xlu0 %v4852
  %v4854 = vpop.xlane.xlu0 %4853
  %v4855 = vsel %vm227, %v4839, 0.0
  %4856 = vadd.xlane.f32.xlu0 %v4855
  %v4857 = vpop.xlane.xlu0 %4856
  %v4858 = vsel %vm227, %v4840, 0.0
  %4859 = vadd.xlane.f32.xlu0 %v4858
  %v4860 = vpop.xlane.xlu0 %4859
  %v4861 = vsel %vm227, %v4841, 0.0
  %4862 = vadd.xlane.f32.xlu0 %v4861
  %v4863 = vpop.xlane.xlu0 %4862
  %v4864 = vsel %vm227, %v4842, 0.0
  %4865 = vadd.xlane.f32.xlu0 %v4864
  %v4866 = vpop.xlane.xlu0 %4865
  %v4867 = vsel %vm227, %v4843, 0.0
  %4868 = vadd.xlane.f32.xlu0 %v4867
  %v4869 = vpop.xlane.xlu0 %4868
  %v4870 = vmul.f32 %v4848, %v772
  %v4871 = vmul.f32 %v4851, %v772
  %v4872 = vmul.f32 %v4854, %v772
  %v4873 = vmul.f32 %v4857, %v772
  %v4874 = vmul.f32 %v4860, %v772
  %v4875 = vmul.f32 %v4863, %v772
  %v4876 = vmul.f32 %v4866, %v772
  %v4877 = vmul.f32 %v4869, %v772
  %v4878 = vsub.f32 %v4836, %v4870
  %v4879 = vsub.f32 %v4837, %v4871
  %v4880 = vsub.f32 %v4838, %v4872
  %v4881 = vsub.f32 %v4839, %v4873
  %v4882 = vsub.f32 %v4840, %v4874
  %v4883 = vsub.f32 %v4841, %v4875
  %v4884 = vsub.f32 %v4842, %v4876
  %v4885 = vsub.f32 %v4843, %v4877
  %v4886 = vmul.f32 %v4878, %v4878
  %v4887 = vmul.f32 %v4879, %v4879
  %v4888 = vmul.f32 %v4880, %v4880
  %v4889 = vmul.f32 %v4881, %v4881
  %v4890 = vmul.f32 %v4882, %v4882
  %v4891 = vmul.f32 %v4883, %v4883
  %v4892 = vmul.f32 %v4884, %v4884
  %v4893 = vmul.f32 %v4885, %v4885
  %v4894 = vsel %vm227, %v4886, 0.0
  %4895 = vadd.xlane.f32.xlu0 %v4894
  %v4896 = vpop.xlane.xlu0 %4895
  %v4897 = vsel %vm227, %v4887, 0.0
  %4898 = vadd.xlane.f32.xlu0 %v4897
  %v4899 = vpop.xlane.xlu0 %4898
  %v4900 = vsel %vm227, %v4888, 0.0
  %4901 = vadd.xlane.f32.xlu0 %v4900
  %v4902 = vpop.xlane.xlu0 %4901
  %v4903 = vsel %vm227, %v4889, 0.0
  %4904 = vadd.xlane.f32.xlu0 %v4903
  %v4905 = vpop.xlane.xlu0 %4904
  %v4906 = vsel %vm227, %v4890, 0.0
  %4907 = vadd.xlane.f32.xlu0 %v4906
  %v4908 = vpop.xlane.xlu0 %4907
  %v4909 = vsel %vm227, %v4891, 0.0
  %4910 = vadd.xlane.f32.xlu0 %v4909
  %v4911 = vpop.xlane.xlu0 %4910
  %v4912 = vsel %vm227, %v4892, 0.0
  %4913 = vadd.xlane.f32.xlu0 %v4912
  %v4914 = vpop.xlane.xlu0 %4913
  %v4915 = vsel %vm227, %v4893, 0.0
  %4916 = vadd.xlane.f32.xlu0 %v4915
  %v4917 = vpop.xlane.xlu0 %4916
  %v4918 = vmul.f32 %v4896, %v772
  %v4919 = vmul.f32 %v4899, %v772
  %v4920 = vmul.f32 %v4902, %v772
  %v4921 = vmul.f32 %v4905, %v772
  %v4922 = vmul.f32 %v4908, %v772
  %v4923 = vmul.f32 %v4911, %v772
  %v4924 = vmul.f32 %v4914, %v772
  %v4925 = vmul.f32 %v4917, %v772
  %v4926 = vadd.f32 %v4918, 1e-12
  %v4927 = vadd.f32 %v4919, 1e-12
  %v4928 = vadd.f32 %v4920, 1e-12
  %v4929 = vadd.f32 %v4921, 1e-12
  %v4930 = vadd.f32 %v4922, 1e-12
  %v4931 = vadd.f32 %v4923, 1e-12
  %v4932 = vadd.f32 %v4924, 1e-12
  %v4933 = vadd.f32 %v4925, 1e-12
  %v4934 = vrsqrt.pop %v4926
  %v4935 = vrsqrt.pop %v4927
  %v4936 = vrsqrt.pop %v4928
  %v4937 = vrsqrt.pop %v4929
  %v4938 = vrsqrt.pop %v4930
  %v4939 = vrsqrt.pop %v4931
  %v4940 = vrsqrt.pop %v4932
  %v4941 = vrsqrt.pop %v4933
  %v4942 = vmul.f32 %v4878, %v4934
  %v4943 = vmul.f32 %v4879, %v4935
  %v4944 = vmul.f32 %v4880, %v4936
  %v4945 = vmul.f32 %v4881, %v4937
  %v4946 = vmul.f32 %v4882, %v4938
  %v4947 = vmul.f32 %v4883, %v4939
  %v4948 = vmul.f32 %v4884, %v4940
  %v4949 = vmul.f32 %v4885, %v4941
  %v4951 = vlaneseq
  %v4952 = vshrl.u32 %v4951, 7
  %v4953 = vsub.s32 0, %v4952
  %v4954 = vrot.slane %v4844, %v4953
  %v4956 = vmul.f32 %v4942, %v4954
  %v4957 = vmul.f32 %v4943, %v4954
  %v4958 = vmul.f32 %v4944, %v4954
  %v4959 = vmul.f32 %v4945, %v4954
  %v4960 = vmul.f32 %v4946, %v4954
  %v4961 = vmul.f32 %v4947, %v4954
  %v4962 = vmul.f32 %v4948, %v4954
  %v4963 = vmul.f32 %v4949, %v4954
  %v4965 = vlaneseq
  %v4966 = vshrl.u32 %v4965, 7
  %v4967 = vsub.s32 0, %v4966
  %v4968 = vrot.slane %v4845, %v4967
  %v4970 = vadd.f32 %v4956, %v4968
  %v4971 = vadd.f32 %v4957, %v4968
  %v4972 = vadd.f32 %v4958, %v4968
  %v4973 = vadd.f32 %v4959, %v4968
  %v4974 = vadd.f32 %v4960, %v4968
  %v4975 = vadd.f32 %v4961, %v4968
  %v4976 = vadd.f32 %v4962, %v4968
  %v4977 = vadd.f32 %v4963, %v4968
  %4978 = vst.msk [vmem:[%s59] sm:$0xff] %vm227, %v4970
  %4979 = vst.msk [vmem:[%s59 + $0x8] sm:$0xff] %vm227, %v4971
  %4980 = vst.msk [vmem:[%s59 + $0x10] sm:$0xff] %vm227, %v4972
  %4981 = vst.msk [vmem:[%s59 + $0x18] sm:$0xff] %vm227, %v4973
  %4982 = vst.msk [vmem:[%s59 + $0x20] sm:$0xff] %vm227, %v4974
  %4983 = vst.msk [vmem:[%s59 + $0x28] sm:$0xff] %vm227, %v4975
  %4984 = vst.msk [vmem:[%s59 + $0x30] sm:$0xff] %vm227, %v4976
  %4985 = vst.msk [vmem:[%s59 + $0x38] sm:$0xff] %vm227, %v4977
  // Predicated region
  $region118: #{tpu_custom_call.1} parent=0 // pred_check
    _
  $region119: #{tpu_custom_call.1} parent=0 // pred_check_branch
    %4987 = sbr.rel (0) target = $region121
  $region120: #{tpu_custom_call.1} parent=0 // pred_region
    _
  $region121: #{tpu_custom_call.1} parent=0 // pred_fallthru
    _
  // Predicated region
  $region122: #{tpu_custom_call.1} parent=0 // pred_check
    _
  $region123: #{tpu_custom_call.1} parent=0 // pred_check_branch
    %4989 = sbr.rel (0) target = $region125
  $region124: #{tpu_custom_call.1} parent=0 // pred_region
    _
  $region125: #{tpu_custom_call.1} parent=0 // pred_fallthru
    _

</llo_original>
